<compile_context>
chip_gen: v7x
topology: tpu7x:2x2x1
jax: 0.10.0
libtpu: 0.0.40
codegen_flags: <defaults>
</compile_context>

<pallas_src>
import jax
import jax.numpy as jnp
from jax.experimental import pallas as pl
from jax.experimental.pallas import tpu as pltpu

# ---- config (cfg) ----
B        = 2      # batch
N        = 64     # num_inputs
D_IN     = 32     # cfg.d_in
D_SLOT   = 32     # cfg.d_slot
D_MLP    = 64     # cfg.d_mlp
N_SLOTS  = 8      # cfg.n_slots
N_ITERS  = 3      # cfg.n_sa_iters
EPS_LN   = 1e-5   # torch LayerNorm default eps
SCALE    = D_SLOT ** -0.5   # dot_prod distance factor

# packed weight-slab row offsets
_WQ_R0   = 0
_WKV_R0  = _WQ_R0 + D_SLOT          # 32
_W1_R0   = _WKV_R0 + D_IN           # 64
_W2_R0   = _W1_R0 + D_SLOT          # 96
_WGRU_R0 = _W2_R0 + D_MLP           # 160
_W_ROWS  = _WGRU_R0 + 2 * D_SLOT    # 224
_VEC_ROWS = 16


def _ln(x, g, b):
    mu = jnp.mean(x, axis=-1, keepdims=True)
    var = jnp.mean(jnp.square(x - mu), axis=-1, keepdims=True)
    return (x - mu) * jax.lax.rsqrt(var + EPS_LN) * g + b


# --------------------------------------------------------------------------
# kernel (parameterized by BB = number of batch elements per grid step)
# --------------------------------------------------------------------------
def make_kernel(BB):
    def kernel(x_ref, noise_ref, vec_ref, w_ref, out_ref):
        # ---- unpack packed parameter slabs (all static, lane-0 aligned) ----
        lni_g = vec_ref[0:1, 0:D_IN];    lni_b = vec_ref[1:2, 0:D_IN]
        lns_g = vec_ref[2:3, 0:D_SLOT];  lns_b = vec_ref[3:4, 0:D_SLOT]
        lnm_g = vec_ref[4:5, 0:D_SLOT];  lnm_b = vec_ref[5:6, 0:D_SLOT]
        mu    = vec_ref[6:7, 0:D_SLOT];  sigma = vec_ref[7:8, 0:D_SLOT]
        b_gru = vec_ref[8:9, :]                       # (1, 4*D_SLOT) = (1,128)
        b1    = vec_ref[9:10, 0:D_MLP]                # (1, 64)
        b2    = vec_ref[10:11, 0:D_SLOT]              # (1, 32)

        wq_t  = w_ref[_WQ_R0:_WQ_R0 + D_SLOT, 0:D_SLOT]        # (32,32) SCALE folded in
        wkv_t = w_ref[_WKV_R0:_WKV_R0 + D_IN, 0:2 * D_SLOT]    # (32,64)  [Wk^T | Wv^T]
        w1_t  = w_ref[_W1_R0:_W1_R0 + D_SLOT, 0:D_MLP]         # (32,64)
        w2_t  = w_ref[_W2_R0:_W2_R0 + D_MLP, 0:D_SLOT]         # (64,32)
        wgru  = w_ref[_WGRU_R0:_WGRU_R0 + 2 * D_SLOT, :]       # (64,128)

        # ---- input LayerNorm + fused K/V projection (all BB batches at once) ----
        x = x_ref[...].reshape(BB * N, D_IN)
        x_ln = _ln(x, lni_g, lni_b)
        kv = jnp.dot(x_ln, wkv_t, preferred_element_type=jnp.float32)  # (BB*N, 64)
        kv3 = kv.reshape(BB, N, 2 * D_SLOT)
        k3 = kv3[:, :, 0:D_SLOT]                 # (BB, N, 32)
        v3 = kv3[:, :, D_SLOT:2 * D_SLOT]        # (BB, N, 32)

        # ---- slot init: mu + exp(log_sigma) * noise  (sigma precomputed host-side) ----
        noise = noise_ref[...].reshape(BB * N_SLOTS, D_SLOT)
        slots = mu + sigma * noise               # (BB*S, 32)

        for _ in range(N_ITERS):                 # static unroll of n_sa_iters
            slots_prev = slots

            # norm_slots + project_q (wq_t already scaled by d_slot^-0.5)
            s_ln = _ln(slots, lns_g, lns_b)
            q = jnp.dot(s_ln, wq_t, preferred_element_type=jnp.float32)
            q3 = q.reshape(BB, N_SLOTS, D_SLOT)

            # cost in (b, slots, inputs) orientation: softmax over slots (axis 1),
            # renormalize over inputs (axis 2) -> no transposes needed.
            cost = jnp.einsum('bsd,bnd->bsn', q3, k3,
                              preferred_element_type=jnp.float32)      # (BB,S,N)
            cost = cost - jnp.max(cost, axis=1, keepdims=True)
            e = jnp.exp(cost)
            attn = e * pl.reciprocal(jnp.sum(e, axis=1, keepdims=True), approx=True)
            attn = attn + 1e-8
            attn = attn * pl.reciprocal(jnp.sum(attn, axis=2, keepdims=True), approx=True)

            upd = jnp.einsum('bsn,bnd->bsd', attn, v3,
                             preferred_element_type=jnp.float32)
            upd = upd.reshape(BB * N_SLOTS, D_SLOT)                    # (BB*S, 32)

            # fused GRUCell: one (BB*S, 64) @ (64, 128) matmul
            cat = jnp.concatenate([upd, slots_prev], axis=-1)          # (BB*S, 64)
            g = jnp.dot(cat, wgru, preferred_element_type=jnp.float32) + b_gru
            r = jax.nn.sigmoid(g[:, 0:D_SLOT])
            z = jax.nn.sigmoid(g[:, D_SLOT:2 * D_SLOT])
            n = jnp.tanh(g[:, 2 * D_SLOT:3 * D_SLOT] + r * g[:, 3 * D_SLOT:4 * D_SLOT])
            slots = (1.0 - z) * n + z * slots_prev

            # slots = slots + mlp(norm_mlp(slots))
            m_ln = _ln(slots, lnm_g, lnm_b)
            h = jnp.maximum(
                jnp.dot(m_ln, w1_t, preferred_element_type=jnp.float32) + b1, 0.0)
            slots = slots + jnp.dot(h, w2_t, preferred_element_type=jnp.float32) + b2

        out_ref[...] = slots.reshape(BB, N_SLOTS, D_SLOT)

    return kernel


# --------------------------------------------------------------------------
# host-side parameter packing
# --------------------------------------------------------------------------
def pack_params(params):
    (lni_g, lni_b, lns_g, lns_b, lnm_g, lnm_b,
     wq, wk, wv, wih, whh, bih, bhh, w1, b1, w2, b2, mu, logsig) = params
    f32 = jnp.float32
    D = D_SLOT

    # GRU packed weight (2D, 4D): rows 0:D from W_ih^T, rows D:2D from W_hh^T,
    # columns [r | z | gx_n | gh_n].
    wih_t = wih.T.astype(f32)                      # (D, 3D)
    whh_t = whh.T.astype(f32)                      # (D, 3D)
    zD = jnp.zeros((D, D), f32)
    top = jnp.concatenate([wih_t, zD], axis=1)                                    # (D,4D)
    bot = jnp.concatenate([whh_t[:, 0:2 * D], zD, whh_t[:, 2 * D:3 * D]], axis=1)  # (D,4D)
    wgru = jnp.concatenate([top, bot], axis=0)     # (2D, 4D) = (64, 128)
    b_gru = jnp.concatenate([
        bih[0, 0:D] + bhh[0, 0:D],
        bih[0, D:2 * D] + bhh[0, D:2 * D],
        bih[0, 2 * D:3 * D],
        bhh[0, 2 * D:3 * D]], axis=0)              # (128,)

    def row(v):
        v = jnp.asarray(v, f32).reshape(-1)
        return jnp.pad(v, (0, 128 - v.shape[0]))

    rows = [row(lni_g), row(lni_b), row(lns_g), row(lns_b),
            row(lnm_g), row(lnm_b), row(mu), row(jnp.exp(logsig)),
            row(b_gru), row(b1), row(b2)]
    rows += [jnp.zeros((128,), f32)] * (_VEC_ROWS - len(rows))
    vec_slab = jnp.stack(rows, axis=0)             # (16, 128)

    def blk(w):
        w = jnp.asarray(w, f32)
        return jnp.pad(w, ((0, 0), (0, 128 - w.shape[1])))

    w_slab = jnp.concatenate([
        blk(SCALE * wq.T),                               # rows   0: 32  q proj (pre-scaled)
        blk(jnp.concatenate([wk.T, wv.T], axis=1)),      # rows  32: 64  fused K/V proj
        blk(w1.T),                                       # rows  64: 96  mlp layer 1
        blk(w2.T),                                       # rows  96:160  mlp layer 2
        wgru,                                            # rows 160:224  fused GRU
    ], axis=0)                                           # (224, 128)

    return vec_slab, w_slab


def _default_fold_batch():
    # Fold the batch into one grid step on single-TensorCore chips (v5e/v6e);
    # keep grid=(B,) "parallel" on dual-TC v7x so the two batch elements shard
    # across the two TensorCores.
    try:
        kind = jax.devices()[0].device_kind.lower()
    except Exception:
        return True
    return ("v7" not in kind) and ("7x" not in kind)


def slot_attention_pallas(inputs, noise, params, fold_batch=None):
    if fold_batch is None:
        fold_batch = _default_fold_batch()
    BB = B if fold_batch else 1
    assert B % BB == 0
    grid = (B // BB,)

    vec_slab, w_slab = pack_params(params)

    in_specs = [
        pl.BlockSpec((BB, N, D_IN), lambda g: (g, 0, 0)),           # inputs
        pl.BlockSpec((BB, N_SLOTS, D_SLOT), lambda g: (g, 0, 0)),   # slot noise
        pl.BlockSpec((_VEC_ROWS, 128), lambda g: (0, 0)),           # packed vectors
        pl.BlockSpec((_W_ROWS, 128), lambda g: (0, 0)),             # packed weights
    ]

    return pl.pallas_call(
        make_kernel(BB),
        out_shape=jax.ShapeDtypeStruct((B, N_SLOTS, D_SLOT), jnp.float32),
        grid=grid,
        in_specs=in_specs,
        out_specs=pl.BlockSpec((BB, N_SLOTS, D_SLOT), lambda g: (g, 0, 0)),
        compiler_params=pltpu.CompilerParams(dimension_semantics=("parallel",)),
    )(inputs, noise, vec_slab, w_slab)


# --------------------------------------------------------------------------
# pure-JAX reference mirroring the PyTorch forward
# --------------------------------------------------------------------------
def slot_attention_ref(inputs, noise, params):
    (lni_g, lni_b, lns_g, lns_b, lnm_g, lnm_b,
     wq, wk, wv, wih, whh, bih, bhh, w1, b1, w2, b2, mu, logsig) = params

    x_ln = _ln(inputs, lni_g[0], lni_b[0])
    k = x_ln @ wk.T
    v = x_ln @ wv.T
    slots = mu[None, 0] + jnp.exp(logsig[None, 0]) * noise
    for _ in range(N_ITERS):
        slots_prev = slots
        s_ln = _ln(slots, lns_g[0], lns_b[0])
        q = s_ln @ wq.T
        cost = SCALE * jnp.einsum("bnd,bsd->bns", k, q)
        attn = jax.nn.softmax(cost, axis=-1) + 1e-8
        attn = attn / jnp.sum(attn, axis=1, keepdims=True)
        updates = jnp.einsum("bns,bnd->bsd", attn, v)
        gx = updates @ wih.T + bih[0]
        gh = slots_prev @ whh.T + bhh[0]
        r = jax.nn.sigmoid(gx[..., 0:D_SLOT] + gh[..., 0:D_SLOT])
        z = jax.nn.sigmoid(gx[..., D_SLOT:2 * D_SLOT] + gh[..., D_SLOT:2 * D_SLOT])
        n = jnp.tanh(gx[..., 2 * D_SLOT:] + r * gh[..., 2 * D_SLOT:])
        slots = (1.0 - z) * n + z * slots_prev
        m_ln = _ln(slots, lnm_g[0], lnm_b[0])
        h = jnp.maximum(m_ln @ w1.T + b1[0], 0.0)
        slots = slots + h @ w2.T + b2[0]
    return slots


def make_params(key):
    ks = jax.random.split(key, 16)
    f32 = jnp.float32

    def lin(k, shape, fan_in):
        return (jax.random.normal(k, shape, f32) * (fan_in ** -0.5)).astype(f32)

    lni_g = jnp.ones((1, D_IN), f32);   lni_b = jnp.zeros((1, D_IN), f32)
    lns_g = jnp.ones((1, D_SLOT), f32); lns_b = jnp.zeros((1, D_SLOT), f32)
    lnm_g = jnp.ones((1, D_SLOT), f32); lnm_b = jnp.zeros((1, D_SLOT), f32)
    wq = lin(ks[0], (D_SLOT, D_SLOT), D_SLOT)
    wk = lin(ks[1], (D_SLOT, D_IN), D_IN)
    wv = lin(ks[2], (D_SLOT, D_IN), D_IN)
    wih = lin(ks[3], (3 * D_SLOT, D_SLOT), D_SLOT)
    whh = lin(ks[4], (3 * D_SLOT, D_SLOT), D_SLOT)
    bih = lin(ks[5], (1, 3 * D_SLOT), D_SLOT)
    bhh = lin(ks[6], (1, 3 * D_SLOT), D_SLOT)
    w1 = lin(ks[7], (D_MLP, D_SLOT), D_SLOT)
    b1 = lin(ks[8], (1, D_MLP), D_SLOT)
    w2 = lin(ks[9], (D_SLOT, D_MLP), D_MLP)
    b2 = lin(ks[10], (1, D_SLOT), D_MLP)
    # xavier_uniform-style init for mu / log_sigma (shape (1,1,D) -> stored (1,D))
    lim = (6.0 / (1 + D_SLOT)) ** 0.5
    mu = jax.random.uniform(ks[11], (1, D_SLOT), f32, -lim, lim)
    logsig = jax.random.uniform(ks[12], (1, D_SLOT), f32, -lim, lim)
    return (lni_g, lni_b, lns_g, lns_b, lnm_g, lnm_b,
            wq, wk, wv, wih, whh, bih, bhh, w1, b1, w2, b2, mu, logsig)


if __name__ == "__main__":
    key = jax.random.PRNGKey(0)
    k_in, k_noise, k_par = jax.random.split(key, 3)
    inputs = jax.random.normal(k_in, (B, N, D_IN), jnp.float32)
    # torch.randn slot init is sampled outside the kernel (deterministic for test)
    noise = jax.random.normal(k_noise, (B, N_SLOTS, D_SLOT), jnp.float32)
    params = make_params(k_par)

    out = slot_attention_pallas(inputs, noise, params)
    out = jax.block_until_ready(out)

    ref = slot_attention_ref(inputs, noise, params)
    assert out.shape == (B, N_SLOTS, D_SLOT)
    err = float(jnp.max(jnp.abs(out - ref)))
    # tolerance accounts for pl.reciprocal(approx=True) in softmax/renorm
    assert err < 2e-3, err
    print("KERNEL_OK")
</pallas_src>

<mosaic_0001>
module attributes {stable_mosaic.version = 11 : i64} {
  func.func @kernel(%arg0: i32, %arg1: memref<2x64x32xf32, #tpu.memory_space<vmem>>, %arg2: memref<2x8x32xf32, #tpu.memory_space<vmem>>, %arg3: memref<16x128xf32, #tpu.memory_space<vmem>>, %arg4: memref<224x128xf32, #tpu.memory_space<vmem>>, %arg5: memref<2x8x32xf32, #tpu.memory_space<vmem>>) attributes {dimension_semantics = [#tpu.dimension_semantics<parallel>], iteration_bounds = array<i64: 1>, scalar_prefetch = 0 : i64, scratch_operands = 0 : i64, tpu.core_type = #tpu.core_type<tc>, window_params = [{transform_indices = @transform_0, window_bounds = array<i64: 2, 64, 32>}, {transform_indices = @transform_1, window_bounds = array<i64: 2, 8, 32>}, {pipeline_mode = #tpu.pipeline_mode<synchronous>, transform_indices = @transform_2, window_bounds = array<i64: 16, 128>}, {pipeline_mode = #tpu.pipeline_mode<synchronous>, transform_indices = @transform_3, window_bounds = array<i64: 224, 128>}, {transform_indices = @transform_4, window_bounds = array<i64: 2, 8, 32>}]} {
    %c0 = arith.constant 0 : index
    %c0_0 = arith.constant 0 : index
    %0 = vector.load %arg3[%c0, %c0_0] : memref<16x128xf32, #tpu.memory_space<vmem>>, vector<1x32xf32>
    %c1 = arith.constant 1 : index
    %c0_1 = arith.constant 0 : index
    %1 = vector.load %arg3[%c1, %c0_1] : memref<16x128xf32, #tpu.memory_space<vmem>>, vector<1x32xf32>
    %c2 = arith.constant 2 : index
    %c0_2 = arith.constant 0 : index
    %2 = vector.load %arg3[%c2, %c0_2] : memref<16x128xf32, #tpu.memory_space<vmem>>, vector<1x32xf32>
    %c3 = arith.constant 3 : index
    %c0_3 = arith.constant 0 : index
    %3 = vector.load %arg3[%c3, %c0_3] : memref<16x128xf32, #tpu.memory_space<vmem>>, vector<1x32xf32>
    %c4 = arith.constant 4 : index
    %c0_4 = arith.constant 0 : index
    %4 = vector.load %arg3[%c4, %c0_4] : memref<16x128xf32, #tpu.memory_space<vmem>>, vector<1x32xf32>
    %c5 = arith.constant 5 : index
    %c0_5 = arith.constant 0 : index
    %5 = vector.load %arg3[%c5, %c0_5] : memref<16x128xf32, #tpu.memory_space<vmem>>, vector<1x32xf32>
    %c6 = arith.constant 6 : index
    %c0_6 = arith.constant 0 : index
    %6 = vector.load %arg3[%c6, %c0_6] : memref<16x128xf32, #tpu.memory_space<vmem>>, vector<1x32xf32>
    %c7 = arith.constant 7 : index
    %c0_7 = arith.constant 0 : index
    %7 = vector.load %arg3[%c7, %c0_7] : memref<16x128xf32, #tpu.memory_space<vmem>>, vector<1x32xf32>
    %c8 = arith.constant 8 : index
    %c0_8 = arith.constant 0 : index
    %8 = vector.load %arg3[%c8, %c0_8] : memref<16x128xf32, #tpu.memory_space<vmem>>, vector<1x128xf32>
    %c9 = arith.constant 9 : index
    %c0_9 = arith.constant 0 : index
    %9 = vector.load %arg3[%c9, %c0_9] : memref<16x128xf32, #tpu.memory_space<vmem>>, vector<1x64xf32>
    %c10 = arith.constant 10 : index
    %c0_10 = arith.constant 0 : index
    %10 = vector.load %arg3[%c10, %c0_10] : memref<16x128xf32, #tpu.memory_space<vmem>>, vector<1x32xf32>
    %c0_11 = arith.constant 0 : index
    %c0_12 = arith.constant 0 : index
    %11 = vector.load %arg4[%c0_11, %c0_12] : memref<224x128xf32, #tpu.memory_space<vmem>>, vector<32x32xf32>
    %c32 = arith.constant 32 : index
    %c0_13 = arith.constant 0 : index
    %12 = vector.load %arg4[%c32, %c0_13] : memref<224x128xf32, #tpu.memory_space<vmem>>, vector<32x64xf32>
    %c64 = arith.constant 64 : index
    %c0_14 = arith.constant 0 : index
    %13 = vector.load %arg4[%c64, %c0_14] : memref<224x128xf32, #tpu.memory_space<vmem>>, vector<32x64xf32>
    %c96 = arith.constant 96 : index
    %c0_15 = arith.constant 0 : index
    %14 = vector.load %arg4[%c96, %c0_15] : memref<224x128xf32, #tpu.memory_space<vmem>>, vector<64x32xf32>
    %c160 = arith.constant 160 : index
    %c0_16 = arith.constant 0 : index
    %15 = vector.load %arg4[%c160, %c0_16] : memref<224x128xf32, #tpu.memory_space<vmem>>, vector<64x128xf32>
    %c0_17 = arith.constant 0 : index
    %c0_18 = arith.constant 0 : index
    %c0_19 = arith.constant 0 : index
    %16 = vector.load %arg1[%c0_17, %c0_18, %c0_19] : memref<2x64x32xf32, #tpu.memory_space<vmem>>, vector<2x64x32xf32>
    %17 = vector.shape_cast %16 : vector<2x64x32xf32> to vector<128x32xf32>
    %cst = arith.constant dense<0.000000e+00> : vector<128xf32>
    %18 = vector.multi_reduction <add>, %17, %cst [1] : vector<128x32xf32> to vector<128xf32>
    %19 = vector.shape_cast %18 : vector<128xf32> to vector<128x1xf32>
    %cst_20 = arith.constant 3.200000e+01 : f32
    %20 = vector.broadcast %cst_20 : f32 to vector<128x1xf32>
    %21 = arith.divf %19, %20 : vector<128x1xf32>
    %22 = vector.broadcast %21 : vector<128x1xf32> to vector<128x32xf32>
    %23 = arith.subf %17, %22 : vector<128x32xf32>
    %24 = arith.mulf %23, %23 : vector<128x32xf32>
    %cst_21 = arith.constant dense<0.000000e+00> : vector<128xf32>
    %25 = vector.multi_reduction <add>, %24, %cst_21 [1] : vector<128x32xf32> to vector<128xf32>
    %26 = vector.shape_cast %25 : vector<128xf32> to vector<128x1xf32>
    %cst_22 = arith.constant 3.200000e+01 : f32
    %27 = vector.broadcast %cst_22 : f32 to vector<128x1xf32>
    %28 = arith.divf %26, %27 : vector<128x1xf32>
    %29 = vector.broadcast %21 : vector<128x1xf32> to vector<128x32xf32>
    %30 = arith.subf %17, %29 : vector<128x32xf32>
    %cst_23 = arith.constant 9.99999974E-6 : f32
    %31 = vector.broadcast %cst_23 : f32 to vector<128x1xf32>
    %32 = arith.addf %28, %31 : vector<128x1xf32>
    %33 = math.rsqrt %32 : vector<128x1xf32>
    %34 = vector.broadcast %33 : vector<128x1xf32> to vector<128x32xf32>
    %35 = arith.mulf %30, %34 : vector<128x32xf32>
    %36 = vector.broadcast %0 : vector<1x32xf32> to vector<128x32xf32>
    %37 = arith.mulf %35, %36 : vector<128x32xf32>
    %38 = vector.broadcast %1 : vector<1x32xf32> to vector<128x32xf32>
    %39 = arith.addf %37, %38 : vector<128x32xf32>
    %cst_24 = arith.constant dense<0.000000e+00> : vector<128x64xf32>
    %40 = tpu.matmul %39, %12, %cst_24 {dimension_numbers = #tpu.dot_dimension_numbers<[1], [0], [0], [1], [0, 0, 1, 1], [], []>} : vector<128x32xf32>, vector<32x64xf32>, vector<128x64xf32> -> vector<128x64xf32>
    %41 = vector.shape_cast %40 : vector<128x64xf32> to vector<2x64x64xf32>
    %42 = vector.extract_strided_slice %41 {offsets = [0, 0, 0], sizes = [2, 64, 32], strides = [1, 1, 1]} : vector<2x64x64xf32> to vector<2x64x32xf32>
    %43 = vector.extract_strided_slice %41 {offsets = [0, 0, 32], sizes = [2, 64, 32], strides = [1, 1, 1]} : vector<2x64x64xf32> to vector<2x64x32xf32>
    %c0_25 = arith.constant 0 : index
    %c0_26 = arith.constant 0 : index
    %c0_27 = arith.constant 0 : index
    %44 = vector.load %arg2[%c0_25, %c0_26, %c0_27] : memref<2x8x32xf32, #tpu.memory_space<vmem>>, vector<2x8x32xf32>
    %45 = vector.shape_cast %44 : vector<2x8x32xf32> to vector<16x32xf32>
    %46 = vector.broadcast %7 : vector<1x32xf32> to vector<16x32xf32>
    %47 = arith.mulf %46, %45 : vector<16x32xf32>
    %48 = vector.broadcast %6 : vector<1x32xf32> to vector<16x32xf32>
    %49 = arith.addf %48, %47 : vector<16x32xf32>
    %cst_28 = arith.constant dense<0.000000e+00> : vector<16xf32>
    %50 = vector.multi_reduction <add>, %49, %cst_28 [1] : vector<16x32xf32> to vector<16xf32>
    %51 = vector.shape_cast %50 : vector<16xf32> to vector<16x1xf32>
    %cst_29 = arith.constant 3.200000e+01 : f32
    %52 = vector.broadcast %cst_29 : f32 to vector<16x1xf32>
    %53 = arith.divf %51, %52 : vector<16x1xf32>
    %54 = vector.broadcast %53 : vector<16x1xf32> to vector<16x32xf32>
    %55 = arith.subf %49, %54 : vector<16x32xf32>
    %56 = arith.mulf %55, %55 : vector<16x32xf32>
    %cst_30 = arith.constant dense<0.000000e+00> : vector<16xf32>
    %57 = vector.multi_reduction <add>, %56, %cst_30 [1] : vector<16x32xf32> to vector<16xf32>
    %58 = vector.shape_cast %57 : vector<16xf32> to vector<16x1xf32>
    %cst_31 = arith.constant 3.200000e+01 : f32
    %59 = vector.broadcast %cst_31 : f32 to vector<16x1xf32>
    %60 = arith.divf %58, %59 : vector<16x1xf32>
    %61 = vector.broadcast %53 : vector<16x1xf32> to vector<16x32xf32>
    %62 = arith.subf %49, %61 : vector<16x32xf32>
    %cst_32 = arith.constant 9.99999974E-6 : f32
    %63 = vector.broadcast %cst_32 : f32 to vector<16x1xf32>
    %64 = arith.addf %60, %63 : vector<16x1xf32>
    %65 = math.rsqrt %64 : vector<16x1xf32>
    %66 = vector.broadcast %65 : vector<16x1xf32> to vector<16x32xf32>
    %67 = arith.mulf %62, %66 : vector<16x32xf32>
    %68 = vector.broadcast %2 : vector<1x32xf32> to vector<16x32xf32>
    %69 = arith.mulf %67, %68 : vector<16x32xf32>
    %70 = vector.broadcast %3 : vector<1x32xf32> to vector<16x32xf32>
    %71 = arith.addf %69, %70 : vector<16x32xf32>
    %cst_33 = arith.constant dense<0.000000e+00> : vector<16x32xf32>
    %72 = tpu.matmul %71, %11, %cst_33 {dimension_numbers = #tpu.dot_dimension_numbers<[1], [0], [0], [1], [0, 0, 1, 1], [], []>} : vector<16x32xf32>, vector<32x32xf32>, vector<16x32xf32> -> vector<16x32xf32>
    %73 = vector.shape_cast %72 : vector<16x32xf32> to vector<2x8x32xf32>
    "tpu.trace_start"() <{level = 10 : i32, message = "bsd,bnd->bsn"}> : () -> ()
    %cst_34 = arith.constant dense<0.000000e+00> : vector<2x8x64xf32>
    %74 = tpu.matmul %73, %42, %cst_34 {dimension_numbers = #tpu.dot_dimension_numbers<[2], [2], [1], [1], [0, 0, 0, 1, 1, 1], [0], [0]>} : vector<2x8x32xf32>, vector<2x64x32xf32>, vector<2x8x64xf32> -> vector<2x8x64xf32>
    "tpu.trace_stop"() : () -> ()
    %cst_35 = arith.constant dense<0xFF800000> : vector<2x64xf32>
    %75 = vector.multi_reduction <maximumf>, %74, %cst_35 [1] : vector<2x8x64xf32> to vector<2x64xf32>
    %76 = vector.shape_cast %75 : vector<2x64xf32> to vector<2x1x64xf32>
    %77 = vector.broadcast %76 : vector<2x1x64xf32> to vector<2x8x64xf32>
    %78 = arith.subf %74, %77 : vector<2x8x64xf32>
    %79 = math.exp %78 : vector<2x8x64xf32>
    %cst_36 = arith.constant dense<0.000000e+00> : vector<2x64xf32>
    %80 = vector.multi_reduction <add>, %79, %cst_36 [1] : vector<2x8x64xf32> to vector<2x64xf32>
    %81 = vector.shape_cast %80 : vector<2x64xf32> to vector<2x1x64xf32>
    %82 = tpu.reciprocal %81 {approx = true} : vector<2x1x64xf32> -> vector<2x1x64xf32>
    %83 = vector.broadcast %82 : vector<2x1x64xf32> to vector<2x8x64xf32>
    %84 = arith.mulf %79, %83 : vector<2x8x64xf32>
    %cst_37 = arith.constant 9.99999993E-9 : f32
    %85 = vector.broadcast %cst_37 : f32 to vector<2x8x64xf32>
    %86 = arith.addf %84, %85 : vector<2x8x64xf32>
    %cst_38 = arith.constant dense<0.000000e+00> : vector<2x8xf32>
    %87 = vector.multi_reduction <add>, %86, %cst_38 [2] : vector<2x8x64xf32> to vector<2x8xf32>
    %88 = vector.shape_cast %87 : vector<2x8xf32> to vector<2x8x1xf32>
    %89 = tpu.reciprocal %88 {approx = true} : vector<2x8x1xf32> -> vector<2x8x1xf32>
    %90 = vector.broadcast %89 : vector<2x8x1xf32> to vector<2x8x64xf32>
    %91 = arith.mulf %86, %90 : vector<2x8x64xf32>
    "tpu.trace_start"() <{level = 10 : i32, message = "bsn,bnd->bsd"}> : () -> ()
    %cst_39 = arith.constant dense<0.000000e+00> : vector<2x8x32xf32>
    %92 = tpu.matmul %91, %43, %cst_39 {dimension_numbers = #tpu.dot_dimension_numbers<[2], [1], [1], [2], [0, 0, 0, 1, 1, 2], [0], [0]>} : vector<2x8x64xf32>, vector<2x64x32xf32>, vector<2x8x32xf32> -> vector<2x8x32xf32>
    "tpu.trace_stop"() : () -> ()
    %93 = vector.shape_cast %92 : vector<2x8x32xf32> to vector<16x32xf32>
    %94 = tpu.concatenate %93, %49 in 1 : vector<16x32xf32>, vector<16x32xf32> -> vector<16x64xf32>
    %cst_40 = arith.constant dense<0.000000e+00> : vector<16x128xf32>
    %95 = tpu.matmul %94, %15, %cst_40 {dimension_numbers = #tpu.dot_dimension_numbers<[1], [0], [0], [1], [0, 0, 1, 1], [], []>} : vector<16x64xf32>, vector<64x128xf32>, vector<16x128xf32> -> vector<16x128xf32>
    %96 = vector.broadcast %8 : vector<1x128xf32> to vector<16x128xf32>
    %97 = arith.addf %95, %96 : vector<16x128xf32>
    %98 = vector.extract_strided_slice %97 {offsets = [0, 0], sizes = [16, 32], strides = [1, 1]} : vector<16x128xf32> to vector<16x32xf32>
    %99 = arith.negf %98 : vector<16x32xf32>
    %100 = math.exp %99 : vector<16x32xf32>
    %cst_41 = arith.constant 1.000000e+00 : f32
    %101 = vector.broadcast %cst_41 : f32 to vector<16x32xf32>
    %102 = arith.addf %101, %100 : vector<16x32xf32>
    %103 = arith.divf %101, %102 : vector<16x32xf32>
    %104 = vector.extract_strided_slice %97 {offsets = [0, 32], sizes = [16, 32], strides = [1, 1]} : vector<16x128xf32> to vector<16x32xf32>
    %105 = arith.negf %104 : vector<16x32xf32>
    %106 = math.exp %105 : vector<16x32xf32>
    %cst_42 = arith.constant 1.000000e+00 : f32
    %107 = vector.broadcast %cst_42 : f32 to vector<16x32xf32>
    %108 = arith.addf %107, %106 : vector<16x32xf32>
    %109 = arith.divf %107, %108 : vector<16x32xf32>
    %110 = vector.extract_strided_slice %97 {offsets = [0, 64], sizes = [16, 32], strides = [1, 1]} : vector<16x128xf32> to vector<16x32xf32>
    %111 = vector.extract_strided_slice %97 {offsets = [0, 96], sizes = [16, 32], strides = [1, 1]} : vector<16x128xf32> to vector<16x32xf32>
    %112 = arith.mulf %103, %111 : vector<16x32xf32>
    %113 = arith.addf %110, %112 : vector<16x32xf32>
    %114 = math.tanh %113 : vector<16x32xf32>
    %cst_43 = arith.constant 1.000000e+00 : f32
    %115 = vector.broadcast %cst_43 : f32 to vector<16x32xf32>
    %116 = arith.subf %115, %109 : vector<16x32xf32>
    %117 = arith.mulf %116, %114 : vector<16x32xf32>
    %118 = arith.mulf %109, %49 : vector<16x32xf32>
    %119 = arith.addf %117, %118 : vector<16x32xf32>
    %cst_44 = arith.constant dense<0.000000e+00> : vector<16xf32>
    %120 = vector.multi_reduction <add>, %119, %cst_44 [1] : vector<16x32xf32> to vector<16xf32>
    %121 = vector.shape_cast %120 : vector<16xf32> to vector<16x1xf32>
    %cst_45 = arith.constant 3.200000e+01 : f32
    %122 = vector.broadcast %cst_45 : f32 to vector<16x1xf32>
    %123 = arith.divf %121, %122 : vector<16x1xf32>
    %124 = vector.broadcast %123 : vector<16x1xf32> to vector<16x32xf32>
    %125 = arith.subf %119, %124 : vector<16x32xf32>
    %126 = arith.mulf %125, %125 : vector<16x32xf32>
    %cst_46 = arith.constant dense<0.000000e+00> : vector<16xf32>
    %127 = vector.multi_reduction <add>, %126, %cst_46 [1] : vector<16x32xf32> to vector<16xf32>
    %128 = vector.shape_cast %127 : vector<16xf32> to vector<16x1xf32>
    %cst_47 = arith.constant 3.200000e+01 : f32
    %129 = vector.broadcast %cst_47 : f32 to vector<16x1xf32>
    %130 = arith.divf %128, %129 : vector<16x1xf32>
    %131 = vector.broadcast %123 : vector<16x1xf32> to vector<16x32xf32>
    %132 = arith.subf %119, %131 : vector<16x32xf32>
    %cst_48 = arith.constant 9.99999974E-6 : f32
    %133 = vector.broadcast %cst_48 : f32 to vector<16x1xf32>
    %134 = arith.addf %130, %133 : vector<16x1xf32>
    %135 = math.rsqrt %134 : vector<16x1xf32>
    %136 = vector.broadcast %135 : vector<16x1xf32> to vector<16x32xf32>
    %137 = arith.mulf %132, %136 : vector<16x32xf32>
    %138 = vector.broadcast %4 : vector<1x32xf32> to vector<16x32xf32>
    %139 = arith.mulf %137, %138 : vector<16x32xf32>
    %140 = vector.broadcast %5 : vector<1x32xf32> to vector<16x32xf32>
    %141 = arith.addf %139, %140 : vector<16x32xf32>
    %cst_49 = arith.constant dense<0.000000e+00> : vector<16x64xf32>
    %142 = tpu.matmul %141, %13, %cst_49 {dimension_numbers = #tpu.dot_dimension_numbers<[1], [0], [0], [1], [0, 0, 1, 1], [], []>} : vector<16x32xf32>, vector<32x64xf32>, vector<16x64xf32> -> vector<16x64xf32>
    %143 = vector.broadcast %9 : vector<1x64xf32> to vector<16x64xf32>
    %144 = arith.addf %142, %143 : vector<16x64xf32>
    %cst_50 = arith.constant 0.000000e+00 : f32
    %145 = vector.broadcast %cst_50 : f32 to vector<16x64xf32>
    %146 = arith.maximumf %144, %145 : vector<16x64xf32>
    %cst_51 = arith.constant dense<0.000000e+00> : vector<16x32xf32>
    %147 = tpu.matmul %146, %14, %cst_51 {dimension_numbers = #tpu.dot_dimension_numbers<[1], [0], [0], [1], [0, 0, 1, 1], [], []>} : vector<16x64xf32>, vector<64x32xf32>, vector<16x32xf32> -> vector<16x32xf32>
    %148 = arith.addf %119, %147 : vector<16x32xf32>
    %149 = vector.broadcast %10 : vector<1x32xf32> to vector<16x32xf32>
    %150 = arith.addf %148, %149 : vector<16x32xf32>
    %cst_52 = arith.constant dense<0.000000e+00> : vector<16xf32>
    %151 = vector.multi_reduction <add>, %150, %cst_52 [1] : vector<16x32xf32> to vector<16xf32>
    %152 = vector.shape_cast %151 : vector<16xf32> to vector<16x1xf32>
    %cst_53 = arith.constant 3.200000e+01 : f32
    %153 = vector.broadcast %cst_53 : f32 to vector<16x1xf32>
    %154 = arith.divf %152, %153 : vector<16x1xf32>
    %155 = vector.broadcast %154 : vector<16x1xf32> to vector<16x32xf32>
    %156 = arith.subf %150, %155 : vector<16x32xf32>
    %157 = arith.mulf %156, %156 : vector<16x32xf32>
    %cst_54 = arith.constant dense<0.000000e+00> : vector<16xf32>
    %158 = vector.multi_reduction <add>, %157, %cst_54 [1] : vector<16x32xf32> to vector<16xf32>
    %159 = vector.shape_cast %158 : vector<16xf32> to vector<16x1xf32>
    %cst_55 = arith.constant 3.200000e+01 : f32
    %160 = vector.broadcast %cst_55 : f32 to vector<16x1xf32>
    %161 = arith.divf %159, %160 : vector<16x1xf32>
    %162 = vector.broadcast %154 : vector<16x1xf32> to vector<16x32xf32>
    %163 = arith.subf %150, %162 : vector<16x32xf32>
    %cst_56 = arith.constant 9.99999974E-6 : f32
    %164 = vector.broadcast %cst_56 : f32 to vector<16x1xf32>
    %165 = arith.addf %161, %164 : vector<16x1xf32>
    %166 = math.rsqrt %165 : vector<16x1xf32>
    %167 = vector.broadcast %166 : vector<16x1xf32> to vector<16x32xf32>
    %168 = arith.mulf %163, %167 : vector<16x32xf32>
    %169 = vector.broadcast %2 : vector<1x32xf32> to vector<16x32xf32>
    %170 = arith.mulf %168, %169 : vector<16x32xf32>
    %171 = vector.broadcast %3 : vector<1x32xf32> to vector<16x32xf32>
    %172 = arith.addf %170, %171 : vector<16x32xf32>
    %cst_57 = arith.constant dense<0.000000e+00> : vector<16x32xf32>
    %173 = tpu.matmul %172, %11, %cst_57 {dimension_numbers = #tpu.dot_dimension_numbers<[1], [0], [0], [1], [0, 0, 1, 1], [], []>} : vector<16x32xf32>, vector<32x32xf32>, vector<16x32xf32> -> vector<16x32xf32>
    %174 = vector.shape_cast %173 : vector<16x32xf32> to vector<2x8x32xf32>
    "tpu.trace_start"() <{level = 10 : i32, message = "bsd,bnd->bsn"}> : () -> ()
    %cst_58 = arith.constant dense<0.000000e+00> : vector<2x8x64xf32>
    %175 = tpu.matmul %174, %42, %cst_58 {dimension_numbers = #tpu.dot_dimension_numbers<[2], [2], [1], [1], [0, 0, 0, 1, 1, 1], [0], [0]>} : vector<2x8x32xf32>, vector<2x64x32xf32>, vector<2x8x64xf32> -> vector<2x8x64xf32>
    "tpu.trace_stop"() : () -> ()
    %cst_59 = arith.constant dense<0xFF800000> : vector<2x64xf32>
    %176 = vector.multi_reduction <maximumf>, %175, %cst_59 [1] : vector<2x8x64xf32> to vector<2x64xf32>
    %177 = vector.shape_cast %176 : vector<2x64xf32> to vector<2x1x64xf32>
    %178 = vector.broadcast %177 : vector<2x1x64xf32> to vector<2x8x64xf32>
    %179 = arith.subf %175, %178 : vector<2x8x64xf32>
    %180 = math.exp %179 : vector<2x8x64xf32>
    %cst_60 = arith.constant dense<0.000000e+00> : vector<2x64xf32>
    %181 = vector.multi_reduction <add>, %180, %cst_60 [1] : vector<2x8x64xf32> to vector<2x64xf32>
    %182 = vector.shape_cast %181 : vector<2x64xf32> to vector<2x1x64xf32>
    %183 = tpu.reciprocal %182 {approx = true} : vector<2x1x64xf32> -> vector<2x1x64xf32>
    %184 = vector.broadcast %183 : vector<2x1x64xf32> to vector<2x8x64xf32>
    %185 = arith.mulf %180, %184 : vector<2x8x64xf32>
    %cst_61 = arith.constant 9.99999993E-9 : f32
    %186 = vector.broadcast %cst_61 : f32 to vector<2x8x64xf32>
    %187 = arith.addf %185, %186 : vector<2x8x64xf32>
    %cst_62 = arith.constant dense<0.000000e+00> : vector<2x8xf32>
    %188 = vector.multi_reduction <add>, %187, %cst_62 [2] : vector<2x8x64xf32> to vector<2x8xf32>
    %189 = vector.shape_cast %188 : vector<2x8xf32> to vector<2x8x1xf32>
    %190 = tpu.reciprocal %189 {approx = true} : vector<2x8x1xf32> -> vector<2x8x1xf32>
    %191 = vector.broadcast %190 : vector<2x8x1xf32> to vector<2x8x64xf32>
    %192 = arith.mulf %187, %191 : vector<2x8x64xf32>
    "tpu.trace_start"() <{level = 10 : i32, message = "bsn,bnd->bsd"}> : () -> ()
    %cst_63 = arith.constant dense<0.000000e+00> : vector<2x8x32xf32>
    %193 = tpu.matmul %192, %43, %cst_63 {dimension_numbers = #tpu.dot_dimension_numbers<[2], [1], [1], [2], [0, 0, 0, 1, 1, 2], [0], [0]>} : vector<2x8x64xf32>, vector<2x64x32xf32>, vector<2x8x32xf32> -> vector<2x8x32xf32>
    "tpu.trace_stop"() : () -> ()
    %194 = vector.shape_cast %193 : vector<2x8x32xf32> to vector<16x32xf32>
    %195 = tpu.concatenate %194, %150 in 1 : vector<16x32xf32>, vector<16x32xf32> -> vector<16x64xf32>
    %cst_64 = arith.constant dense<0.000000e+00> : vector<16x128xf32>
    %196 = tpu.matmul %195, %15, %cst_64 {dimension_numbers = #tpu.dot_dimension_numbers<[1], [0], [0], [1], [0, 0, 1, 1], [], []>} : vector<16x64xf32>, vector<64x128xf32>, vector<16x128xf32> -> vector<16x128xf32>
    %197 = vector.broadcast %8 : vector<1x128xf32> to vector<16x128xf32>
    %198 = arith.addf %196, %197 : vector<16x128xf32>
    %199 = vector.extract_strided_slice %198 {offsets = [0, 0], sizes = [16, 32], strides = [1, 1]} : vector<16x128xf32> to vector<16x32xf32>
    %200 = arith.negf %199 : vector<16x32xf32>
    %201 = math.exp %200 : vector<16x32xf32>
    %cst_65 = arith.constant 1.000000e+00 : f32
    %202 = vector.broadcast %cst_65 : f32 to vector<16x32xf32>
    %203 = arith.addf %202, %201 : vector<16x32xf32>
    %204 = arith.divf %202, %203 : vector<16x32xf32>
    %205 = vector.extract_strided_slice %198 {offsets = [0, 32], sizes = [16, 32], strides = [1, 1]} : vector<16x128xf32> to vector<16x32xf32>
    %206 = arith.negf %205 : vector<16x32xf32>
    %207 = math.exp %206 : vector<16x32xf32>
    %cst_66 = arith.constant 1.000000e+00 : f32
    %208 = vector.broadcast %cst_66 : f32 to vector<16x32xf32>
    %209 = arith.addf %208, %207 : vector<16x32xf32>
    %210 = arith.divf %208, %209 : vector<16x32xf32>
    %211 = vector.extract_strided_slice %198 {offsets = [0, 64], sizes = [16, 32], strides = [1, 1]} : vector<16x128xf32> to vector<16x32xf32>
    %212 = vector.extract_strided_slice %198 {offsets = [0, 96], sizes = [16, 32], strides = [1, 1]} : vector<16x128xf32> to vector<16x32xf32>
    %213 = arith.mulf %204, %212 : vector<16x32xf32>
    %214 = arith.addf %211, %213 : vector<16x32xf32>
    %215 = math.tanh %214 : vector<16x32xf32>
    %cst_67 = arith.constant 1.000000e+00 : f32
    %216 = vector.broadcast %cst_67 : f32 to vector<16x32xf32>
    %217 = arith.subf %216, %210 : vector<16x32xf32>
    %218 = arith.mulf %217, %215 : vector<16x32xf32>
    %219 = arith.mulf %210, %150 : vector<16x32xf32>
    %220 = arith.addf %218, %219 : vector<16x32xf32>
    %cst_68 = arith.constant dense<0.000000e+00> : vector<16xf32>
    %221 = vector.multi_reduction <add>, %220, %cst_68 [1] : vector<16x32xf32> to vector<16xf32>
    %222 = vector.shape_cast %221 : vector<16xf32> to vector<16x1xf32>
    %cst_69 = arith.constant 3.200000e+01 : f32
    %223 = vector.broadcast %cst_69 : f32 to vector<16x1xf32>
    %224 = arith.divf %222, %223 : vector<16x1xf32>
    %225 = vector.broadcast %224 : vector<16x1xf32> to vector<16x32xf32>
    %226 = arith.subf %220, %225 : vector<16x32xf32>
    %227 = arith.mulf %226, %226 : vector<16x32xf32>
    %cst_70 = arith.constant dense<0.000000e+00> : vector<16xf32>
    %228 = vector.multi_reduction <add>, %227, %cst_70 [1] : vector<16x32xf32> to vector<16xf32>
    %229 = vector.shape_cast %228 : vector<16xf32> to vector<16x1xf32>
    %cst_71 = arith.constant 3.200000e+01 : f32
    %230 = vector.broadcast %cst_71 : f32 to vector<16x1xf32>
    %231 = arith.divf %229, %230 : vector<16x1xf32>
    %232 = vector.broadcast %224 : vector<16x1xf32> to vector<16x32xf32>
    %233 = arith.subf %220, %232 : vector<16x32xf32>
    %cst_72 = arith.constant 9.99999974E-6 : f32
    %234 = vector.broadcast %cst_72 : f32 to vector<16x1xf32>
    %235 = arith.addf %231, %234 : vector<16x1xf32>
    %236 = math.rsqrt %235 : vector<16x1xf32>
    %237 = vector.broadcast %236 : vector<16x1xf32> to vector<16x32xf32>
    %238 = arith.mulf %233, %237 : vector<16x32xf32>
    %239 = vector.broadcast %4 : vector<1x32xf32> to vector<16x32xf32>
    %240 = arith.mulf %238, %239 : vector<16x32xf32>
    %241 = vector.broadcast %5 : vector<1x32xf32> to vector<16x32xf32>
    %242 = arith.addf %240, %241 : vector<16x32xf32>
    %cst_73 = arith.constant dense<0.000000e+00> : vector<16x64xf32>
    %243 = tpu.matmul %242, %13, %cst_73 {dimension_numbers = #tpu.dot_dimension_numbers<[1], [0], [0], [1], [0, 0, 1, 1], [], []>} : vector<16x32xf32>, vector<32x64xf32>, vector<16x64xf32> -> vector<16x64xf32>
    %244 = vector.broadcast %9 : vector<1x64xf32> to vector<16x64xf32>
    %245 = arith.addf %243, %244 : vector<16x64xf32>
    %cst_74 = arith.constant 0.000000e+00 : f32
    %246 = vector.broadcast %cst_74 : f32 to vector<16x64xf32>
    %247 = arith.maximumf %245, %246 : vector<16x64xf32>
    %cst_75 = arith.constant dense<0.000000e+00> : vector<16x32xf32>
    %248 = tpu.matmul %247, %14, %cst_75 {dimension_numbers = #tpu.dot_dimension_numbers<[1], [0], [0], [1], [0, 0, 1, 1], [], []>} : vector<16x64xf32>, vector<64x32xf32>, vector<16x32xf32> -> vector<16x32xf32>
    %249 = arith.addf %220, %248 : vector<16x32xf32>
    %250 = vector.broadcast %10 : vector<1x32xf32> to vector<16x32xf32>
    %251 = arith.addf %249, %250 : vector<16x32xf32>
    %cst_76 = arith.constant dense<0.000000e+00> : vector<16xf32>
    %252 = vector.multi_reduction <add>, %251, %cst_76 [1] : vector<16x32xf32> to vector<16xf32>
    %253 = vector.shape_cast %252 : vector<16xf32> to vector<16x1xf32>
    %cst_77 = arith.constant 3.200000e+01 : f32
    %254 = vector.broadcast %cst_77 : f32 to vector<16x1xf32>
    %255 = arith.divf %253, %254 : vector<16x1xf32>
    %256 = vector.broadcast %255 : vector<16x1xf32> to vector<16x32xf32>
    %257 = arith.subf %251, %256 : vector<16x32xf32>
    %258 = arith.mulf %257, %257 : vector<16x32xf32>
    %cst_78 = arith.constant dense<0.000000e+00> : vector<16xf32>
    %259 = vector.multi_reduction <add>, %258, %cst_78 [1] : vector<16x32xf32> to vector<16xf32>
    %260 = vector.shape_cast %259 : vector<16xf32> to vector<16x1xf32>
    %cst_79 = arith.constant 3.200000e+01 : f32
    %261 = vector.broadcast %cst_79 : f32 to vector<16x1xf32>
    %262 = arith.divf %260, %261 : vector<16x1xf32>
    %263 = vector.broadcast %255 : vector<16x1xf32> to vector<16x32xf32>
    %264 = arith.subf %251, %263 : vector<16x32xf32>
    %cst_80 = arith.constant 9.99999974E-6 : f32
    %265 = vector.broadcast %cst_80 : f32 to vector<16x1xf32>
    %266 = arith.addf %262, %265 : vector<16x1xf32>
    %267 = math.rsqrt %266 : vector<16x1xf32>
    %268 = vector.broadcast %267 : vector<16x1xf32> to vector<16x32xf32>
    %269 = arith.mulf %264, %268 : vector<16x32xf32>
    %270 = vector.broadcast %2 : vector<1x32xf32> to vector<16x32xf32>
    %271 = arith.mulf %269, %270 : vector<16x32xf32>
    %272 = vector.broadcast %3 : vector<1x32xf32> to vector<16x32xf32>
    %273 = arith.addf %271, %272 : vector<16x32xf32>
    %cst_81 = arith.constant dense<0.000000e+00> : vector<16x32xf32>
    %274 = tpu.matmul %273, %11, %cst_81 {dimension_numbers = #tpu.dot_dimension_numbers<[1], [0], [0], [1], [0, 0, 1, 1], [], []>} : vector<16x32xf32>, vector<32x32xf32>, vector<16x32xf32> -> vector<16x32xf32>
    %275 = vector.shape_cast %274 : vector<16x32xf32> to vector<2x8x32xf32>
    "tpu.trace_start"() <{level = 10 : i32, message = "bsd,bnd->bsn"}> : () -> ()
    %cst_82 = arith.constant dense<0.000000e+00> : vector<2x8x64xf32>
    %276 = tpu.matmul %275, %42, %cst_82 {dimension_numbers = #tpu.dot_dimension_numbers<[2], [2], [1], [1], [0, 0, 0, 1, 1, 1], [0], [0]>} : vector<2x8x32xf32>, vector<2x64x32xf32>, vector<2x8x64xf32> -> vector<2x8x64xf32>
    "tpu.trace_stop"() : () -> ()
    %cst_83 = arith.constant dense<0xFF800000> : vector<2x64xf32>
    %277 = vector.multi_reduction <maximumf>, %276, %cst_83 [1] : vector<2x8x64xf32> to vector<2x64xf32>
    %278 = vector.shape_cast %277 : vector<2x64xf32> to vector<2x1x64xf32>
    %279 = vector.broadcast %278 : vector<2x1x64xf32> to vector<2x8x64xf32>
    %280 = arith.subf %276, %279 : vector<2x8x64xf32>
    %281 = math.exp %280 : vector<2x8x64xf32>
    %cst_84 = arith.constant dense<0.000000e+00> : vector<2x64xf32>
    %282 = vector.multi_reduction <add>, %281, %cst_84 [1] : vector<2x8x64xf32> to vector<2x64xf32>
    %283 = vector.shape_cast %282 : vector<2x64xf32> to vector<2x1x64xf32>
    %284 = tpu.reciprocal %283 {approx = true} : vector<2x1x64xf32> -> vector<2x1x64xf32>
    %285 = vector.broadcast %284 : vector<2x1x64xf32> to vector<2x8x64xf32>
    %286 = arith.mulf %281, %285 : vector<2x8x64xf32>
    %cst_85 = arith.constant 9.99999993E-9 : f32
    %287 = vector.broadcast %cst_85 : f32 to vector<2x8x64xf32>
    %288 = arith.addf %286, %287 : vector<2x8x64xf32>
    %cst_86 = arith.constant dense<0.000000e+00> : vector<2x8xf32>
    %289 = vector.multi_reduction <add>, %288, %cst_86 [2] : vector<2x8x64xf32> to vector<2x8xf32>
    %290 = vector.shape_cast %289 : vector<2x8xf32> to vector<2x8x1xf32>
    %291 = tpu.reciprocal %290 {approx = true} : vector<2x8x1xf32> -> vector<2x8x1xf32>
    %292 = vector.broadcast %291 : vector<2x8x1xf32> to vector<2x8x64xf32>
    %293 = arith.mulf %288, %292 : vector<2x8x64xf32>
    "tpu.trace_start"() <{level = 10 : i32, message = "bsn,bnd->bsd"}> : () -> ()
    %cst_87 = arith.constant dense<0.000000e+00> : vector<2x8x32xf32>
    %294 = tpu.matmul %293, %43, %cst_87 {dimension_numbers = #tpu.dot_dimension_numbers<[2], [1], [1], [2], [0, 0, 0, 1, 1, 2], [0], [0]>} : vector<2x8x64xf32>, vector<2x64x32xf32>, vector<2x8x32xf32> -> vector<2x8x32xf32>
    "tpu.trace_stop"() : () -> ()
    %295 = vector.shape_cast %294 : vector<2x8x32xf32> to vector<16x32xf32>
    %296 = tpu.concatenate %295, %251 in 1 : vector<16x32xf32>, vector<16x32xf32> -> vector<16x64xf32>
    %cst_88 = arith.constant dense<0.000000e+00> : vector<16x128xf32>
    %297 = tpu.matmul %296, %15, %cst_88 {dimension_numbers = #tpu.dot_dimension_numbers<[1], [0], [0], [1], [0, 0, 1, 1], [], []>} : vector<16x64xf32>, vector<64x128xf32>, vector<16x128xf32> -> vector<16x128xf32>
    %298 = vector.broadcast %8 : vector<1x128xf32> to vector<16x128xf32>
    %299 = arith.addf %297, %298 : vector<16x128xf32>
    %300 = vector.extract_strided_slice %299 {offsets = [0, 0], sizes = [16, 32], strides = [1, 1]} : vector<16x128xf32> to vector<16x32xf32>
    %301 = arith.negf %300 : vector<16x32xf32>
    %302 = math.exp %301 : vector<16x32xf32>
    %cst_89 = arith.constant 1.000000e+00 : f32
    %303 = vector.broadcast %cst_89 : f32 to vector<16x32xf32>
    %304 = arith.addf %303, %302 : vector<16x32xf32>
    %305 = arith.divf %303, %304 : vector<16x32xf32>
    %306 = vector.extract_strided_slice %299 {offsets = [0, 32], sizes = [16, 32], strides = [1, 1]} : vector<16x128xf32> to vector<16x32xf32>
    %307 = arith.negf %306 : vector<16x32xf32>
    %308 = math.exp %307 : vector<16x32xf32>
    %cst_90 = arith.constant 1.000000e+00 : f32
    %309 = vector.broadcast %cst_90 : f32 to vector<16x32xf32>
    %310 = arith.addf %309, %308 : vector<16x32xf32>
    %311 = arith.divf %309, %310 : vector<16x32xf32>
    %312 = vector.extract_strided_slice %299 {offsets = [0, 64], sizes = [16, 32], strides = [1, 1]} : vector<16x128xf32> to vector<16x32xf32>
    %313 = vector.extract_strided_slice %299 {offsets = [0, 96], sizes = [16, 32], strides = [1, 1]} : vector<16x128xf32> to vector<16x32xf32>
    %314 = arith.mulf %305, %313 : vector<16x32xf32>
    %315 = arith.addf %312, %314 : vector<16x32xf32>
    %316 = math.tanh %315 : vector<16x32xf32>
    %cst_91 = arith.constant 1.000000e+00 : f32
    %317 = vector.broadcast %cst_91 : f32 to vector<16x32xf32>
    %318 = arith.subf %317, %311 : vector<16x32xf32>
    %319 = arith.mulf %318, %316 : vector<16x32xf32>
    %320 = arith.mulf %311, %251 : vector<16x32xf32>
    %321 = arith.addf %319, %320 : vector<16x32xf32>
    %cst_92 = arith.constant dense<0.000000e+00> : vector<16xf32>
    %322 = vector.multi_reduction <add>, %321, %cst_92 [1] : vector<16x32xf32> to vector<16xf32>
    %323 = vector.shape_cast %322 : vector<16xf32> to vector<16x1xf32>
    %cst_93 = arith.constant 3.200000e+01 : f32
    %324 = vector.broadcast %cst_93 : f32 to vector<16x1xf32>
    %325 = arith.divf %323, %324 : vector<16x1xf32>
    %326 = vector.broadcast %325 : vector<16x1xf32> to vector<16x32xf32>
    %327 = arith.subf %321, %326 : vector<16x32xf32>
    %328 = arith.mulf %327, %327 : vector<16x32xf32>
    %cst_94 = arith.constant dense<0.000000e+00> : vector<16xf32>
    %329 = vector.multi_reduction <add>, %328, %cst_94 [1] : vector<16x32xf32> to vector<16xf32>
    %330 = vector.shape_cast %329 : vector<16xf32> to vector<16x1xf32>
    %cst_95 = arith.constant 3.200000e+01 : f32
    %331 = vector.broadcast %cst_95 : f32 to vector<16x1xf32>
    %332 = arith.divf %330, %331 : vector<16x1xf32>
    %333 = vector.broadcast %325 : vector<16x1xf32> to vector<16x32xf32>
    %334 = arith.subf %321, %333 : vector<16x32xf32>
    %cst_96 = arith.constant 9.99999974E-6 : f32
    %335 = vector.broadcast %cst_96 : f32 to vector<16x1xf32>
    %336 = arith.addf %332, %335 : vector<16x1xf32>
    %337 = math.rsqrt %336 : vector<16x1xf32>
    %338 = vector.broadcast %337 : vector<16x1xf32> to vector<16x32xf32>
    %339 = arith.mulf %334, %338 : vector<16x32xf32>
    %340 = vector.broadcast %4 : vector<1x32xf32> to vector<16x32xf32>
    %341 = arith.mulf %339, %340 : vector<16x32xf32>
    %342 = vector.broadcast %5 : vector<1x32xf32> to vector<16x32xf32>
    %343 = arith.addf %341, %342 : vector<16x32xf32>
    %cst_97 = arith.constant dense<0.000000e+00> : vector<16x64xf32>
    %344 = tpu.matmul %343, %13, %cst_97 {dimension_numbers = #tpu.dot_dimension_numbers<[1], [0], [0], [1], [0, 0, 1, 1], [], []>} : vector<16x32xf32>, vector<32x64xf32>, vector<16x64xf32> -> vector<16x64xf32>
    %345 = vector.broadcast %9 : vector<1x64xf32> to vector<16x64xf32>
    %346 = arith.addf %344, %345 : vector<16x64xf32>
    %cst_98 = arith.constant 0.000000e+00 : f32
    %347 = vector.broadcast %cst_98 : f32 to vector<16x64xf32>
    %348 = arith.maximumf %346, %347 : vector<16x64xf32>
    %cst_99 = arith.constant dense<0.000000e+00> : vector<16x32xf32>
    %349 = tpu.matmul %348, %14, %cst_99 {dimension_numbers = #tpu.dot_dimension_numbers<[1], [0], [0], [1], [0, 0, 1, 1], [], []>} : vector<16x64xf32>, vector<64x32xf32>, vector<16x32xf32> -> vector<16x32xf32>
    %350 = arith.addf %321, %349 : vector<16x32xf32>
    %351 = vector.broadcast %10 : vector<1x32xf32> to vector<16x32xf32>
    %352 = arith.addf %350, %351 : vector<16x32xf32>
    %353 = vector.shape_cast %352 : vector<16x32xf32> to vector<2x8x32xf32>
    %c0_100 = arith.constant 0 : index
    %c0_101 = arith.constant 0 : index
    %c0_102 = arith.constant 0 : index
    %354 = vector.load %arg5[%c0_100, %c0_101, %c0_102] : memref<2x8x32xf32, #tpu.memory_space<vmem>>, vector<2x8x32xf32>
    tpu.vector_store %arg5[%c0_100, %c0_101, %c0_102], %353 {strides = array<i32>} : memref<2x8x32xf32, #tpu.memory_space<vmem>>, vector<2x8x32xf32>,
    return
  }
  func.func @transform_0(%arg0: i32) -> (i32, i32, i32) {
    %c0_i32 = arith.constant 0 : i32
    %c0_i32_0 = arith.constant 0 : i32
    %c0_i32_1 = arith.constant 0 : i32
    return %arg0, %c0_i32, %c0_i32_0 : i32, i32, i32
  }
  func.func @transform_1(%arg0: i32) -> (i32, i32, i32) {
    %c0_i32 = arith.constant 0 : i32
    %c0_i32_0 = arith.constant 0 : i32
    %c0_i32_1 = arith.constant 0 : i32
    return %arg0, %c0_i32, %c0_i32_0 : i32, i32, i32
  }
  func.func @transform_2(%arg0: i32) -> (i32, i32) {
    %c0_i32 = arith.constant 0 : i32
    %c0_i32_0 = arith.constant 0 : i32
    %c0_i32_1 = arith.constant 0 : i32
    return %c0_i32, %c0_i32_0 : i32, i32
  }
  func.func @transform_3(%arg0: i32) -> (i32, i32) {
    %c0_i32 = arith.constant 0 : i32
    %c0_i32_0 = arith.constant 0 : i32
    %c0_i32_1 = arith.constant 0 : i32
    return %c0_i32, %c0_i32_0 : i32, i32
  }
  func.func @transform_4(%arg0: i32) -> (i32, i32, i32) {
    %c0_i32 = arith.constant 0 : i32
    %c0_i32_0 = arith.constant 0 : i32
    %c0_i32_1 = arith.constant 0 : i32
    return %arg0, %c0_i32, %c0_i32_0 : i32, i32, i32
  }
}

</mosaic_0001>

<llo_original>
// kernel: tpu_custom_call.1
$region0: #{tpu_custom_call.1}
  #allocation0 [shape = 'u32[]', space=smem, size = 0x4, offset = 0x4, fixed_abs, tag = 'smem constant byte address 0x4 - core index']
  #allocation1 [shape = 'u32[144,128]{1,0:T(1,128)}', space=vmem, size = 0x12000, scoped, tag = 'internal scratch']
  %s0 = inlined_call_operand.vmem [shape: f32[2,64,32], index: 0, kind: input, shape index: {}]
  %s1 = inlined_call_operand.vmem [shape: f32[2,8,32], index: 1, kind: input, shape index: {}]
  %s2 = inlined_call_operand.vmem [shape: f32[16,128], index: 2, kind: input, shape index: {}]
  %s3 = inlined_call_operand.hbm [shape: f32[224,128], index: 3, kind: input, shape index: {}]
  %s4 = inlined_call_operand.hbm [shape: f32[2,8,32], index: 4, kind: output, shape index: {}]
  %s5 = sld [smem:[#allocation0]]
  $region30: #{tpu_custom_call.1} parent=0
    _
  %s7 = ssub.s32 1, %s5
  %s8 = scalar_select 0, %s7, %s5
  $region1: #{tpu_custom_call.1} parent=0
    #allocation2 [shape = 'u8[114688]{0}', space=vmem, size = 0x1c000, scoped, tag = 'input window, operand 3, single buffered']
    #allocation3 [shape = 's32[1]{0}', space=sflag, size = 0x4, scoped, tag = 'scoped memory for tpu_custom_call.1']
    #allocation4 [shape = 's32[1]{0}', space=sflag, size = 0x4, scoped, tag = 'scoped memory for tpu_custom_call.1']
    #allocation5 [shape = 'u8[8192]{0}', space=vmem, size = 0x2000, scoped, tag = 'output window, operand 0, single buffered']
    %9 = vsyncpa [#allocation3], 0
    %10 = vsyncpa [#allocation4], 0
    // Predicated region
    $region2: #{tpu_custom_call.1} parent=1 // pred_check
      _
    $region3: #{tpu_custom_call.1} parent=1 // pred_check_branch
      %12 = sbr.rel (0) target = $region5
    $region4: #{tpu_custom_call.1} parent=1 // pred_region
      _
    $region5: #{tpu_custom_call.1} parent=1 // pred_fallthru
      _
    // Predicated region
    $region6: #{tpu_custom_call.1} parent=1 // pred_check
      _
    $region7: #{tpu_custom_call.1} parent=1 // pred_check_branch
      %14 = sbr.rel (0) target = $region9
    $region8: #{tpu_custom_call.1} parent=1 // pred_region
      _
    $region9: #{tpu_custom_call.1} parent=1 // pred_fallthru
      _
    // Predicated region
    $region10: #{tpu_custom_call.1} parent=1 // pred_check
      _
    $region11: #{tpu_custom_call.1} parent=1 // pred_check_branch
      %16 = sbr.rel (0) target = $region13
    $region12: #{tpu_custom_call.1} parent=1 // pred_region
      _
    $region13: #{tpu_custom_call.1} parent=1 // pred_fallthru
      _
    // Predicated region
    $region14: #{tpu_custom_call.1} parent=1 // pred_check
      _
    $region15: #{tpu_custom_call.1} parent=1 // pred_check_branch
      %18 = sbr.rel (0) target = $region17
    $region16: #{tpu_custom_call.1} parent=1 // pred_region
      %s20 = ssub.s32 3584, 3584
      %21 = vsyncadd [#allocation3], %s20
      %s22 = sshll.u32 [#allocation2], 4
      %s23 = int_to_ptr.vmem [resolvable:$true] %s22
      %28 = dma.hbm_to_vmem [thread:$0]  %s3, 3584, %s23, [#allocation3], 128, 128, 8
    $region17: #{tpu_custom_call.1} parent=1 // pred_fallthru
      _
    // Predicated region
    $region18: #{tpu_custom_call.1} parent=1 // pred_check
      _
    $region19: #{tpu_custom_call.1} parent=1 // pred_check_branch
      %30 = sbr.rel (0) target = $region21
    $region20: #{tpu_custom_call.1} parent=1 // pred_region
      %31 = dma.done [#allocation3], 3584
    $region21: #{tpu_custom_call.1} parent=1 // pred_fallthru
      _
    %v32 = vld [vmem:[%s2] sm:$0x1]
    %v33 = vld [vmem:[%s2 + $0x1] sm:$0x1]
    %v34 = vld [vmem:[%s2 + $0x2] sm:$0x1]
    %v35 = vld [vmem:[%s2 + $0x3] sm:$0x1]
    %v36 = vld [vmem:[%s2 + $0x4] sm:$0x1]
    %v37 = vld [vmem:[%s2 + $0x5] sm:$0x1]
    %v38 = vld [vmem:[%s2 + $0x6] sm:$0x1]
    %v39 = vld [vmem:[%s2 + $0x7] sm:$0x1]
    %v40 = vld [vmem:[%s2 + $0x8] sm:$0x1]
    %v41 = vld [vmem:[%s2 + $0x9] sm:$0x1]
    %v42 = vld [vmem:[%s2 + $0xa] sm:$0x1]
    %v43 = vld [vmem:[#allocation2] sm:$0xff]
    %v44 = vld [vmem:[#allocation2 + $0x8] sm:$0xff]
    %v45 = vld [vmem:[#allocation2 + $0x10] sm:$0xff]
    %v46 = vld [vmem:[#allocation2 + $0x18] sm:$0xff]
    %v47 = vld [vmem:[#allocation2 + $0x20] sm:$0xff]
    %v48 = vld [vmem:[#allocation2 + $0x28] sm:$0xff]
    %v49 = vld [vmem:[#allocation2 + $0x30] sm:$0xff]
    %v50 = vld [vmem:[#allocation2 + $0x38] sm:$0xff]
    %v51 = vld [vmem:[#allocation2 + $0x40] sm:$0xff]
    %v52 = vld [vmem:[#allocation2 + $0x48] sm:$0xff]
    %v53 = vld [vmem:[#allocation2 + $0x50] sm:$0xff]
    %v54 = vld [vmem:[#allocation2 + $0x58] sm:$0xff]
    %v55 = vld [vmem:[#allocation2 + $0x60] sm:$0xff]
    %v56 = vld [vmem:[#allocation2 + $0x68] sm:$0xff]
    %v57 = vld [vmem:[#allocation2 + $0x70] sm:$0xff]
    %v58 = vld [vmem:[#allocation2 + $0x78] sm:$0xff]
    %v59 = vld [vmem:[#allocation2 + $0x80] sm:$0xff]
    %v60 = vld [vmem:[#allocation2 + $0x88] sm:$0xff]
    %v61 = vld [vmem:[#allocation2 + $0x90] sm:$0xff]
    %v62 = vld [vmem:[#allocation2 + $0x98] sm:$0xff]
    %v63 = vld [vmem:[#allocation2 + $0xa0] sm:$0xff]
    %v64 = vld [vmem:[#allocation2 + $0xa8] sm:$0xff]
    %v65 = vld [vmem:[#allocation2 + $0xb0] sm:$0xff]
    %v66 = vld [vmem:[#allocation2 + $0xb8] sm:$0xff]
    %v67 = vld [vmem:[#allocation2 + $0xc0] sm:$0xff]
    %v68 = vld [vmem:[#allocation2 + $0xc8] sm:$0xff]
    %v69 = vld [vmem:[#allocation2 + $0xd0] sm:$0xff]
    %v70 = vld [vmem:[#allocation2 + $0xd8] sm:$0xff]
    %v71 = vld [vmem:[%s0] sm:$0xff]
    %v72 = vld [vmem:[%s0 + $0x8] sm:$0xff]
    %v73 = vld [vmem:[%s0 + $0x10] sm:$0xff]
    %v74 = vld [vmem:[%s0 + $0x18] sm:$0xff]
    %v75 = vld [vmem:[%s0 + $0x20] sm:$0xff]
    %v76 = vld [vmem:[%s0 + $0x28] sm:$0xff]
    %v77 = vld [vmem:[%s0 + $0x30] sm:$0xff]
    %v78 = vld [vmem:[%s0 + $0x38] sm:$0xff]
    %v79 = vld [vmem:[%s0 + $0x40] sm:$0xff]
    %v80 = vld [vmem:[%s0 + $0x48] sm:$0xff]
    %v81 = vld [vmem:[%s0 + $0x50] sm:$0xff]
    %v82 = vld [vmem:[%s0 + $0x58] sm:$0xff]
    %v83 = vld [vmem:[%s0 + $0x60] sm:$0xff]
    %v84 = vld [vmem:[%s0 + $0x68] sm:$0xff]
    %v85 = vld [vmem:[%s0 + $0x70] sm:$0xff]
    %v86 = vld [vmem:[%s0 + $0x78] sm:$0xff]
    %vm87 = vcmask 261120
    %v88 = vsel %vm87, %v71, 0.0
    %89 = vadd.xlane.f32.xlu0 %v88
    %v90 = vpop.xlane.xlu0 %89
    %v91 = vsel %vm87, %v72, 0.0
    %92 = vadd.xlane.f32.xlu0 %v91
    %v93 = vpop.xlane.xlu0 %92
    %v94 = vsel %vm87, %v73, 0.0
    %95 = vadd.xlane.f32.xlu0 %v94
    %v96 = vpop.xlane.xlu0 %95
    %v97 = vsel %vm87, %v74, 0.0
    %98 = vadd.xlane.f32.xlu0 %v97
    %v99 = vpop.xlane.xlu0 %98
    %v100 = vsel %vm87, %v75, 0.0
    %101 = vadd.xlane.f32.xlu0 %v100
    %v102 = vpop.xlane.xlu0 %101
    %v103 = vsel %vm87, %v76, 0.0
    %104 = vadd.xlane.f32.xlu0 %v103
    %v105 = vpop.xlane.xlu0 %104
    %v106 = vsel %vm87, %v77, 0.0
    %107 = vadd.xlane.f32.xlu0 %v106
    %v108 = vpop.xlane.xlu0 %107
    %v109 = vsel %vm87, %v78, 0.0
    %110 = vadd.xlane.f32.xlu0 %v109
    %v111 = vpop.xlane.xlu0 %110
    %v112 = vsel %vm87, %v79, 0.0
    %113 = vadd.xlane.f32.xlu0 %v112
    %v114 = vpop.xlane.xlu0 %113
    %v115 = vsel %vm87, %v80, 0.0
    %116 = vadd.xlane.f32.xlu0 %v115
    %v117 = vpop.xlane.xlu0 %116
    %v118 = vsel %vm87, %v81, 0.0
    %119 = vadd.xlane.f32.xlu0 %v118
    %v120 = vpop.xlane.xlu0 %119
    %v121 = vsel %vm87, %v82, 0.0
    %122 = vadd.xlane.f32.xlu0 %v121
    %v123 = vpop.xlane.xlu0 %122
    %v124 = vsel %vm87, %v83, 0.0
    %125 = vadd.xlane.f32.xlu0 %v124
    %v126 = vpop.xlane.xlu0 %125
    %v127 = vsel %vm87, %v84, 0.0
    %128 = vadd.xlane.f32.xlu0 %v127
    %v129 = vpop.xlane.xlu0 %128
    %v130 = vsel %vm87, %v85, 0.0
    %131 = vadd.xlane.f32.xlu0 %v130
    %v132 = vpop.xlane.xlu0 %131
    %v133 = vsel %vm87, %v86, 0.0
    %134 = vadd.xlane.f32.xlu0 %v133
    %v135 = vpop.xlane.xlu0 %134
    %v136 = vrcp.pop 32.0
    %v137 = vmul.f32 %v90, %v136
    %v138 = vmul.f32 %v93, %v136
    %v139 = vmul.f32 %v96, %v136
    %v140 = vmul.f32 %v99, %v136
    %v141 = vmul.f32 %v102, %v136
    %v142 = vmul.f32 %v105, %v136
    %v143 = vmul.f32 %v108, %v136
    %v144 = vmul.f32 %v111, %v136
    %v145 = vmul.f32 %v114, %v136
    %v146 = vmul.f32 %v117, %v136
    %v147 = vmul.f32 %v120, %v136
    %v148 = vmul.f32 %v123, %v136
    %v149 = vmul.f32 %v126, %v136
    %v150 = vmul.f32 %v129, %v136
    %v151 = vmul.f32 %v132, %v136
    %v152 = vmul.f32 %v135, %v136
    %v153 = vsub.f32 %v71, %v137
    %v154 = vsub.f32 %v72, %v138
    %v155 = vsub.f32 %v73, %v139
    %v156 = vsub.f32 %v74, %v140
    %v157 = vsub.f32 %v75, %v141
    %v158 = vsub.f32 %v76, %v142
    %v159 = vsub.f32 %v77, %v143
    %v160 = vsub.f32 %v78, %v144
    %v161 = vsub.f32 %v79, %v145
    %v162 = vsub.f32 %v80, %v146
    %v163 = vsub.f32 %v81, %v147
    %v164 = vsub.f32 %v82, %v148
    %v165 = vsub.f32 %v83, %v149
    %v166 = vsub.f32 %v84, %v150
    %v167 = vsub.f32 %v85, %v151
    %v168 = vsub.f32 %v86, %v152
    %v169 = vmul.f32 %v153, %v153
    %v170 = vmul.f32 %v154, %v154
    %v171 = vmul.f32 %v155, %v155
    %v172 = vmul.f32 %v156, %v156
    %v173 = vmul.f32 %v157, %v157
    %v174 = vmul.f32 %v158, %v158
    %v175 = vmul.f32 %v159, %v159
    %v176 = vmul.f32 %v160, %v160
    %v177 = vmul.f32 %v161, %v161
    %v178 = vmul.f32 %v162, %v162
    %v179 = vmul.f32 %v163, %v163
    %v180 = vmul.f32 %v164, %v164
    %v181 = vmul.f32 %v165, %v165
    %v182 = vmul.f32 %v166, %v166
    %v183 = vmul.f32 %v167, %v167
    %v184 = vmul.f32 %v168, %v168
    %v185 = vsel %vm87, %v169, 0.0
    %186 = vadd.xlane.f32.xlu0 %v185
    %v187 = vpop.xlane.xlu0 %186
    %v188 = vsel %vm87, %v170, 0.0
    %189 = vadd.xlane.f32.xlu0 %v188
    %v190 = vpop.xlane.xlu0 %189
    %v191 = vsel %vm87, %v171, 0.0
    %192 = vadd.xlane.f32.xlu0 %v191
    %v193 = vpop.xlane.xlu0 %192
    %v194 = vsel %vm87, %v172, 0.0
    %195 = vadd.xlane.f32.xlu0 %v194
    %v196 = vpop.xlane.xlu0 %195
    %v197 = vsel %vm87, %v173, 0.0
    %198 = vadd.xlane.f32.xlu0 %v197
    %v199 = vpop.xlane.xlu0 %198
    %v200 = vsel %vm87, %v174, 0.0
    %201 = vadd.xlane.f32.xlu0 %v200
    %v202 = vpop.xlane.xlu0 %201
    %v203 = vsel %vm87, %v175, 0.0
    %204 = vadd.xlane.f32.xlu0 %v203
    %v205 = vpop.xlane.xlu0 %204
    %v206 = vsel %vm87, %v176, 0.0
    %207 = vadd.xlane.f32.xlu0 %v206
    %v208 = vpop.xlane.xlu0 %207
    %v209 = vsel %vm87, %v177, 0.0
    %210 = vadd.xlane.f32.xlu0 %v209
    %v211 = vpop.xlane.xlu0 %210
    %v212 = vsel %vm87, %v178, 0.0
    %213 = vadd.xlane.f32.xlu0 %v212
    %v214 = vpop.xlane.xlu0 %213
    %v215 = vsel %vm87, %v179, 0.0
    %216 = vadd.xlane.f32.xlu0 %v215
    %v217 = vpop.xlane.xlu0 %216
    %v218 = vsel %vm87, %v180, 0.0
    %219 = vadd.xlane.f32.xlu0 %v218
    %v220 = vpop.xlane.xlu0 %219
    %v221 = vsel %vm87, %v181, 0.0
    %222 = vadd.xlane.f32.xlu0 %v221
    %v223 = vpop.xlane.xlu0 %222
    %v224 = vsel %vm87, %v182, 0.0
    %225 = vadd.xlane.f32.xlu0 %v224
    %v226 = vpop.xlane.xlu0 %225
    %v227 = vsel %vm87, %v183, 0.0
    %228 = vadd.xlane.f32.xlu0 %v227
    %v229 = vpop.xlane.xlu0 %228
    %v230 = vsel %vm87, %v184, 0.0
    %231 = vadd.xlane.f32.xlu0 %v230
    %v232 = vpop.xlane.xlu0 %231
    %v233 = vmul.f32 %v187, %v136
    %v234 = vmul.f32 %v190, %v136
    %v235 = vmul.f32 %v193, %v136
    %v236 = vmul.f32 %v196, %v136
    %v237 = vmul.f32 %v199, %v136
    %v238 = vmul.f32 %v202, %v136
    %v239 = vmul.f32 %v205, %v136
    %v240 = vmul.f32 %v208, %v136
    %v241 = vmul.f32 %v211, %v136
    %v242 = vmul.f32 %v214, %v136
    %v243 = vmul.f32 %v217, %v136
    %v244 = vmul.f32 %v220, %v136
    %v245 = vmul.f32 %v223, %v136
    %v246 = vmul.f32 %v226, %v136
    %v247 = vmul.f32 %v229, %v136
    %v248 = vmul.f32 %v232, %v136
    %v249 = vadd.f32 %v233, 1e-05
    %v250 = vadd.f32 %v234, 1e-05
    %v251 = vadd.f32 %v235, 1e-05
    %v252 = vadd.f32 %v236, 1e-05
    %v253 = vadd.f32 %v237, 1e-05
    %v254 = vadd.f32 %v238, 1e-05
    %v255 = vadd.f32 %v239, 1e-05
    %v256 = vadd.f32 %v240, 1e-05
    %v257 = vadd.f32 %v241, 1e-05
    %v258 = vadd.f32 %v242, 1e-05
    %v259 = vadd.f32 %v243, 1e-05
    %v260 = vadd.f32 %v244, 1e-05
    %v261 = vadd.f32 %v245, 1e-05
    %v262 = vadd.f32 %v246, 1e-05
    %v263 = vadd.f32 %v247, 1e-05
    %v264 = vadd.f32 %v248, 1e-05
    %v265 = vrsqrt.pop %v249
    %v266 = vrsqrt.pop %v250
    %v267 = vrsqrt.pop %v251
    %v268 = vrsqrt.pop %v252
    %v269 = vrsqrt.pop %v253
    %v270 = vrsqrt.pop %v254
    %v271 = vrsqrt.pop %v255
    %v272 = vrsqrt.pop %v256
    %v273 = vrsqrt.pop %v257
    %v274 = vrsqrt.pop %v258
    %v275 = vrsqrt.pop %v259
    %v276 = vrsqrt.pop %v260
    %v277 = vrsqrt.pop %v261
    %v278 = vrsqrt.pop %v262
    %v279 = vrsqrt.pop %v263
    %v280 = vrsqrt.pop %v264
    %v281 = vmul.f32 %v153, %v265
    %v282 = vmul.f32 %v154, %v266
    %v283 = vmul.f32 %v155, %v267
    %v284 = vmul.f32 %v156, %v268
    %v285 = vmul.f32 %v157, %v269
    %v286 = vmul.f32 %v158, %v270
    %v287 = vmul.f32 %v159, %v271
    %v288 = vmul.f32 %v160, %v272
    %v289 = vmul.f32 %v161, %v273
    %v290 = vmul.f32 %v162, %v274
    %v291 = vmul.f32 %v163, %v275
    %v292 = vmul.f32 %v164, %v276
    %v293 = vmul.f32 %v165, %v277
    %v294 = vmul.f32 %v166, %v278
    %v295 = vmul.f32 %v167, %v279
    %v296 = vmul.f32 %v168, %v280
    %v297 = vlaneseq
    %v298 = vshrl.u32 %v297, 7
    %v299 = vsub.s32 0, %v298
    %v300 = vrot.slane %v32, %v299
    %v301 = vmul.f32 %v281, %v300
    %v302 = vmul.f32 %v282, %v300
    %v303 = vmul.f32 %v283, %v300
    %v304 = vmul.f32 %v284, %v300
    %v305 = vmul.f32 %v285, %v300
    %v306 = vmul.f32 %v286, %v300
    %v307 = vmul.f32 %v287, %v300
    %v308 = vmul.f32 %v288, %v300
    %v309 = vmul.f32 %v289, %v300
    %v310 = vmul.f32 %v290, %v300
    %v311 = vmul.f32 %v291, %v300
    %v312 = vmul.f32 %v292, %v300
    %v313 = vmul.f32 %v293, %v300
    %v314 = vmul.f32 %v294, %v300
    %v315 = vmul.f32 %v295, %v300
    %v316 = vmul.f32 %v296, %v300
    %v317 = vlaneseq
    %v318 = vshrl.u32 %v317, 7
    %v319 = vsub.s32 0, %v318
    %v320 = vrot.slane %v33, %v319
    %v321 = vadd.f32 %v301, %v320
    %v322 = vadd.f32 %v302, %v320
    %v323 = vadd.f32 %v303, %v320
    %v324 = vadd.f32 %v304, %v320
    %v325 = vadd.f32 %v305, %v320
    %v326 = vadd.f32 %v306, %v320
    %v327 = vadd.f32 %v307, %v320
    %v328 = vadd.f32 %v308, %v320
    %v329 = vadd.f32 %v309, %v320
    %v330 = vadd.f32 %v310, %v320
    %v331 = vadd.f32 %v311, %v320
    %v332 = vadd.f32 %v312, %v320
    %v333 = vadd.f32 %v313, %v320
    %v334 = vadd.f32 %v314, %v320
    %v335 = vadd.f32 %v315, %v320
    %v336 = vadd.f32 %v316, %v320
    %v338 = vsel %vm87, %v321, 0
    %v341 = vsel %vm87, %v322, 0
    %v344 = vsel %vm87, %v323, 0
    %v347 = vsel %vm87, %v324, 0
    %v350 = vsel %vm87, %v325, 0
    %v353 = vsel %vm87, %v326, 0
    %v356 = vsel %vm87, %v327, 0
    %v359 = vsel %vm87, %v328, 0
    %v362 = vsel %vm87, %v329, 0
    %v365 = vsel %vm87, %v330, 0
    %v368 = vsel %vm87, %v331, 0
    %v371 = vsel %vm87, %v332, 0
    %v374 = vsel %vm87, %v333, 0
    %v377 = vsel %vm87, %v334, 0
    %v380 = vsel %vm87, %v335, 0
    %v383 = vsel %vm87, %v336, 0
    %385 = vmatprep.subr.mxu0 0.0
    %386 = vmatpush1.msra.mxu0 %v47
    %387 = vmatprep.subr.mxu0 0.0
    %388 = vmatpush1.msra.mxu0 %v48
    %389 = vmatprep.subr.mxu0 0.0
    %390 = vmatpush1.msra.mxu0 %v49
    %391 = vmatprep.subr.mxu0 0.0
    %392 = vmatpush1.msra.mxu0 %v50
    %393 = vmatprep.subr.mxu0 0.0
    %394 = vmatpush1.msra.mxu0 0.0
    %395 = vmatprep.subr.mxu0 0.0
    %396 = vmatpush1.msra.mxu0 0.0
    %397 = vmatprep.subr.mxu0 0.0
    %398 = vmatpush1.msra.mxu0 0.0
    %399 = vmatprep.subr.mxu0 0.0
    %400 = vmatpush1.msra.mxu0 0.0
    %401 = vmatprep.subr.mxu0 0.0
    %402 = vmatpush1.msra.mxu0 0.0
    %403 = vmatprep.subr.mxu0 0.0
    %404 = vmatpush1.msra.mxu0 0.0
    %405 = vmatprep.subr.mxu0 0.0
    %406 = vmatpush1.msra.mxu0 0.0
    %407 = vmatprep.subr.mxu0 0.0
    %408 = vmatpush1.msra.mxu0 0.0
    %409 = vmatprep.subr.mxu0 0.0
    %410 = vmatpush1.msra.mxu0 0.0
    %411 = vmatprep.subr.mxu0 0.0
    %412 = vmatpush1.msra.mxu0 0.0
    %413 = vmatprep.subr.mxu0 0.0
    %414 = vmatpush1.msra.mxu0 0.0
    %415 = vmatprep.subr.mxu0 0.0
    %416 = vmatpush1.msra.mxu0 0.0
    %417 = vmatprep.subr.mxu0 0.0
    %418 = vmatpush1.msra.mxu0 0.0
    %419 = vmatprep.subr.mxu0 0.0
    %420 = vmatpush1.msra.mxu0 0.0
    %421 = vmatprep.subr.mxu0 0.0
    %422 = vmatpush1.msra.mxu0 0.0
    %423 = vmatprep.subr.mxu0 0.0
    %424 = vmatpush1.msra.mxu0 0.0
    %425 = vmatprep.subr.mxu0 0.0
    %426 = vmatpush1.msra.mxu0 0.0
    %427 = vmatprep.subr.mxu0 0.0
    %428 = vmatpush1.msra.mxu0 0.0
    %429 = vmatprep.subr.mxu0 0.0
    %430 = vmatpush1.msra.mxu0 0.0
    %431 = vmatprep.subr.mxu0 0.0
    %432 = vmatpush1.msra.mxu0 0.0
    %433 = vmatprep.subr.mxu0 0.0
    %434 = vmatpush1.msra.mxu0 0.0
    %435 = vmatprep.subr.mxu0 0.0
    %436 = vmatpush1.msra.mxu0 0.0
    %437 = vmatprep.subr.mxu0 0.0
    %438 = vmatpush1.msra.mxu0 0.0
    %439 = vmatprep.subr.mxu0 0.0
    %440 = vmatpush1.msra.mxu0 0.0
    %441 = vmatprep.subr.mxu0 0.0
    %442 = vmatpush1.msra.mxu0 0.0
    %443 = vmatprep.subr.mxu0 0.0
    %444 = vmatpush1.msra.mxu0 0.0
    %445 = vmatprep.subr.mxu0 0.0
    %446 = vmatpush1.msra.mxu0 0.0
    %447 = vmatprep.subr.mxu0 0.0
    %448 = vmatpush1.msra.mxu0 0.0
    %449 = vmatprep.mubr.f32.mxu0 0.0
    %450 = vmatmul.mubr.f32.gmra.mrb[0].mxu0 %v338
    %v451 = vpop.f32.mrb[0].mxu0
    %v452 = vadd.f32 0.0, %v451
    %v453 = vpop.f32.mrb[0].mxu0
    %454 = vmatprep.mubr.f32.mxu0 0.0
    %455 = vmatmul.mubr.f32.gmra.mrb[0].mxu0 %v341
    %v456 = vpop.f32.mrb[0].mxu0
    %v457 = vadd.f32 0.0, %v456
    %v458 = vpop.f32.mrb[0].mxu0
    %459 = vmatprep.mubr.f32.mxu0 0.0
    %460 = vmatmul.mubr.f32.gmra.mrb[0].mxu0 %v344
    %v461 = vpop.f32.mrb[0].mxu0
    %v462 = vadd.f32 0.0, %v461
    %v463 = vpop.f32.mrb[0].mxu0
    %464 = vmatprep.mubr.f32.mxu0 0.0
    %465 = vmatmul.mubr.f32.gmra.mrb[0].mxu0 %v347
    %v466 = vpop.f32.mrb[0].mxu0
    %v467 = vadd.f32 0.0, %v466
    %v468 = vpop.f32.mrb[0].mxu0
    %469 = vmatprep.mubr.f32.mxu0 0.0
    %470 = vmatmul.mubr.f32.gmra.mrb[0].mxu0 %v350
    %v471 = vpop.f32.mrb[0].mxu0
    %v472 = vadd.f32 0.0, %v471
    %v473 = vpop.f32.mrb[0].mxu0
    %474 = vmatprep.mubr.f32.mxu0 0.0
    %475 = vmatmul.mubr.f32.gmra.mrb[0].mxu0 %v353
    %v476 = vpop.f32.mrb[0].mxu0
    %v477 = vadd.f32 0.0, %v476
    %v478 = vpop.f32.mrb[0].mxu0
    %479 = vmatprep.mubr.f32.mxu0 0.0
    %480 = vmatmul.mubr.f32.gmra.mrb[0].mxu0 %v356
    %v481 = vpop.f32.mrb[0].mxu0
    %v482 = vadd.f32 0.0, %v481
    %v483 = vpop.f32.mrb[0].mxu0
    %484 = vmatprep.mubr.f32.mxu0 0.0
    %485 = vmatmul.mubr.f32.gmra.mrb[0].mxu0 %v359
    %v486 = vpop.f32.mrb[0].mxu0
    %v487 = vadd.f32 0.0, %v486
    %v488 = vpop.f32.mrb[0].mxu0
    %489 = vmatprep.mubr.f32.mxu0 0.0
    %490 = vmatmul.mubr.f32.gmra.mrb[0].mxu0 %v362
    %v491 = vpop.f32.mrb[0].mxu0
    %v492 = vadd.f32 0.0, %v491
    %v493 = vpop.f32.mrb[0].mxu0
    %494 = vmatprep.mubr.f32.mxu0 0.0
    %495 = vmatmul.mubr.f32.gmra.mrb[0].mxu0 %v365
    %v496 = vpop.f32.mrb[0].mxu0
    %v497 = vadd.f32 0.0, %v496
    %v498 = vpop.f32.mrb[0].mxu0
    %499 = vmatprep.mubr.f32.mxu0 0.0
    %500 = vmatmul.mubr.f32.gmra.mrb[0].mxu0 %v368
    %v501 = vpop.f32.mrb[0].mxu0
    %v502 = vadd.f32 0.0, %v501
    %v503 = vpop.f32.mrb[0].mxu0
    %504 = vmatprep.mubr.f32.mxu0 0.0
    %505 = vmatmul.mubr.f32.gmra.mrb[0].mxu0 %v371
    %v506 = vpop.f32.mrb[0].mxu0
    %v507 = vadd.f32 0.0, %v506
    %v508 = vpop.f32.mrb[0].mxu0
    %509 = vmatprep.mubr.f32.mxu0 0.0
    %510 = vmatmul.mubr.f32.gmra.mrb[0].mxu0 %v374
    %v511 = vpop.f32.mrb[0].mxu0
    %v512 = vadd.f32 0.0, %v511
    %v513 = vpop.f32.mrb[0].mxu0
    %514 = vmatprep.mubr.f32.mxu0 0.0
    %515 = vmatmul.mubr.f32.gmra.mrb[0].mxu0 %v377
    %v516 = vpop.f32.mrb[0].mxu0
    %v517 = vadd.f32 0.0, %v516
    %v518 = vpop.f32.mrb[0].mxu0
    %519 = vmatprep.mubr.f32.mxu0 0.0
    %520 = vmatmul.mubr.f32.gmra.mrb[0].mxu0 %v380
    %v521 = vpop.f32.mrb[0].mxu0
    %v522 = vadd.f32 0.0, %v521
    %v523 = vpop.f32.mrb[0].mxu0
    %524 = vmatprep.mubr.f32.mxu0 0.0
    %525 = vmatmul.mubr.f32.gmra.mrb[0].mxu0 %v383
    %v526 = vpop.f32.mrb[0].mxu0
    %v527 = vadd.f32 0.0, %v526
    %v528 = vpop.f32.mrb[0].mxu0
    %529 = vdwg.mxu0
    %v530 = vld [vmem:[%s1] sm:$0xff]
    %v531 = vld [vmem:[%s1 + $0x8] sm:$0xff]
    %v532 = vlaneseq
    %v533 = vshrl.u32 %v532, 7
    %v534 = vsub.s32 0, %v533
    %v535 = vrot.slane %v39, %v534
    %v536 = vmul.f32 %v535, %v530
    %v537 = vmul.f32 %v535, %v531
    %v538 = vlaneseq
    %v539 = vshrl.u32 %v538, 7
    %v540 = vsub.s32 0, %v539
    %v541 = vrot.slane %v38, %v540
    %v542 = vadd.f32 %v541, %v536
    %v543 = vadd.f32 %v541, %v537
    %v544 = vsel %vm87, %v542, 0.0
    %545 = vadd.xlane.f32.xlu0 %v544
    %v546 = vpop.xlane.xlu0 %545
    %v547 = vsel %vm87, %v543, 0.0
    %548 = vadd.xlane.f32.xlu0 %v547
    %v549 = vpop.xlane.xlu0 %548
    %v550 = vmul.f32 %v546, %v136
    %v551 = vmul.f32 %v549, %v136
    %v552 = vsub.f32 %v542, %v550
    %v553 = vsub.f32 %v543, %v551
    %v554 = vmul.f32 %v552, %v552
    %v555 = vmul.f32 %v553, %v553
    %v556 = vsel %vm87, %v554, 0.0
    %557 = vadd.xlane.f32.xlu0 %v556
    %v558 = vpop.xlane.xlu0 %557
    %v559 = vsel %vm87, %v555, 0.0
    %560 = vadd.xlane.f32.xlu0 %v559
    %v561 = vpop.xlane.xlu0 %560
    %v562 = vmul.f32 %v558, %v136
    %v563 = vmul.f32 %v561, %v136
    %v564 = vadd.f32 %v562, 1e-05
    %v565 = vadd.f32 %v563, 1e-05
    %v566 = vrsqrt.pop %v564
    %v567 = vrsqrt.pop %v565
    %v568 = vmul.f32 %v552, %v566
    %v569 = vmul.f32 %v553, %v567
    %v570 = vlaneseq
    %v571 = vshrl.u32 %v570, 7
    %v572 = vsub.s32 0, %v571
    %v573 = vrot.slane %v34, %v572
    %v574 = vmul.f32 %v568, %v573
    %v575 = vmul.f32 %v569, %v573
    %v576 = vlaneseq
    %v577 = vshrl.u32 %v576, 7
    %v578 = vsub.s32 0, %v577
    %v579 = vrot.slane %v35, %v578
    %v580 = vadd.f32 %v574, %v579
    %v581 = vadd.f32 %v575, %v579
    %v583 = vsel %vm87, %v580, 0
    %v586 = vsel %vm87, %v581, 0
    %588 = vmatprep.subr.mxu0 0.0
    %589 = vmatpush1.msra.mxu0 %v43
    %590 = vmatprep.subr.mxu0 0.0
    %591 = vmatpush1.msra.mxu0 %v44
    %592 = vmatprep.subr.mxu0 0.0
    %593 = vmatpush1.msra.mxu0 %v45
    %594 = vmatprep.subr.mxu0 0.0
    %595 = vmatpush1.msra.mxu0 %v46
    %596 = vmatprep.subr.mxu0 0.0
    %597 = vmatpush1.msra.mxu0 0.0
    %598 = vmatprep.subr.mxu0 0.0
    %599 = vmatpush1.msra.mxu0 0.0
    %600 = vmatprep.subr.mxu0 0.0
    %601 = vmatpush1.msra.mxu0 0.0
    %602 = vmatprep.subr.mxu0 0.0
    %603 = vmatpush1.msra.mxu0 0.0
    %604 = vmatprep.subr.mxu0 0.0
    %605 = vmatpush1.msra.mxu0 0.0
    %606 = vmatprep.subr.mxu0 0.0
    %607 = vmatpush1.msra.mxu0 0.0
    %608 = vmatprep.subr.mxu0 0.0
    %609 = vmatpush1.msra.mxu0 0.0
    %610 = vmatprep.subr.mxu0 0.0
    %611 = vmatpush1.msra.mxu0 0.0
    %612 = vmatprep.subr.mxu0 0.0
    %613 = vmatpush1.msra.mxu0 0.0
    %614 = vmatprep.subr.mxu0 0.0
    %615 = vmatpush1.msra.mxu0 0.0
    %616 = vmatprep.subr.mxu0 0.0
    %617 = vmatpush1.msra.mxu0 0.0
    %618 = vmatprep.subr.mxu0 0.0
    %619 = vmatpush1.msra.mxu0 0.0
    %620 = vmatprep.subr.mxu0 0.0
    %621 = vmatpush1.msra.mxu0 0.0
    %622 = vmatprep.subr.mxu0 0.0
    %623 = vmatpush1.msra.mxu0 0.0
    %624 = vmatprep.subr.mxu0 0.0
    %625 = vmatpush1.msra.mxu0 0.0
    %626 = vmatprep.subr.mxu0 0.0
    %627 = vmatpush1.msra.mxu0 0.0
    %628 = vmatprep.subr.mxu0 0.0
    %629 = vmatpush1.msra.mxu0 0.0
    %630 = vmatprep.subr.mxu0 0.0
    %631 = vmatpush1.msra.mxu0 0.0
    %632 = vmatprep.subr.mxu0 0.0
    %633 = vmatpush1.msra.mxu0 0.0
    %634 = vmatprep.subr.mxu0 0.0
    %635 = vmatpush1.msra.mxu0 0.0
    %636 = vmatprep.subr.mxu0 0.0
    %637 = vmatpush1.msra.mxu0 0.0
    %638 = vmatprep.subr.mxu0 0.0
    %639 = vmatpush1.msra.mxu0 0.0
    %640 = vmatprep.subr.mxu0 0.0
    %641 = vmatpush1.msra.mxu0 0.0
    %642 = vmatprep.subr.mxu0 0.0
    %643 = vmatpush1.msra.mxu0 0.0
    %644 = vmatprep.subr.mxu0 0.0
    %645 = vmatpush1.msra.mxu0 0.0
    %646 = vmatprep.subr.mxu0 0.0
    %647 = vmatpush1.msra.mxu0 0.0
    %648 = vmatprep.subr.mxu0 0.0
    %649 = vmatpush1.msra.mxu0 0.0
    %650 = vmatprep.subr.mxu0 0.0
    %651 = vmatpush1.msra.mxu0 0.0
    %652 = vmatprep.mubr.f32.mxu0 0.0
    %653 = vmatmul.mubr.f32.gmra.mrb[0].mxu0 %v583
    %v654 = vpop.f32.mrb[0].mxu0
    %v655 = vadd.f32 0.0, %v654
    %v656 = vpop.f32.mrb[0].mxu0
    %657 = vmatprep.mubr.f32.mxu0 0.0
    %658 = vmatmul.mubr.f32.gmra.mrb[0].mxu0 %v586
    %v659 = vpop.f32.mrb[0].mxu0
    %v660 = vadd.f32 0.0, %v659
    %v661 = vpop.f32.mrb[0].mxu0
    %662 = vdwg.mxu0
    %v664 = vsel %vm87, %v655, 0
    %v667 = vsel %vm87, %v452, 0
    %v670 = vsel %vm87, %v457, 0
    %v673 = vsel %vm87, %v462, 0
    %v676 = vsel %vm87, %v467, 0
    %v679 = vsel %vm87, %v472, 0
    %v682 = vsel %vm87, %v477, 0
    %v685 = vsel %vm87, %v482, 0
    %v688 = vsel %vm87, %v487, 0
    %690 = vmatprep.subr.mxu0 0.0
    %691 = vmatpush1.xpose.msra.mxu0 %v667
    %692 = vmatprep.subr.mxu0 0.0
    %693 = vmatpush1.xpose.msra.mxu0 %v670
    %694 = vmatprep.subr.mxu0 0.0
    %695 = vmatpush1.xpose.msra.mxu0 %v673
    %696 = vmatprep.subr.mxu0 0.0
    %697 = vmatpush1.xpose.msra.mxu0 %v676
    %698 = vmatprep.subr.mxu0 0.0
    %699 = vmatpush1.xpose.msra.mxu0 %v679
    %700 = vmatprep.subr.mxu0 0.0
    %701 = vmatpush1.xpose.msra.mxu0 %v682
    %702 = vmatprep.subr.mxu0 0.0
    %703 = vmatpush1.xpose.msra.mxu0 %v685
    %704 = vmatprep.subr.mxu0 0.0
    %705 = vmatpush1.xpose.msra.mxu0 %v688
    %706 = vmatprep.subr.mxu0 0.0
    %707 = vmatpush1.xpose.msra.mxu0 0.0
    %708 = vmatprep.subr.mxu0 0.0
    %709 = vmatpush1.xpose.msra.mxu0 0.0
    %710 = vmatprep.subr.mxu0 0.0
    %711 = vmatpush1.xpose.msra.mxu0 0.0
    %712 = vmatprep.subr.mxu0 0.0
    %713 = vmatpush1.xpose.msra.mxu0 0.0
    %714 = vmatprep.subr.mxu0 0.0
    %715 = vmatpush1.xpose.msra.mxu0 0.0
    %716 = vmatprep.subr.mxu0 0.0
    %717 = vmatpush1.xpose.msra.mxu0 0.0
    %718 = vmatprep.subr.mxu0 0.0
    %719 = vmatpush1.xpose.msra.mxu0 0.0
    %720 = vmatprep.subr.mxu0 0.0
    %721 = vmatpush1.xpose.msra.mxu0 0.0
    %722 = vmatprep.subr.mxu0 0.0
    %723 = vmatpush1.xpose.msra.mxu0 0.0
    %724 = vmatprep.subr.mxu0 0.0
    %725 = vmatpush1.xpose.msra.mxu0 0.0
    %726 = vmatprep.subr.mxu0 0.0
    %727 = vmatpush1.xpose.msra.mxu0 0.0
    %728 = vmatprep.subr.mxu0 0.0
    %729 = vmatpush1.xpose.msra.mxu0 0.0
    %730 = vmatprep.subr.mxu0 0.0
    %731 = vmatpush1.xpose.msra.mxu0 0.0
    %732 = vmatprep.subr.mxu0 0.0
    %733 = vmatpush1.xpose.msra.mxu0 0.0
    %734 = vmatprep.subr.mxu0 0.0
    %735 = vmatpush1.xpose.msra.mxu0 0.0
    %736 = vmatprep.subr.mxu0 0.0
    %737 = vmatpush1.xpose.msra.mxu0 0.0
    %738 = vmatprep.subr.mxu0 0.0
    %739 = vmatpush1.xpose.msra.mxu0 0.0
    %740 = vmatprep.subr.mxu0 0.0
    %741 = vmatpush1.xpose.msra.mxu0 0.0
    %742 = vmatprep.subr.mxu0 0.0
    %743 = vmatpush1.xpose.msra.mxu0 0.0
    %744 = vmatprep.subr.mxu0 0.0
    %745 = vmatpush1.xpose.msra.mxu0 0.0
    %746 = vmatprep.subr.mxu0 0.0
    %747 = vmatpush1.xpose.msra.mxu0 0.0
    %748 = vmatprep.subr.mxu0 0.0
    %749 = vmatpush1.xpose.msra.mxu0 0.0
    %750 = vmatprep.subr.mxu0 0.0
    %751 = vmatpush1.xpose.msra.mxu0 0.0
    %752 = vmatprep.subr.mxu0 0.0
    %753 = vmatpush1.xpose.msra.mxu0 0.0
    %754 = vmatprep.mubr.f32.mxu0 0.0
    %755 = vmatmul.mubr.f32.gmra.mrb[0].mxu0 %v664
    %v756 = vpop.f32.mrb[0].mxu0
    %v757 = vadd.f32 0.0, %v756
    %v758 = vpop.f32.mrb[0].mxu0
    %759 = vdwg.mxu0
    %v761 = vsel %vm87, %v660, 0
    %v764 = vsel %vm87, %v492, 0
    %v767 = vsel %vm87, %v497, 0
    %v770 = vsel %vm87, %v502, 0
    %v773 = vsel %vm87, %v507, 0
    %v776 = vsel %vm87, %v512, 0
    %v779 = vsel %vm87, %v517, 0
    %v782 = vsel %vm87, %v522, 0
    %v785 = vsel %vm87, %v527, 0
    %787 = vmatprep.subr.mxu0 0.0
    %788 = vmatpush1.xpose.msra.mxu0 %v764
    %789 = vmatprep.subr.mxu0 0.0
    %790 = vmatpush1.xpose.msra.mxu0 %v767
    %791 = vmatprep.subr.mxu0 0.0
    %792 = vmatpush1.xpose.msra.mxu0 %v770
    %793 = vmatprep.subr.mxu0 0.0
    %794 = vmatpush1.xpose.msra.mxu0 %v773
    %795 = vmatprep.subr.mxu0 0.0
    %796 = vmatpush1.xpose.msra.mxu0 %v776
    %797 = vmatprep.subr.mxu0 0.0
    %798 = vmatpush1.xpose.msra.mxu0 %v779
    %799 = vmatprep.subr.mxu0 0.0
    %800 = vmatpush1.xpose.msra.mxu0 %v782
    %801 = vmatprep.subr.mxu0 0.0
    %802 = vmatpush1.xpose.msra.mxu0 %v785
    %803 = vmatprep.subr.mxu0 0.0
    %804 = vmatpush1.xpose.msra.mxu0 0.0
    %805 = vmatprep.subr.mxu0 0.0
    %806 = vmatpush1.xpose.msra.mxu0 0.0
    %807 = vmatprep.subr.mxu0 0.0
    %808 = vmatpush1.xpose.msra.mxu0 0.0
    %809 = vmatprep.subr.mxu0 0.0
    %810 = vmatpush1.xpose.msra.mxu0 0.0
    %811 = vmatprep.subr.mxu0 0.0
    %812 = vmatpush1.xpose.msra.mxu0 0.0
    %813 = vmatprep.subr.mxu0 0.0
    %814 = vmatpush1.xpose.msra.mxu0 0.0
    %815 = vmatprep.subr.mxu0 0.0
    %816 = vmatpush1.xpose.msra.mxu0 0.0
    %817 = vmatprep.subr.mxu0 0.0
    %818 = vmatpush1.xpose.msra.mxu0 0.0
    %819 = vmatprep.subr.mxu0 0.0
    %820 = vmatpush1.xpose.msra.mxu0 0.0
    %821 = vmatprep.subr.mxu0 0.0
    %822 = vmatpush1.xpose.msra.mxu0 0.0
    %823 = vmatprep.subr.mxu0 0.0
    %824 = vmatpush1.xpose.msra.mxu0 0.0
    %825 = vmatprep.subr.mxu0 0.0
    %826 = vmatpush1.xpose.msra.mxu0 0.0
    %827 = vmatprep.subr.mxu0 0.0
    %828 = vmatpush1.xpose.msra.mxu0 0.0
    %829 = vmatprep.subr.mxu0 0.0
    %830 = vmatpush1.xpose.msra.mxu0 0.0
    %831 = vmatprep.subr.mxu0 0.0
    %832 = vmatpush1.xpose.msra.mxu0 0.0
    %833 = vmatprep.subr.mxu0 0.0
    %834 = vmatpush1.xpose.msra.mxu0 0.0
    %835 = vmatprep.subr.mxu0 0.0
    %836 = vmatpush1.xpose.msra.mxu0 0.0
    %837 = vmatprep.subr.mxu0 0.0
    %838 = vmatpush1.xpose.msra.mxu0 0.0
    %839 = vmatprep.subr.mxu0 0.0
    %840 = vmatpush1.xpose.msra.mxu0 0.0
    %841 = vmatprep.subr.mxu0 0.0
    %842 = vmatpush1.xpose.msra.mxu0 0.0
    %843 = vmatprep.subr.mxu0 0.0
    %844 = vmatpush1.xpose.msra.mxu0 0.0
    %845 = vmatprep.subr.mxu0 0.0
    %846 = vmatpush1.xpose.msra.mxu0 0.0
    %847 = vmatprep.subr.mxu0 0.0
    %848 = vmatpush1.xpose.msra.mxu0 0.0
    %849 = vmatprep.subr.mxu0 0.0
    %850 = vmatpush1.xpose.msra.mxu0 0.0
    %851 = vmatprep.mubr.f32.mxu0 0.0
    %852 = vmatmul.mubr.f32.gmra.mrb[0].mxu0 %v761
    %v853 = vpop.f32.mrb[0].mxu0
    %v854 = vadd.f32 0.0, %v853
    %v855 = vpop.f32.mrb[0].mxu0
    %856 = vdwg.mxu0
    %vm857 = vcmask 523264
    %v858 = vsel %vm857, %v757, -inf
    %v859 = vrot.slane %v858, 4
    %v860 = vmax.f32 %v858, %v859
    %v861 = vrot.slane %v860, 2
    %v862 = vmax.f32 %v860, %v861
    %v863 = vrot.slane %v862, 1
    %v864 = vmax.f32 %v862, %v863
    %v865 = vsel %vm857, %v854, -inf
    %v866 = vrot.slane %v865, 4
    %v867 = vmax.f32 %v865, %v866
    %v868 = vrot.slane %v867, 2
    %v869 = vmax.f32 %v867, %v868
    %v870 = vrot.slane %v869, 1
    %v871 = vmax.f32 %v869, %v870
    %v872 = vsub.f32 %v757, %v864
    %v873 = vsub.f32 %v854, %v871
    %v874 = vmul.f32 %v872, 1.442695
    %v875 = vpow.pop %v874
    %v876 = vmul.f32 %v873, 1.442695
    %v877 = vpow.pop %v876
    %v878 = vsel %vm857, %v875, 0.0
    %v879 = vrot.slane %v878, 4
    %v880 = vadd.f32 %v878, %v879
    %v881 = vrot.slane %v880, 2
    %v882 = vadd.f32 %v880, %v881
    %v883 = vrot.slane %v882, 1
    %v884 = vadd.f32 %v882, %v883
    %v885 = vsel %vm857, %v877, 0.0
    %v886 = vrot.slane %v885, 4
    %v887 = vadd.f32 %v885, %v886
    %v888 = vrot.slane %v887, 2
    %v889 = vadd.f32 %v887, %v888
    %v890 = vrot.slane %v889, 1
    %v891 = vadd.f32 %v889, %v890
    %v892 = vrcp.pop %v884
    %v893 = vrcp.pop %v891
    %v894 = vmul.f32 %v875, %v892
    %v895 = vmul.f32 %v877, %v893
    %v896 = vadd.f32 %v894, 1e-08
    %v897 = vadd.f32 %v895, 1e-08
    %v898 = vsel %vm857, %v896, 0.0
    %899 = vadd.xlane.f32.xlu0 %v898
    %v900 = vpop.xlane.xlu0 %899
    %v901 = vsel %vm857, %v897, 0.0
    %902 = vadd.xlane.f32.xlu0 %v901
    %v903 = vpop.xlane.xlu0 %902
    %v904 = vrcp.pop %v900
    %v905 = vrcp.pop %v903
    %v906 = vmul.f32 %v896, %v904
    %v907 = vmul.f32 %v897, %v905
    %908 = vrot.lane.b32.xlu0 %v452, 96
    %v909 = vpop.permute.xlu0 %908
    %910 = vrot.lane.b32.xlu0 %v457, 96
    %v911 = vpop.permute.xlu0 %910
    %912 = vrot.lane.b32.xlu0 %v462, 96
    %v913 = vpop.permute.xlu0 %912
    %914 = vrot.lane.b32.xlu0 %v467, 96
    %v915 = vpop.permute.xlu0 %914
    %916 = vrot.lane.b32.xlu0 %v472, 96
    %v917 = vpop.permute.xlu0 %916
    %918 = vrot.lane.b32.xlu0 %v477, 96
    %v919 = vpop.permute.xlu0 %918
    %920 = vrot.lane.b32.xlu0 %v482, 96
    %v921 = vpop.permute.xlu0 %920
    %922 = vrot.lane.b32.xlu0 %v487, 96
    %v923 = vpop.permute.xlu0 %922
    %v933 = vsel %vm857, %v906, 0
    %935 = vmatprep.subr.mxu0 0.0
    %936 = vmatpush1.msra.mxu0 %v909
    %937 = vmatprep.subr.mxu0 0.0
    %938 = vmatpush1.msra.mxu0 %v911
    %939 = vmatprep.subr.mxu0 0.0
    %940 = vmatpush1.msra.mxu0 %v913
    %941 = vmatprep.subr.mxu0 0.0
    %942 = vmatpush1.msra.mxu0 %v915
    %943 = vmatprep.subr.mxu0 0.0
    %944 = vmatpush1.msra.mxu0 %v917
    %945 = vmatprep.subr.mxu0 0.0
    %946 = vmatpush1.msra.mxu0 %v919
    %947 = vmatprep.subr.mxu0 0.0
    %948 = vmatpush1.msra.mxu0 %v921
    %949 = vmatprep.subr.mxu0 0.0
    %950 = vmatpush1.msra.mxu0 %v923
    %951 = vmatprep.subr.mxu0 0.0
    %952 = vmatpush1.msra.mxu0 0.0
    %953 = vmatprep.subr.mxu0 0.0
    %954 = vmatpush1.msra.mxu0 0.0
    %955 = vmatprep.subr.mxu0 0.0
    %956 = vmatpush1.msra.mxu0 0.0
    %957 = vmatprep.subr.mxu0 0.0
    %958 = vmatpush1.msra.mxu0 0.0
    %959 = vmatprep.subr.mxu0 0.0
    %960 = vmatpush1.msra.mxu0 0.0
    %961 = vmatprep.subr.mxu0 0.0
    %962 = vmatpush1.msra.mxu0 0.0
    %963 = vmatprep.subr.mxu0 0.0
    %964 = vmatpush1.msra.mxu0 0.0
    %965 = vmatprep.subr.mxu0 0.0
    %966 = vmatpush1.msra.mxu0 0.0
    %967 = vmatprep.subr.mxu0 0.0
    %968 = vmatpush1.msra.mxu0 0.0
    %969 = vmatprep.subr.mxu0 0.0
    %970 = vmatpush1.msra.mxu0 0.0
    %971 = vmatprep.subr.mxu0 0.0
    %972 = vmatpush1.msra.mxu0 0.0
    %973 = vmatprep.subr.mxu0 0.0
    %974 = vmatpush1.msra.mxu0 0.0
    %975 = vmatprep.subr.mxu0 0.0
    %976 = vmatpush1.msra.mxu0 0.0
    %977 = vmatprep.subr.mxu0 0.0
    %978 = vmatpush1.msra.mxu0 0.0
    %979 = vmatprep.subr.mxu0 0.0
    %980 = vmatpush1.msra.mxu0 0.0
    %981 = vmatprep.subr.mxu0 0.0
    %982 = vmatpush1.msra.mxu0 0.0
    %983 = vmatprep.subr.mxu0 0.0
    %984 = vmatpush1.msra.mxu0 0.0
    %985 = vmatprep.subr.mxu0 0.0
    %986 = vmatpush1.msra.mxu0 0.0
    %987 = vmatprep.subr.mxu0 0.0
    %988 = vmatpush1.msra.mxu0 0.0
    %989 = vmatprep.subr.mxu0 0.0
    %990 = vmatpush1.msra.mxu0 0.0
    %991 = vmatprep.subr.mxu0 0.0
    %992 = vmatpush1.msra.mxu0 0.0
    %993 = vmatprep.subr.mxu0 0.0
    %994 = vmatpush1.msra.mxu0 0.0
    %995 = vmatprep.subr.mxu0 0.0
    %996 = vmatpush1.msra.mxu0 0.0
    %997 = vmatprep.subr.mxu0 0.0
    %998 = vmatpush1.msra.mxu0 0.0
    %999 = vmatprep.mubr.f32.mxu0 0.0
    %1000 = vmatmul.mubr.f32.gmra.mrb[0].mxu0 %v933
    %v1001 = vpop.f32.mrb[0].mxu0
    %v1002 = vadd.f32 0.0, %v1001
    %v1003 = vpop.f32.mrb[0].mxu0
    %1004 = vdwg.mxu0
    %1005 = vrot.lane.b32.xlu0 %v492, 96
    %v1006 = vpop.permute.xlu0 %1005
    %1007 = vrot.lane.b32.xlu0 %v497, 96
    %v1008 = vpop.permute.xlu0 %1007
    %1009 = vrot.lane.b32.xlu0 %v502, 96
    %v1010 = vpop.permute.xlu0 %1009
    %1011 = vrot.lane.b32.xlu0 %v507, 96
    %v1012 = vpop.permute.xlu0 %1011
    %1013 = vrot.lane.b32.xlu0 %v512, 96
    %v1014 = vpop.permute.xlu0 %1013
    %1015 = vrot.lane.b32.xlu0 %v517, 96
    %v1016 = vpop.permute.xlu0 %1015
    %1017 = vrot.lane.b32.xlu0 %v522, 96
    %v1018 = vpop.permute.xlu0 %1017
    %1019 = vrot.lane.b32.xlu0 %v527, 96
    %v1020 = vpop.permute.xlu0 %1019
    %v1030 = vsel %vm857, %v907, 0
    %1032 = vmatprep.subr.mxu0 0.0
    %1033 = vmatpush1.msra.mxu0 %v1006
    %1034 = vmatprep.subr.mxu0 0.0
    %1035 = vmatpush1.msra.mxu0 %v1008
    %1036 = vmatprep.subr.mxu0 0.0
    %1037 = vmatpush1.msra.mxu0 %v1010
    %1038 = vmatprep.subr.mxu0 0.0
    %1039 = vmatpush1.msra.mxu0 %v1012
    %1040 = vmatprep.subr.mxu0 0.0
    %1041 = vmatpush1.msra.mxu0 %v1014
    %1042 = vmatprep.subr.mxu0 0.0
    %1043 = vmatpush1.msra.mxu0 %v1016
    %1044 = vmatprep.subr.mxu0 0.0
    %1045 = vmatpush1.msra.mxu0 %v1018
    %1046 = vmatprep.subr.mxu0 0.0
    %1047 = vmatpush1.msra.mxu0 %v1020
    %1048 = vmatprep.subr.mxu0 0.0
    %1049 = vmatpush1.msra.mxu0 0.0
    %1050 = vmatprep.subr.mxu0 0.0
    %1051 = vmatpush1.msra.mxu0 0.0
    %1052 = vmatprep.subr.mxu0 0.0
    %1053 = vmatpush1.msra.mxu0 0.0
    %1054 = vmatprep.subr.mxu0 0.0
    %1055 = vmatpush1.msra.mxu0 0.0
    %1056 = vmatprep.subr.mxu0 0.0
    %1057 = vmatpush1.msra.mxu0 0.0
    %1058 = vmatprep.subr.mxu0 0.0
    %1059 = vmatpush1.msra.mxu0 0.0
    %1060 = vmatprep.subr.mxu0 0.0
    %1061 = vmatpush1.msra.mxu0 0.0
    %1062 = vmatprep.subr.mxu0 0.0
    %1063 = vmatpush1.msra.mxu0 0.0
    %1064 = vmatprep.subr.mxu0 0.0
    %1065 = vmatpush1.msra.mxu0 0.0
    %1066 = vmatprep.subr.mxu0 0.0
    %1067 = vmatpush1.msra.mxu0 0.0
    %1068 = vmatprep.subr.mxu0 0.0
    %1069 = vmatpush1.msra.mxu0 0.0
    %1070 = vmatprep.subr.mxu0 0.0
    %1071 = vmatpush1.msra.mxu0 0.0
    %1072 = vmatprep.subr.mxu0 0.0
    %1073 = vmatpush1.msra.mxu0 0.0
    %1074 = vmatprep.subr.mxu0 0.0
    %1075 = vmatpush1.msra.mxu0 0.0
    %1076 = vmatprep.subr.mxu0 0.0
    %1077 = vmatpush1.msra.mxu0 0.0
    %1078 = vmatprep.subr.mxu0 0.0
    %1079 = vmatpush1.msra.mxu0 0.0
    %1080 = vmatprep.subr.mxu0 0.0
    %1081 = vmatpush1.msra.mxu0 0.0
    %1082 = vmatprep.subr.mxu0 0.0
    %1083 = vmatpush1.msra.mxu0 0.0
    %1084 = vmatprep.subr.mxu0 0.0
    %1085 = vmatpush1.msra.mxu0 0.0
    %1086 = vmatprep.subr.mxu0 0.0
    %1087 = vmatpush1.msra.mxu0 0.0
    %1088 = vmatprep.subr.mxu0 0.0
    %1089 = vmatpush1.msra.mxu0 0.0
    %1090 = vmatprep.subr.mxu0 0.0
    %1091 = vmatpush1.msra.mxu0 0.0
    %1092 = vmatprep.subr.mxu0 0.0
    %1093 = vmatpush1.msra.mxu0 0.0
    %1094 = vmatprep.subr.mxu0 0.0
    %1095 = vmatpush1.msra.mxu0 0.0
    %1096 = vmatprep.mubr.f32.mxu0 0.0
    %1097 = vmatmul.mubr.f32.gmra.mrb[0].mxu0 %v1030
    %v1098 = vpop.f32.mrb[0].mxu0
    %v1099 = vadd.f32 0.0, %v1098
    %v1100 = vpop.f32.mrb[0].mxu0
    %1101 = vdwg.mxu0
    %1104 = vrot.lane.b32.xlu0 %v542, 32
    %v1105 = vpop.permute.xlu0 %1104
    %1106 = vrot.lane.b32.xlu0 %v543, 32
    %v1107 = vpop.permute.xlu0 %1106
    %v1110 = vsel %vm87, %v1002, %v1105
    %v1111 = vsel %vm87, %v1099, %v1107
    %v1112 = vlaneseq
    %v1113 = vshrl.u32 %v1112, 7
    %v1114 = vsub.s32 0, %v1113
    %v1115 = vrot.slane %v40, %v1114
    %v1117 = vsel %vm857, %v1110, 0
    %v1120 = vsel %vm857, %v1111, 0
    %1122 = vmatprep.subr.mxu0 0.0
    %1123 = vmatpush1.msra.mxu0 %v63
    %1124 = vmatprep.subr.mxu0 0.0
    %1125 = vmatpush1.msra.mxu0 %v64
    %1126 = vmatprep.subr.mxu0 0.0
    %1127 = vmatpush1.msra.mxu0 %v65
    %1128 = vmatprep.subr.mxu0 0.0
    %1129 = vmatpush1.msra.mxu0 %v66
    %1130 = vmatprep.subr.mxu0 0.0
    %1131 = vmatpush1.msra.mxu0 %v67
    %1132 = vmatprep.subr.mxu0 0.0
    %1133 = vmatpush1.msra.mxu0 %v68
    %1134 = vmatprep.subr.mxu0 0.0
    %1135 = vmatpush1.msra.mxu0 %v69
    %1136 = vmatprep.subr.mxu0 0.0
    %1137 = vmatpush1.msra.mxu0 %v70
    %1138 = vmatprep.subr.mxu0 0.0
    %1139 = vmatpush1.msra.mxu0 0.0
    %1140 = vmatprep.subr.mxu0 0.0
    %1141 = vmatpush1.msra.mxu0 0.0
    %1142 = vmatprep.subr.mxu0 0.0
    %1143 = vmatpush1.msra.mxu0 0.0
    %1144 = vmatprep.subr.mxu0 0.0
    %1145 = vmatpush1.msra.mxu0 0.0
    %1146 = vmatprep.subr.mxu0 0.0
    %1147 = vmatpush1.msra.mxu0 0.0
    %1148 = vmatprep.subr.mxu0 0.0
    %1149 = vmatpush1.msra.mxu0 0.0
    %1150 = vmatprep.subr.mxu0 0.0
    %1151 = vmatpush1.msra.mxu0 0.0
    %1152 = vmatprep.subr.mxu0 0.0
    %1153 = vmatpush1.msra.mxu0 0.0
    %1154 = vmatprep.subr.mxu0 0.0
    %1155 = vmatpush1.msra.mxu0 0.0
    %1156 = vmatprep.subr.mxu0 0.0
    %1157 = vmatpush1.msra.mxu0 0.0
    %1158 = vmatprep.subr.mxu0 0.0
    %1159 = vmatpush1.msra.mxu0 0.0
    %1160 = vmatprep.subr.mxu0 0.0
    %1161 = vmatpush1.msra.mxu0 0.0
    %1162 = vmatprep.subr.mxu0 0.0
    %1163 = vmatpush1.msra.mxu0 0.0
    %1164 = vmatprep.subr.mxu0 0.0
    %1165 = vmatpush1.msra.mxu0 0.0
    %1166 = vmatprep.subr.mxu0 0.0
    %1167 = vmatpush1.msra.mxu0 0.0
    %1168 = vmatprep.subr.mxu0 0.0
    %1169 = vmatpush1.msra.mxu0 0.0
    %1170 = vmatprep.subr.mxu0 0.0
    %1171 = vmatpush1.msra.mxu0 0.0
    %1172 = vmatprep.subr.mxu0 0.0
    %1173 = vmatpush1.msra.mxu0 0.0
    %1174 = vmatprep.subr.mxu0 0.0
    %1175 = vmatpush1.msra.mxu0 0.0
    %1176 = vmatprep.subr.mxu0 0.0
    %1177 = vmatpush1.msra.mxu0 0.0
    %1178 = vmatprep.subr.mxu0 0.0
    %1179 = vmatpush1.msra.mxu0 0.0
    %1180 = vmatprep.subr.mxu0 0.0
    %1181 = vmatpush1.msra.mxu0 0.0
    %1182 = vmatprep.subr.mxu0 0.0
    %1183 = vmatpush1.msra.mxu0 0.0
    %1184 = vmatprep.subr.mxu0 0.0
    %1185 = vmatpush1.msra.mxu0 0.0
    %1186 = vmatprep.mubr.f32.mxu0 0.0
    %1187 = vmatmul.mubr.f32.gmra.mrb[0].mxu0 %v1117
    %v1188 = vpop.f32.mrb[0].mxu0
    %v1189 = vadd.f32 %v1115, %v1188
    %v1190 = vpop.f32.mrb[0].mxu0
    %1191 = vmatprep.mubr.f32.mxu0 0.0
    %1192 = vmatmul.mubr.f32.gmra.mrb[0].mxu0 %v1120
    %v1193 = vpop.f32.mrb[0].mxu0
    %v1194 = vadd.f32 %v1115, %v1193
    %v1195 = vpop.f32.mrb[0].mxu0
    %1196 = vdwg.mxu0
    %v1197 = vxor.u32 %v1189, 2147483648
    %v1198 = vxor.u32 %v1194, 2147483648
    %v1199 = vmul.f32 %v1197, 1.442695
    %v1200 = vpow.pop %v1199
    %v1201 = vmul.f32 %v1198, 1.442695
    %v1202 = vpow.pop %v1201
    %v1203 = vadd.f32 %v1200, 1.0
    %v1204 = vadd.f32 %v1202, 1.0
    %v1205 = vrcp.pop %v1203
    %v1206 = vmul.f32 1.0, %v1205
    %v1207 = vrcp.pop %v1204
    %v1208 = vmul.f32 1.0, %v1207
    %1211 = vrot.lane.b32.xlu0 %v1189, 32
    %v1212 = vpop.permute.xlu0 %1211
    %1213 = vrot.lane.b32.xlu0 %v1194, 32
    %v1214 = vpop.permute.xlu0 %1213
    %v1217 = vmul.f32 %v1206, %v1212
    %v1218 = vmul.f32 %v1208, %v1214
    %1221 = vrot.lane.b32.xlu0 %v1217, 64
    %v1222 = vpop.permute.xlu0 %1221
    %1223 = vrot.lane.b32.xlu0 %v1218, 64
    %v1224 = vpop.permute.xlu0 %1223
    %v1227 = vadd.f32 %v1189, %v1222
    %v1228 = vadd.f32 %v1194, %v1224
    %v1229 = vtanh.pop %v1227
    %v1230 = vtanh.pop %v1228
    %v1231 = vsub.f32 1.0, %v1206
    %v1232 = vsub.f32 1.0, %v1208
    %1235 = vrot.lane.b32.xlu0 %v1229, 96
    %v1236 = vpop.permute.xlu0 %1235
    %1237 = vrot.lane.b32.xlu0 %v1230, 96
    %v1238 = vpop.permute.xlu0 %1237
    %v1241 = vmul.f32 %v1231, %v1236
    %v1242 = vmul.f32 %v1232, %v1238
    %v1243 = vmul.f32 %v1206, %v1105
    %v1244 = vmul.f32 %v1208, %v1107
    %v1245 = vadd.f32 %v1241, %v1243
    %v1246 = vadd.f32 %v1242, %v1244
    %1249 = vrot.lane.b32.xlu0 %v1245, 96
    %v1250 = vpop.permute.xlu0 %1249
    %1251 = vrot.lane.b32.xlu0 %v1246, 96
    %v1252 = vpop.permute.xlu0 %1251
    %v1255 = vsel %vm87, %v1250, 0.0
    %1256 = vadd.xlane.f32.xlu0 %v1255
    %v1257 = vpop.xlane.xlu0 %1256
    %v1258 = vsel %vm87, %v1252, 0.0
    %1259 = vadd.xlane.f32.xlu0 %v1258
    %v1260 = vpop.xlane.xlu0 %1259
    %v1261 = vmul.f32 %v1257, %v136
    %v1262 = vmul.f32 %v1260, %v136
    %v1263 = vsub.f32 %v1245, %v1261
    %v1264 = vsub.f32 %v1246, %v1262
    %v1265 = vmul.f32 %v1263, %v1263
    %v1266 = vmul.f32 %v1264, %v1264
    %1269 = vrot.lane.b32.xlu0 %v1265, 96
    %v1270 = vpop.permute.xlu0 %1269
    %1271 = vrot.lane.b32.xlu0 %v1266, 96
    %v1272 = vpop.permute.xlu0 %1271
    %v1275 = vsel %vm87, %v1270, 0.0
    %1276 = vadd.xlane.f32.xlu0 %v1275
    %v1277 = vpop.xlane.xlu0 %1276
    %v1278 = vsel %vm87, %v1272, 0.0
    %1279 = vadd.xlane.f32.xlu0 %v1278
    %v1280 = vpop.xlane.xlu0 %1279
    %v1281 = vmul.f32 %v1277, %v136
    %v1282 = vmul.f32 %v1280, %v136
    %v1283 = vadd.f32 %v1281, 1e-05
    %v1284 = vadd.f32 %v1282, 1e-05
    %v1285 = vrsqrt.pop %v1283
    %v1286 = vrsqrt.pop %v1284
    %v1287 = vmul.f32 %v1263, %v1285
    %v1288 = vmul.f32 %v1264, %v1286
    %v1289 = vlaneseq
    %v1290 = vshrl.u32 %v1289, 7
    %v1291 = vsub.s32 0, %v1290
    %v1292 = vrot.slane %v36, %v1291
    %1294 = vrot.lane.b32.xlu0 %v1292, 32
    %v1295 = vpop.permute.xlu0 %1294
    %v1297 = vmul.f32 %v1287, %v1295
    %v1298 = vmul.f32 %v1288, %v1295
    %v1299 = vlaneseq
    %v1300 = vshrl.u32 %v1299, 7
    %v1301 = vsub.s32 0, %v1300
    %v1302 = vrot.slane %v37, %v1301
    %1304 = vrot.lane.b32.xlu0 %v1302, 32
    %v1305 = vpop.permute.xlu0 %1304
    %v1307 = vadd.f32 %v1297, %v1305
    %v1308 = vadd.f32 %v1298, %v1305
    %v1309 = vlaneseq
    %v1310 = vshrl.u32 %v1309, 7
    %v1311 = vsub.s32 0, %v1310
    %v1312 = vrot.slane %v41, %v1311
    %1315 = vrot.lane.b32.xlu0 %v1307, 96
    %v1316 = vpop.permute.xlu0 %1315
    %1317 = vrot.lane.b32.xlu0 %v1308, 96
    %v1318 = vpop.permute.xlu0 %1317
    %v1319 = vsel %vm87, %v1316, 0
    %v1321 = vsel %vm87, %v1318, 0
    %1323 = vmatprep.subr.mxu0 0.0
    %1324 = vmatpush1.msra.mxu0 %v51
    %1325 = vmatprep.subr.mxu0 0.0
    %1326 = vmatpush1.msra.mxu0 %v52
    %1327 = vmatprep.subr.mxu0 0.0
    %1328 = vmatpush1.msra.mxu0 %v53
    %1329 = vmatprep.subr.mxu0 0.0
    %1330 = vmatpush1.msra.mxu0 %v54
    %1331 = vmatprep.subr.mxu0 0.0
    %1332 = vmatpush1.msra.mxu0 0.0
    %1333 = vmatprep.subr.mxu0 0.0
    %1334 = vmatpush1.msra.mxu0 0.0
    %1335 = vmatprep.subr.mxu0 0.0
    %1336 = vmatpush1.msra.mxu0 0.0
    %1337 = vmatprep.subr.mxu0 0.0
    %1338 = vmatpush1.msra.mxu0 0.0
    %1339 = vmatprep.subr.mxu0 0.0
    %1340 = vmatpush1.msra.mxu0 0.0
    %1341 = vmatprep.subr.mxu0 0.0
    %1342 = vmatpush1.msra.mxu0 0.0
    %1343 = vmatprep.subr.mxu0 0.0
    %1344 = vmatpush1.msra.mxu0 0.0
    %1345 = vmatprep.subr.mxu0 0.0
    %1346 = vmatpush1.msra.mxu0 0.0
    %1347 = vmatprep.subr.mxu0 0.0
    %1348 = vmatpush1.msra.mxu0 0.0
    %1349 = vmatprep.subr.mxu0 0.0
    %1350 = vmatpush1.msra.mxu0 0.0
    %1351 = vmatprep.subr.mxu0 0.0
    %1352 = vmatpush1.msra.mxu0 0.0
    %1353 = vmatprep.subr.mxu0 0.0
    %1354 = vmatpush1.msra.mxu0 0.0
    %1355 = vmatprep.subr.mxu0 0.0
    %1356 = vmatpush1.msra.mxu0 0.0
    %1357 = vmatprep.subr.mxu0 0.0
    %1358 = vmatpush1.msra.mxu0 0.0
    %1359 = vmatprep.subr.mxu0 0.0
    %1360 = vmatpush1.msra.mxu0 0.0
    %1361 = vmatprep.subr.mxu0 0.0
    %1362 = vmatpush1.msra.mxu0 0.0
    %1363 = vmatprep.subr.mxu0 0.0
    %1364 = vmatpush1.msra.mxu0 0.0
    %1365 = vmatprep.subr.mxu0 0.0
    %1366 = vmatpush1.msra.mxu0 0.0
    %1367 = vmatprep.subr.mxu0 0.0
    %1368 = vmatpush1.msra.mxu0 0.0
    %1369 = vmatprep.subr.mxu0 0.0
    %1370 = vmatpush1.msra.mxu0 0.0
    %1371 = vmatprep.subr.mxu0 0.0
    %1372 = vmatpush1.msra.mxu0 0.0
    %1373 = vmatprep.subr.mxu0 0.0
    %1374 = vmatpush1.msra.mxu0 0.0
    %1375 = vmatprep.subr.mxu0 0.0
    %1376 = vmatpush1.msra.mxu0 0.0
    %1377 = vmatprep.subr.mxu0 0.0
    %1378 = vmatpush1.msra.mxu0 0.0
    %1379 = vmatprep.subr.mxu0 0.0
    %1380 = vmatpush1.msra.mxu0 0.0
    %1381 = vmatprep.subr.mxu0 0.0
    %1382 = vmatpush1.msra.mxu0 0.0
    %1383 = vmatprep.subr.mxu0 0.0
    %1384 = vmatpush1.msra.mxu0 0.0
    %1385 = vmatprep.subr.mxu0 0.0
    %1386 = vmatpush1.msra.mxu0 0.0
    %1387 = vmatprep.mubr.f32.mxu0 0.0
    %1388 = vmatmul.mubr.f32.gmra.mrb[0].mxu0 %v1319
    %v1389 = vpop.f32.mrb[0].mxu0
    %v1390 = vadd.f32 %v1312, %v1389
    %v1391 = vpop.f32.mrb[0].mxu0
    %1392 = vmatprep.mubr.f32.mxu0 0.0
    %1393 = vmatmul.mubr.f32.gmra.mrb[0].mxu0 %v1321
    %v1394 = vpop.f32.mrb[0].mxu0
    %v1395 = vadd.f32 %v1312, %v1394
    %v1396 = vpop.f32.mrb[0].mxu0
    %1397 = vdwg.mxu0
    %v1398 = vmax.f32 %v1390, 0.0
    %v1399 = vmax.f32 %v1395, 0.0
    %v1401 = vsel %vm857, %v1398, 0
    %v1404 = vsel %vm857, %v1399, 0
    %1406 = vmatprep.subr.mxu0 0.0
    %1407 = vmatpush1.msra.mxu0 %v55
    %1408 = vmatprep.subr.mxu0 0.0
    %1409 = vmatpush1.msra.mxu0 %v56
    %1410 = vmatprep.subr.mxu0 0.0
    %1411 = vmatpush1.msra.mxu0 %v57
    %1412 = vmatprep.subr.mxu0 0.0
    %1413 = vmatpush1.msra.mxu0 %v58
    %1414 = vmatprep.subr.mxu0 0.0
    %1415 = vmatpush1.msra.mxu0 %v59
    %1416 = vmatprep.subr.mxu0 0.0
    %1417 = vmatpush1.msra.mxu0 %v60
    %1418 = vmatprep.subr.mxu0 0.0
    %1419 = vmatpush1.msra.mxu0 %v61
    %1420 = vmatprep.subr.mxu0 0.0
    %1421 = vmatpush1.msra.mxu0 %v62
    %1422 = vmatprep.subr.mxu0 0.0
    %1423 = vmatpush1.msra.mxu0 0.0
    %1424 = vmatprep.subr.mxu0 0.0
    %1425 = vmatpush1.msra.mxu0 0.0
    %1426 = vmatprep.subr.mxu0 0.0
    %1427 = vmatpush1.msra.mxu0 0.0
    %1428 = vmatprep.subr.mxu0 0.0
    %1429 = vmatpush1.msra.mxu0 0.0
    %1430 = vmatprep.subr.mxu0 0.0
    %1431 = vmatpush1.msra.mxu0 0.0
    %1432 = vmatprep.subr.mxu0 0.0
    %1433 = vmatpush1.msra.mxu0 0.0
    %1434 = vmatprep.subr.mxu0 0.0
    %1435 = vmatpush1.msra.mxu0 0.0
    %1436 = vmatprep.subr.mxu0 0.0
    %1437 = vmatpush1.msra.mxu0 0.0
    %1438 = vmatprep.subr.mxu0 0.0
    %1439 = vmatpush1.msra.mxu0 0.0
    %1440 = vmatprep.subr.mxu0 0.0
    %1441 = vmatpush1.msra.mxu0 0.0
    %1442 = vmatprep.subr.mxu0 0.0
    %1443 = vmatpush1.msra.mxu0 0.0
    %1444 = vmatprep.subr.mxu0 0.0
    %1445 = vmatpush1.msra.mxu0 0.0
    %1446 = vmatprep.subr.mxu0 0.0
    %1447 = vmatpush1.msra.mxu0 0.0
    %1448 = vmatprep.subr.mxu0 0.0
    %1449 = vmatpush1.msra.mxu0 0.0
    %1450 = vmatprep.subr.mxu0 0.0
    %1451 = vmatpush1.msra.mxu0 0.0
    %1452 = vmatprep.subr.mxu0 0.0
    %1453 = vmatpush1.msra.mxu0 0.0
    %1454 = vmatprep.subr.mxu0 0.0
    %1455 = vmatpush1.msra.mxu0 0.0
    %1456 = vmatprep.subr.mxu0 0.0
    %1457 = vmatpush1.msra.mxu0 0.0
    %1458 = vmatprep.subr.mxu0 0.0
    %1459 = vmatpush1.msra.mxu0 0.0
    %1460 = vmatprep.subr.mxu0 0.0
    %1461 = vmatpush1.msra.mxu0 0.0
    %1462 = vmatprep.subr.mxu0 0.0
    %1463 = vmatpush1.msra.mxu0 0.0
    %1464 = vmatprep.subr.mxu0 0.0
    %1465 = vmatpush1.msra.mxu0 0.0
    %1466 = vmatprep.subr.mxu0 0.0
    %1467 = vmatpush1.msra.mxu0 0.0
    %1468 = vmatprep.subr.mxu0 0.0
    %1469 = vmatpush1.msra.mxu0 0.0
    %1470 = vmatprep.mubr.f32.mxu0 0.0
    %1471 = vmatmul.mubr.f32.gmra.mrb[0].mxu0 %v1401
    %v1472 = vpop.f32.mrb[0].mxu0
    %v1473 = vadd.f32 0.0, %v1472
    %v1474 = vpop.f32.mrb[0].mxu0
    %1475 = vmatprep.mubr.f32.mxu0 0.0
    %1476 = vmatmul.mubr.f32.gmra.mrb[0].mxu0 %v1404
    %v1477 = vpop.f32.mrb[0].mxu0
    %v1478 = vadd.f32 0.0, %v1477
    %v1479 = vpop.f32.mrb[0].mxu0
    %1480 = vdwg.mxu0
    %1483 = vrot.lane.b32.xlu0 %v1473, 32
    %v1484 = vpop.permute.xlu0 %1483
    %1485 = vrot.lane.b32.xlu0 %v1478, 32
    %v1486 = vpop.permute.xlu0 %1485
    %v1489 = vadd.f32 %v1245, %v1484
    %v1490 = vadd.f32 %v1246, %v1486
    %v1491 = vlaneseq
    %v1492 = vshrl.u32 %v1491, 7
    %v1493 = vsub.s32 0, %v1492
    %v1494 = vrot.slane %v42, %v1493
    %1496 = vrot.lane.b32.xlu0 %v1494, 32
    %v1497 = vpop.permute.xlu0 %1496
    %v1499 = vadd.f32 %v1489, %v1497
    %v1500 = vadd.f32 %v1490, %v1497
    %1503 = vrot.lane.b32.xlu0 %v1499, 96
    %v1504 = vpop.permute.xlu0 %1503
    %1505 = vrot.lane.b32.xlu0 %v1500, 96
    %v1506 = vpop.permute.xlu0 %1505
    %v1509 = vsel %vm87, %v1504, 0.0
    %1510 = vadd.xlane.f32.xlu0 %v1509
    %v1511 = vpop.xlane.xlu0 %1510
    %v1512 = vsel %vm87, %v1506, 0.0
    %1513 = vadd.xlane.f32.xlu0 %v1512
    %v1514 = vpop.xlane.xlu0 %1513
    %v1515 = vmul.f32 %v1511, %v136
    %v1516 = vmul.f32 %v1514, %v136
    %v1517 = vsub.f32 %v1499, %v1515
    %v1518 = vsub.f32 %v1500, %v1516
    %v1519 = vmul.f32 %v1517, %v1517
    %v1520 = vmul.f32 %v1518, %v1518
    %1523 = vrot.lane.b32.xlu0 %v1519, 96
    %v1524 = vpop.permute.xlu0 %1523
    %1525 = vrot.lane.b32.xlu0 %v1520, 96
    %v1526 = vpop.permute.xlu0 %1525
    %v1529 = vsel %vm87, %v1524, 0.0
    %1530 = vadd.xlane.f32.xlu0 %v1529
    %v1531 = vpop.xlane.xlu0 %1530
    %v1532 = vsel %vm87, %v1526, 0.0
    %1533 = vadd.xlane.f32.xlu0 %v1532
    %v1534 = vpop.xlane.xlu0 %1533
    %v1535 = vmul.f32 %v1531, %v136
    %v1536 = vmul.f32 %v1534, %v136
    %v1537 = vadd.f32 %v1535, 1e-05
    %v1538 = vadd.f32 %v1536, 1e-05
    %v1539 = vrsqrt.pop %v1537
    %v1540 = vrsqrt.pop %v1538
    %v1541 = vmul.f32 %v1517, %v1539
    %v1542 = vmul.f32 %v1518, %v1540
    %1544 = vrot.lane.b32.xlu0 %v573, 32
    %v1545 = vpop.permute.xlu0 %1544
    %v1547 = vmul.f32 %v1541, %v1545
    %v1548 = vmul.f32 %v1542, %v1545
    %1550 = vrot.lane.b32.xlu0 %v579, 32
    %v1551 = vpop.permute.xlu0 %1550
    %v1553 = vadd.f32 %v1547, %v1551
    %v1554 = vadd.f32 %v1548, %v1551
    %1557 = vrot.lane.b32.xlu0 %v1553, 96
    %v1558 = vpop.permute.xlu0 %1557
    %1559 = vrot.lane.b32.xlu0 %v1554, 96
    %v1560 = vpop.permute.xlu0 %1559
    %v1561 = vsel %vm87, %v1558, 0
    %v1563 = vsel %vm87, %v1560, 0
    %1565 = vmatprep.subr.mxu0 0.0
    %1566 = vmatpush1.msra.mxu0 %v43
    %1567 = vmatprep.subr.mxu0 0.0
    %1568 = vmatpush1.msra.mxu0 %v44
    %1569 = vmatprep.subr.mxu0 0.0
    %1570 = vmatpush1.msra.mxu0 %v45
    %1571 = vmatprep.subr.mxu0 0.0
    %1572 = vmatpush1.msra.mxu0 %v46
    %1573 = vmatprep.subr.mxu0 0.0
    %1574 = vmatpush1.msra.mxu0 0.0
    %1575 = vmatprep.subr.mxu0 0.0
    %1576 = vmatpush1.msra.mxu0 0.0
    %1577 = vmatprep.subr.mxu0 0.0
    %1578 = vmatpush1.msra.mxu0 0.0
    %1579 = vmatprep.subr.mxu0 0.0
    %1580 = vmatpush1.msra.mxu0 0.0
    %1581 = vmatprep.subr.mxu0 0.0
    %1582 = vmatpush1.msra.mxu0 0.0
    %1583 = vmatprep.subr.mxu0 0.0
    %1584 = vmatpush1.msra.mxu0 0.0
    %1585 = vmatprep.subr.mxu0 0.0
    %1586 = vmatpush1.msra.mxu0 0.0
    %1587 = vmatprep.subr.mxu0 0.0
    %1588 = vmatpush1.msra.mxu0 0.0
    %1589 = vmatprep.subr.mxu0 0.0
    %1590 = vmatpush1.msra.mxu0 0.0
    %1591 = vmatprep.subr.mxu0 0.0
    %1592 = vmatpush1.msra.mxu0 0.0
    %1593 = vmatprep.subr.mxu0 0.0
    %1594 = vmatpush1.msra.mxu0 0.0
    %1595 = vmatprep.subr.mxu0 0.0
    %1596 = vmatpush1.msra.mxu0 0.0
    %1597 = vmatprep.subr.mxu0 0.0
    %1598 = vmatpush1.msra.mxu0 0.0
    %1599 = vmatprep.subr.mxu0 0.0
    %1600 = vmatpush1.msra.mxu0 0.0
    %1601 = vmatprep.subr.mxu0 0.0
    %1602 = vmatpush1.msra.mxu0 0.0
    %1603 = vmatprep.subr.mxu0 0.0
    %1604 = vmatpush1.msra.mxu0 0.0
    %1605 = vmatprep.subr.mxu0 0.0
    %1606 = vmatpush1.msra.mxu0 0.0
    %1607 = vmatprep.subr.mxu0 0.0
    %1608 = vmatpush1.msra.mxu0 0.0
    %1609 = vmatprep.subr.mxu0 0.0
    %1610 = vmatpush1.msra.mxu0 0.0
    %1611 = vmatprep.subr.mxu0 0.0
    %1612 = vmatpush1.msra.mxu0 0.0
    %1613 = vmatprep.subr.mxu0 0.0
    %1614 = vmatpush1.msra.mxu0 0.0
    %1615 = vmatprep.subr.mxu0 0.0
    %1616 = vmatpush1.msra.mxu0 0.0
    %1617 = vmatprep.subr.mxu0 0.0
    %1618 = vmatpush1.msra.mxu0 0.0
    %1619 = vmatprep.subr.mxu0 0.0
    %1620 = vmatpush1.msra.mxu0 0.0
    %1621 = vmatprep.subr.mxu0 0.0
    %1622 = vmatpush1.msra.mxu0 0.0
    %1623 = vmatprep.subr.mxu0 0.0
    %1624 = vmatpush1.msra.mxu0 0.0
    %1625 = vmatprep.subr.mxu0 0.0
    %1626 = vmatpush1.msra.mxu0 0.0
    %1627 = vmatprep.subr.mxu0 0.0
    %1628 = vmatpush1.msra.mxu0 0.0
    %1629 = vmatprep.mubr.f32.mxu0 0.0
    %1630 = vmatmul.mubr.f32.gmra.mrb[0].mxu0 %v1561
    %v1631 = vpop.f32.mrb[0].mxu0
    %v1632 = vadd.f32 0.0, %v1631
    %v1633 = vpop.f32.mrb[0].mxu0
    %1634 = vmatprep.mubr.f32.mxu0 0.0
    %1635 = vmatmul.mubr.f32.gmra.mrb[0].mxu0 %v1563
    %v1636 = vpop.f32.mrb[0].mxu0
    %v1637 = vadd.f32 0.0, %v1636
    %v1638 = vpop.f32.mrb[0].mxu0
    %1639 = vdwg.mxu0
    %v1641 = vsel %vm87, %v1632, 0
    %1643 = vmatprep.subr.mxu0 0.0
    %1644 = vmatpush1.xpose.msra.mxu0 %v667
    %1645 = vmatprep.subr.mxu0 0.0
    %1646 = vmatpush1.xpose.msra.mxu0 %v670
    %1647 = vmatprep.subr.mxu0 0.0
    %1648 = vmatpush1.xpose.msra.mxu0 %v673
    %1649 = vmatprep.subr.mxu0 0.0
    %1650 = vmatpush1.xpose.msra.mxu0 %v676
    %1651 = vmatprep.subr.mxu0 0.0
    %1652 = vmatpush1.xpose.msra.mxu0 %v679
    %1653 = vmatprep.subr.mxu0 0.0
    %1654 = vmatpush1.xpose.msra.mxu0 %v682
    %1655 = vmatprep.subr.mxu0 0.0
    %1656 = vmatpush1.xpose.msra.mxu0 %v685
    %1657 = vmatprep.subr.mxu0 0.0
    %1658 = vmatpush1.xpose.msra.mxu0 %v688
    %1659 = vmatprep.subr.mxu0 0.0
    %1660 = vmatpush1.xpose.msra.mxu0 0.0
    %1661 = vmatprep.subr.mxu0 0.0
    %1662 = vmatpush1.xpose.msra.mxu0 0.0
    %1663 = vmatprep.subr.mxu0 0.0
    %1664 = vmatpush1.xpose.msra.mxu0 0.0
    %1665 = vmatprep.subr.mxu0 0.0
    %1666 = vmatpush1.xpose.msra.mxu0 0.0
    %1667 = vmatprep.subr.mxu0 0.0
    %1668 = vmatpush1.xpose.msra.mxu0 0.0
    %1669 = vmatprep.subr.mxu0 0.0
    %1670 = vmatpush1.xpose.msra.mxu0 0.0
    %1671 = vmatprep.subr.mxu0 0.0
    %1672 = vmatpush1.xpose.msra.mxu0 0.0
    %1673 = vmatprep.subr.mxu0 0.0
    %1674 = vmatpush1.xpose.msra.mxu0 0.0
    %1675 = vmatprep.subr.mxu0 0.0
    %1676 = vmatpush1.xpose.msra.mxu0 0.0
    %1677 = vmatprep.subr.mxu0 0.0
    %1678 = vmatpush1.xpose.msra.mxu0 0.0
    %1679 = vmatprep.subr.mxu0 0.0
    %1680 = vmatpush1.xpose.msra.mxu0 0.0
    %1681 = vmatprep.subr.mxu0 0.0
    %1682 = vmatpush1.xpose.msra.mxu0 0.0
    %1683 = vmatprep.subr.mxu0 0.0
    %1684 = vmatpush1.xpose.msra.mxu0 0.0
    %1685 = vmatprep.subr.mxu0 0.0
    %1686 = vmatpush1.xpose.msra.mxu0 0.0
    %1687 = vmatprep.subr.mxu0 0.0
    %1688 = vmatpush1.xpose.msra.mxu0 0.0
    %1689 = vmatprep.subr.mxu0 0.0
    %1690 = vmatpush1.xpose.msra.mxu0 0.0
    %1691 = vmatprep.subr.mxu0 0.0
    %1692 = vmatpush1.xpose.msra.mxu0 0.0
    %1693 = vmatprep.subr.mxu0 0.0
    %1694 = vmatpush1.xpose.msra.mxu0 0.0
    %1695 = vmatprep.subr.mxu0 0.0
    %1696 = vmatpush1.xpose.msra.mxu0 0.0
    %1697 = vmatprep.subr.mxu0 0.0
    %1698 = vmatpush1.xpose.msra.mxu0 0.0
    %1699 = vmatprep.subr.mxu0 0.0
    %1700 = vmatpush1.xpose.msra.mxu0 0.0
    %1701 = vmatprep.subr.mxu0 0.0
    %1702 = vmatpush1.xpose.msra.mxu0 0.0
    %1703 = vmatprep.subr.mxu0 0.0
    %1704 = vmatpush1.xpose.msra.mxu0 0.0
    %1705 = vmatprep.subr.mxu0 0.0
    %1706 = vmatpush1.xpose.msra.mxu0 0.0
    %1707 = vmatprep.mubr.f32.mxu0 0.0
    %1708 = vmatmul.mubr.f32.gmra.mrb[0].mxu0 %v1641
    %v1709 = vpop.f32.mrb[0].mxu0
    %v1710 = vadd.f32 0.0, %v1709
    %v1711 = vpop.f32.mrb[0].mxu0
    %1712 = vdwg.mxu0
    %v1714 = vsel %vm87, %v1637, 0
    %1716 = vmatprep.subr.mxu0 0.0
    %1717 = vmatpush1.xpose.msra.mxu0 %v764
    %1718 = vmatprep.subr.mxu0 0.0
    %1719 = vmatpush1.xpose.msra.mxu0 %v767
    %1720 = vmatprep.subr.mxu0 0.0
    %1721 = vmatpush1.xpose.msra.mxu0 %v770
    %1722 = vmatprep.subr.mxu0 0.0
    %1723 = vmatpush1.xpose.msra.mxu0 %v773
    %1724 = vmatprep.subr.mxu0 0.0
    %1725 = vmatpush1.xpose.msra.mxu0 %v776
    %1726 = vmatprep.subr.mxu0 0.0
    %1727 = vmatpush1.xpose.msra.mxu0 %v779
    %1728 = vmatprep.subr.mxu0 0.0
    %1729 = vmatpush1.xpose.msra.mxu0 %v782
    %1730 = vmatprep.subr.mxu0 0.0
    %1731 = vmatpush1.xpose.msra.mxu0 %v785
    %1732 = vmatprep.subr.mxu0 0.0
    %1733 = vmatpush1.xpose.msra.mxu0 0.0
    %1734 = vmatprep.subr.mxu0 0.0
    %1735 = vmatpush1.xpose.msra.mxu0 0.0
    %1736 = vmatprep.subr.mxu0 0.0
    %1737 = vmatpush1.xpose.msra.mxu0 0.0
    %1738 = vmatprep.subr.mxu0 0.0
    %1739 = vmatpush1.xpose.msra.mxu0 0.0
    %1740 = vmatprep.subr.mxu0 0.0
    %1741 = vmatpush1.xpose.msra.mxu0 0.0
    %1742 = vmatprep.subr.mxu0 0.0
    %1743 = vmatpush1.xpose.msra.mxu0 0.0
    %1744 = vmatprep.subr.mxu0 0.0
    %1745 = vmatpush1.xpose.msra.mxu0 0.0
    %1746 = vmatprep.subr.mxu0 0.0
    %1747 = vmatpush1.xpose.msra.mxu0 0.0
    %1748 = vmatprep.subr.mxu0 0.0
    %1749 = vmatpush1.xpose.msra.mxu0 0.0
    %1750 = vmatprep.subr.mxu0 0.0
    %1751 = vmatpush1.xpose.msra.mxu0 0.0
    %1752 = vmatprep.subr.mxu0 0.0
    %1753 = vmatpush1.xpose.msra.mxu0 0.0
    %1754 = vmatprep.subr.mxu0 0.0
    %1755 = vmatpush1.xpose.msra.mxu0 0.0
    %1756 = vmatprep.subr.mxu0 0.0
    %1757 = vmatpush1.xpose.msra.mxu0 0.0
    %1758 = vmatprep.subr.mxu0 0.0
    %1759 = vmatpush1.xpose.msra.mxu0 0.0
    %1760 = vmatprep.subr.mxu0 0.0
    %1761 = vmatpush1.xpose.msra.mxu0 0.0
    %1762 = vmatprep.subr.mxu0 0.0
    %1763 = vmatpush1.xpose.msra.mxu0 0.0
    %1764 = vmatprep.subr.mxu0 0.0
    %1765 = vmatpush1.xpose.msra.mxu0 0.0
    %1766 = vmatprep.subr.mxu0 0.0
    %1767 = vmatpush1.xpose.msra.mxu0 0.0
    %1768 = vmatprep.subr.mxu0 0.0
    %1769 = vmatpush1.xpose.msra.mxu0 0.0
    %1770 = vmatprep.subr.mxu0 0.0
    %1771 = vmatpush1.xpose.msra.mxu0 0.0
    %1772 = vmatprep.subr.mxu0 0.0
    %1773 = vmatpush1.xpose.msra.mxu0 0.0
    %1774 = vmatprep.subr.mxu0 0.0
    %1775 = vmatpush1.xpose.msra.mxu0 0.0
    %1776 = vmatprep.subr.mxu0 0.0
    %1777 = vmatpush1.xpose.msra.mxu0 0.0
    %1778 = vmatprep.subr.mxu0 0.0
    %1779 = vmatpush1.xpose.msra.mxu0 0.0
    %1780 = vmatprep.mubr.f32.mxu0 0.0
    %1781 = vmatmul.mubr.f32.gmra.mrb[0].mxu0 %v1714
    %v1782 = vpop.f32.mrb[0].mxu0
    %v1783 = vadd.f32 0.0, %v1782
    %v1784 = vpop.f32.mrb[0].mxu0
    %1785 = vdwg.mxu0
    %v1786 = vsel %vm857, %v1710, -inf
    %v1787 = vrot.slane %v1786, 4
    %v1788 = vmax.f32 %v1786, %v1787
    %v1789 = vrot.slane %v1788, 2
    %v1790 = vmax.f32 %v1788, %v1789
    %v1791 = vrot.slane %v1790, 1
    %v1792 = vmax.f32 %v1790, %v1791
    %v1793 = vsel %vm857, %v1783, -inf
    %v1794 = vrot.slane %v1793, 4
    %v1795 = vmax.f32 %v1793, %v1794
    %v1796 = vrot.slane %v1795, 2
    %v1797 = vmax.f32 %v1795, %v1796
    %v1798 = vrot.slane %v1797, 1
    %v1799 = vmax.f32 %v1797, %v1798
    %v1800 = vsub.f32 %v1710, %v1792
    %v1801 = vsub.f32 %v1783, %v1799
    %v1802 = vmul.f32 %v1800, 1.442695
    %v1803 = vpow.pop %v1802
    %v1804 = vmul.f32 %v1801, 1.442695
    %v1805 = vpow.pop %v1804
    %v1806 = vsel %vm857, %v1803, 0.0
    %v1807 = vrot.slane %v1806, 4
    %v1808 = vadd.f32 %v1806, %v1807
    %v1809 = vrot.slane %v1808, 2
    %v1810 = vadd.f32 %v1808, %v1809
    %v1811 = vrot.slane %v1810, 1
    %v1812 = vadd.f32 %v1810, %v1811
    %v1813 = vsel %vm857, %v1805, 0.0
    %v1814 = vrot.slane %v1813, 4
    %v1815 = vadd.f32 %v1813, %v1814
    %v1816 = vrot.slane %v1815, 2
    %v1817 = vadd.f32 %v1815, %v1816
    %v1818 = vrot.slane %v1817, 1
    %v1819 = vadd.f32 %v1817, %v1818
    %v1820 = vrcp.pop %v1812
    %v1821 = vrcp.pop %v1819
    %v1822 = vmul.f32 %v1803, %v1820
    %v1823 = vmul.f32 %v1805, %v1821
    %v1824 = vadd.f32 %v1822, 1e-08
    %v1825 = vadd.f32 %v1823, 1e-08
    %v1826 = vsel %vm857, %v1824, 0.0
    %1827 = vadd.xlane.f32.xlu0 %v1826
    %v1828 = vpop.xlane.xlu0 %1827
    %v1829 = vsel %vm857, %v1825, 0.0
    %1830 = vadd.xlane.f32.xlu0 %v1829
    %v1831 = vpop.xlane.xlu0 %1830
    %v1832 = vrcp.pop %v1828
    %v1833 = vrcp.pop %v1831
    %v1834 = vmul.f32 %v1824, %v1832
    %v1835 = vmul.f32 %v1825, %v1833
    %v1837 = vsel %vm857, %v1834, 0
    %1839 = vmatprep.subr.mxu0 0.0
    %1840 = vmatpush1.msra.mxu0 %v909
    %1841 = vmatprep.subr.mxu0 0.0
    %1842 = vmatpush1.msra.mxu0 %v911
    %1843 = vmatprep.subr.mxu0 0.0
    %1844 = vmatpush1.msra.mxu0 %v913
    %1845 = vmatprep.subr.mxu0 0.0
    %1846 = vmatpush1.msra.mxu0 %v915
    %1847 = vmatprep.subr.mxu0 0.0
    %1848 = vmatpush1.msra.mxu0 %v917
    %1849 = vmatprep.subr.mxu0 0.0
    %1850 = vmatpush1.msra.mxu0 %v919
    %1851 = vmatprep.subr.mxu0 0.0
    %1852 = vmatpush1.msra.mxu0 %v921
    %1853 = vmatprep.subr.mxu0 0.0
    %1854 = vmatpush1.msra.mxu0 %v923
    %1855 = vmatprep.subr.mxu0 0.0
    %1856 = vmatpush1.msra.mxu0 0.0
    %1857 = vmatprep.subr.mxu0 0.0
    %1858 = vmatpush1.msra.mxu0 0.0
    %1859 = vmatprep.subr.mxu0 0.0
    %1860 = vmatpush1.msra.mxu0 0.0
    %1861 = vmatprep.subr.mxu0 0.0
    %1862 = vmatpush1.msra.mxu0 0.0
    %1863 = vmatprep.subr.mxu0 0.0
    %1864 = vmatpush1.msra.mxu0 0.0
    %1865 = vmatprep.subr.mxu0 0.0
    %1866 = vmatpush1.msra.mxu0 0.0
    %1867 = vmatprep.subr.mxu0 0.0
    %1868 = vmatpush1.msra.mxu0 0.0
    %1869 = vmatprep.subr.mxu0 0.0
    %1870 = vmatpush1.msra.mxu0 0.0
    %1871 = vmatprep.subr.mxu0 0.0
    %1872 = vmatpush1.msra.mxu0 0.0
    %1873 = vmatprep.subr.mxu0 0.0
    %1874 = vmatpush1.msra.mxu0 0.0
    %1875 = vmatprep.subr.mxu0 0.0
    %1876 = vmatpush1.msra.mxu0 0.0
    %1877 = vmatprep.subr.mxu0 0.0
    %1878 = vmatpush1.msra.mxu0 0.0
    %1879 = vmatprep.subr.mxu0 0.0
    %1880 = vmatpush1.msra.mxu0 0.0
    %1881 = vmatprep.subr.mxu0 0.0
    %1882 = vmatpush1.msra.mxu0 0.0
    %1883 = vmatprep.subr.mxu0 0.0
    %1884 = vmatpush1.msra.mxu0 0.0
    %1885 = vmatprep.subr.mxu0 0.0
    %1886 = vmatpush1.msra.mxu0 0.0
    %1887 = vmatprep.subr.mxu0 0.0
    %1888 = vmatpush1.msra.mxu0 0.0
    %1889 = vmatprep.subr.mxu0 0.0
    %1890 = vmatpush1.msra.mxu0 0.0
    %1891 = vmatprep.subr.mxu0 0.0
    %1892 = vmatpush1.msra.mxu0 0.0
    %1893 = vmatprep.subr.mxu0 0.0
    %1894 = vmatpush1.msra.mxu0 0.0
    %1895 = vmatprep.subr.mxu0 0.0
    %1896 = vmatpush1.msra.mxu0 0.0
    %1897 = vmatprep.subr.mxu0 0.0
    %1898 = vmatpush1.msra.mxu0 0.0
    %1899 = vmatprep.subr.mxu0 0.0
    %1900 = vmatpush1.msra.mxu0 0.0
    %1901 = vmatprep.subr.mxu0 0.0
    %1902 = vmatpush1.msra.mxu0 0.0
    %1903 = vmatprep.mubr.f32.mxu0 0.0
    %1904 = vmatmul.mubr.f32.gmra.mrb[0].mxu0 %v1837
    %v1905 = vpop.f32.mrb[0].mxu0
    %v1906 = vadd.f32 0.0, %v1905
    %v1907 = vpop.f32.mrb[0].mxu0
    %1908 = vdwg.mxu0
    %v1910 = vsel %vm857, %v1835, 0
    %1912 = vmatprep.subr.mxu0 0.0
    %1913 = vmatpush1.msra.mxu0 %v1006
    %1914 = vmatprep.subr.mxu0 0.0
    %1915 = vmatpush1.msra.mxu0 %v1008
    %1916 = vmatprep.subr.mxu0 0.0
    %1917 = vmatpush1.msra.mxu0 %v1010
    %1918 = vmatprep.subr.mxu0 0.0
    %1919 = vmatpush1.msra.mxu0 %v1012
    %1920 = vmatprep.subr.mxu0 0.0
    %1921 = vmatpush1.msra.mxu0 %v1014
    %1922 = vmatprep.subr.mxu0 0.0
    %1923 = vmatpush1.msra.mxu0 %v1016
    %1924 = vmatprep.subr.mxu0 0.0
    %1925 = vmatpush1.msra.mxu0 %v1018
    %1926 = vmatprep.subr.mxu0 0.0
    %1927 = vmatpush1.msra.mxu0 %v1020
    %1928 = vmatprep.subr.mxu0 0.0
    %1929 = vmatpush1.msra.mxu0 0.0
    %1930 = vmatprep.subr.mxu0 0.0
    %1931 = vmatpush1.msra.mxu0 0.0
    %1932 = vmatprep.subr.mxu0 0.0
    %1933 = vmatpush1.msra.mxu0 0.0
    %1934 = vmatprep.subr.mxu0 0.0
    %1935 = vmatpush1.msra.mxu0 0.0
    %1936 = vmatprep.subr.mxu0 0.0
    %1937 = vmatpush1.msra.mxu0 0.0
    %1938 = vmatprep.subr.mxu0 0.0
    %1939 = vmatpush1.msra.mxu0 0.0
    %1940 = vmatprep.subr.mxu0 0.0
    %1941 = vmatpush1.msra.mxu0 0.0
    %1942 = vmatprep.subr.mxu0 0.0
    %1943 = vmatpush1.msra.mxu0 0.0
    %1944 = vmatprep.subr.mxu0 0.0
    %1945 = vmatpush1.msra.mxu0 0.0
    %1946 = vmatprep.subr.mxu0 0.0
    %1947 = vmatpush1.msra.mxu0 0.0
    %1948 = vmatprep.subr.mxu0 0.0
    %1949 = vmatpush1.msra.mxu0 0.0
    %1950 = vmatprep.subr.mxu0 0.0
    %1951 = vmatpush1.msra.mxu0 0.0
    %1952 = vmatprep.subr.mxu0 0.0
    %1953 = vmatpush1.msra.mxu0 0.0
    %1954 = vmatprep.subr.mxu0 0.0
    %1955 = vmatpush1.msra.mxu0 0.0
    %1956 = vmatprep.subr.mxu0 0.0
    %1957 = vmatpush1.msra.mxu0 0.0
    %1958 = vmatprep.subr.mxu0 0.0
    %1959 = vmatpush1.msra.mxu0 0.0
    %1960 = vmatprep.subr.mxu0 0.0
    %1961 = vmatpush1.msra.mxu0 0.0
    %1962 = vmatprep.subr.mxu0 0.0
    %1963 = vmatpush1.msra.mxu0 0.0
    %1964 = vmatprep.subr.mxu0 0.0
    %1965 = vmatpush1.msra.mxu0 0.0
    %1966 = vmatprep.subr.mxu0 0.0
    %1967 = vmatpush1.msra.mxu0 0.0
    %1968 = vmatprep.subr.mxu0 0.0
    %1969 = vmatpush1.msra.mxu0 0.0
    %1970 = vmatprep.subr.mxu0 0.0
    %1971 = vmatpush1.msra.mxu0 0.0
    %1972 = vmatprep.subr.mxu0 0.0
    %1973 = vmatpush1.msra.mxu0 0.0
    %1974 = vmatprep.subr.mxu0 0.0
    %1975 = vmatpush1.msra.mxu0 0.0
    %1976 = vmatprep.mubr.f32.mxu0 0.0
    %1977 = vmatmul.mubr.f32.gmra.mrb[0].mxu0 %v1910
    %v1978 = vpop.f32.mrb[0].mxu0
    %v1979 = vadd.f32 0.0, %v1978
    %v1980 = vpop.f32.mrb[0].mxu0
    %1981 = vdwg.mxu0
    %v1982 = vsel %vm87, %v1906, %v1499
    %v1983 = vsel %vm87, %v1979, %v1500
    %v1985 = vsel %vm857, %v1982, 0
    %v1988 = vsel %vm857, %v1983, 0
    %1990 = vmatprep.subr.mxu0 0.0
    %1991 = vmatpush1.msra.mxu0 %v63
    %1992 = vmatprep.subr.mxu0 0.0
    %1993 = vmatpush1.msra.mxu0 %v64
    %1994 = vmatprep.subr.mxu0 0.0
    %1995 = vmatpush1.msra.mxu0 %v65
    %1996 = vmatprep.subr.mxu0 0.0
    %1997 = vmatpush1.msra.mxu0 %v66
    %1998 = vmatprep.subr.mxu0 0.0
    %1999 = vmatpush1.msra.mxu0 %v67
    %2000 = vmatprep.subr.mxu0 0.0
    %2001 = vmatpush1.msra.mxu0 %v68
    %2002 = vmatprep.subr.mxu0 0.0
    %2003 = vmatpush1.msra.mxu0 %v69
    %2004 = vmatprep.subr.mxu0 0.0
    %2005 = vmatpush1.msra.mxu0 %v70
    %2006 = vmatprep.subr.mxu0 0.0
    %2007 = vmatpush1.msra.mxu0 0.0
    %2008 = vmatprep.subr.mxu0 0.0
    %2009 = vmatpush1.msra.mxu0 0.0
    %2010 = vmatprep.subr.mxu0 0.0
    %2011 = vmatpush1.msra.mxu0 0.0
    %2012 = vmatprep.subr.mxu0 0.0
    %2013 = vmatpush1.msra.mxu0 0.0
    %2014 = vmatprep.subr.mxu0 0.0
    %2015 = vmatpush1.msra.mxu0 0.0
    %2016 = vmatprep.subr.mxu0 0.0
    %2017 = vmatpush1.msra.mxu0 0.0
    %2018 = vmatprep.subr.mxu0 0.0
    %2019 = vmatpush1.msra.mxu0 0.0
    %2020 = vmatprep.subr.mxu0 0.0
    %2021 = vmatpush1.msra.mxu0 0.0
    %2022 = vmatprep.subr.mxu0 0.0
    %2023 = vmatpush1.msra.mxu0 0.0
    %2024 = vmatprep.subr.mxu0 0.0
    %2025 = vmatpush1.msra.mxu0 0.0
    %2026 = vmatprep.subr.mxu0 0.0
    %2027 = vmatpush1.msra.mxu0 0.0
    %2028 = vmatprep.subr.mxu0 0.0
    %2029 = vmatpush1.msra.mxu0 0.0
    %2030 = vmatprep.subr.mxu0 0.0
    %2031 = vmatpush1.msra.mxu0 0.0
    %2032 = vmatprep.subr.mxu0 0.0
    %2033 = vmatpush1.msra.mxu0 0.0
    %2034 = vmatprep.subr.mxu0 0.0
    %2035 = vmatpush1.msra.mxu0 0.0
    %2036 = vmatprep.subr.mxu0 0.0
    %2037 = vmatpush1.msra.mxu0 0.0
    %2038 = vmatprep.subr.mxu0 0.0
    %2039 = vmatpush1.msra.mxu0 0.0
    %2040 = vmatprep.subr.mxu0 0.0
    %2041 = vmatpush1.msra.mxu0 0.0
    %2042 = vmatprep.subr.mxu0 0.0
    %2043 = vmatpush1.msra.mxu0 0.0
    %2044 = vmatprep.subr.mxu0 0.0
    %2045 = vmatpush1.msra.mxu0 0.0
    %2046 = vmatprep.subr.mxu0 0.0
    %2047 = vmatpush1.msra.mxu0 0.0
    %2048 = vmatprep.subr.mxu0 0.0
    %2049 = vmatpush1.msra.mxu0 0.0
    %2050 = vmatprep.subr.mxu0 0.0
    %2051 = vmatpush1.msra.mxu0 0.0
    %2052 = vmatprep.subr.mxu0 0.0
    %2053 = vmatpush1.msra.mxu0 0.0
    %2054 = vmatprep.mubr.f32.mxu0 0.0
    %2055 = vmatmul.mubr.f32.gmra.mrb[0].mxu0 %v1985
    %v2056 = vpop.f32.mrb[0].mxu0
    %v2057 = vadd.f32 %v1115, %v2056
    %v2058 = vpop.f32.mrb[0].mxu0
    %2059 = vmatprep.mubr.f32.mxu0 0.0
    %2060 = vmatmul.mubr.f32.gmra.mrb[0].mxu0 %v1988
    %v2061 = vpop.f32.mrb[0].mxu0
    %v2062 = vadd.f32 %v1115, %v2061
    %v2063 = vpop.f32.mrb[0].mxu0
    %2064 = vdwg.mxu0
    %v2065 = vxor.u32 %v2057, 2147483648
    %v2066 = vxor.u32 %v2062, 2147483648
    %v2067 = vmul.f32 %v2065, 1.442695
    %v2068 = vpow.pop %v2067
    %v2069 = vmul.f32 %v2066, 1.442695
    %v2070 = vpow.pop %v2069
    %v2071 = vadd.f32 %v2068, 1.0
    %v2072 = vadd.f32 %v2070, 1.0
    %v2073 = vrcp.pop %v2071
    %v2074 = vmul.f32 1.0, %v2073
    %v2075 = vrcp.pop %v2072
    %v2076 = vmul.f32 1.0, %v2075
    %2079 = vrot.lane.b32.xlu0 %v2057, 32
    %v2080 = vpop.permute.xlu0 %2079
    %2081 = vrot.lane.b32.xlu0 %v2062, 32
    %v2082 = vpop.permute.xlu0 %2081
    %v2085 = vmul.f32 %v2074, %v2080
    %v2086 = vmul.f32 %v2076, %v2082
    %2089 = vrot.lane.b32.xlu0 %v2085, 64
    %v2090 = vpop.permute.xlu0 %2089
    %2091 = vrot.lane.b32.xlu0 %v2086, 64
    %v2092 = vpop.permute.xlu0 %2091
    %v2095 = vadd.f32 %v2057, %v2090
    %v2096 = vadd.f32 %v2062, %v2092
    %v2097 = vtanh.pop %v2095
    %v2098 = vtanh.pop %v2096
    %v2099 = vsub.f32 1.0, %v2074
    %v2100 = vsub.f32 1.0, %v2076
    %2103 = vrot.lane.b32.xlu0 %v2097, 96
    %v2104 = vpop.permute.xlu0 %2103
    %2105 = vrot.lane.b32.xlu0 %v2098, 96
    %v2106 = vpop.permute.xlu0 %2105
    %v2109 = vmul.f32 %v2099, %v2104
    %v2110 = vmul.f32 %v2100, %v2106
    %v2111 = vmul.f32 %v2074, %v1499
    %v2112 = vmul.f32 %v2076, %v1500
    %v2113 = vadd.f32 %v2109, %v2111
    %v2114 = vadd.f32 %v2110, %v2112
    %2117 = vrot.lane.b32.xlu0 %v2113, 96
    %v2118 = vpop.permute.xlu0 %2117
    %2119 = vrot.lane.b32.xlu0 %v2114, 96
    %v2120 = vpop.permute.xlu0 %2119
    %v2123 = vsel %vm87, %v2118, 0.0
    %2124 = vadd.xlane.f32.xlu0 %v2123
    %v2125 = vpop.xlane.xlu0 %2124
    %v2126 = vsel %vm87, %v2120, 0.0
    %2127 = vadd.xlane.f32.xlu0 %v2126
    %v2128 = vpop.xlane.xlu0 %2127
    %v2129 = vmul.f32 %v2125, %v136
    %v2130 = vmul.f32 %v2128, %v136
    %v2131 = vsub.f32 %v2113, %v2129
    %v2132 = vsub.f32 %v2114, %v2130
    %v2133 = vmul.f32 %v2131, %v2131
    %v2134 = vmul.f32 %v2132, %v2132
    %2137 = vrot.lane.b32.xlu0 %v2133, 96
    %v2138 = vpop.permute.xlu0 %2137
    %2139 = vrot.lane.b32.xlu0 %v2134, 96
    %v2140 = vpop.permute.xlu0 %2139
    %v2143 = vsel %vm87, %v2138, 0.0
    %2144 = vadd.xlane.f32.xlu0 %v2143
    %v2145 = vpop.xlane.xlu0 %2144
    %v2146 = vsel %vm87, %v2140, 0.0
    %2147 = vadd.xlane.f32.xlu0 %v2146
    %v2148 = vpop.xlane.xlu0 %2147
    %v2149 = vmul.f32 %v2145, %v136
    %v2150 = vmul.f32 %v2148, %v136
    %v2151 = vadd.f32 %v2149, 1e-05
    %v2152 = vadd.f32 %v2150, 1e-05
    %v2153 = vrsqrt.pop %v2151
    %v2154 = vrsqrt.pop %v2152
    %v2155 = vmul.f32 %v2131, %v2153
    %v2156 = vmul.f32 %v2132, %v2154
    %v2157 = vmul.f32 %v2155, %v1295
    %v2158 = vmul.f32 %v2156, %v1295
    %v2159 = vadd.f32 %v2157, %v1305
    %v2160 = vadd.f32 %v2158, %v1305
    %2163 = vrot.lane.b32.xlu0 %v2159, 96
    %v2164 = vpop.permute.xlu0 %2163
    %2165 = vrot.lane.b32.xlu0 %v2160, 96
    %v2166 = vpop.permute.xlu0 %2165
    %v2167 = vsel %vm87, %v2164, 0
    %v2169 = vsel %vm87, %v2166, 0
    %2171 = vmatprep.subr.mxu0 0.0
    %2172 = vmatpush1.msra.mxu0 %v51
    %2173 = vmatprep.subr.mxu0 0.0
    %2174 = vmatpush1.msra.mxu0 %v52
    %2175 = vmatprep.subr.mxu0 0.0
    %2176 = vmatpush1.msra.mxu0 %v53
    %2177 = vmatprep.subr.mxu0 0.0
    %2178 = vmatpush1.msra.mxu0 %v54
    %2179 = vmatprep.subr.mxu0 0.0
    %2180 = vmatpush1.msra.mxu0 0.0
    %2181 = vmatprep.subr.mxu0 0.0
    %2182 = vmatpush1.msra.mxu0 0.0
    %2183 = vmatprep.subr.mxu0 0.0
    %2184 = vmatpush1.msra.mxu0 0.0
    %2185 = vmatprep.subr.mxu0 0.0
    %2186 = vmatpush1.msra.mxu0 0.0
    %2187 = vmatprep.subr.mxu0 0.0
    %2188 = vmatpush1.msra.mxu0 0.0
    %2189 = vmatprep.subr.mxu0 0.0
    %2190 = vmatpush1.msra.mxu0 0.0
    %2191 = vmatprep.subr.mxu0 0.0
    %2192 = vmatpush1.msra.mxu0 0.0
    %2193 = vmatprep.subr.mxu0 0.0
    %2194 = vmatpush1.msra.mxu0 0.0
    %2195 = vmatprep.subr.mxu0 0.0
    %2196 = vmatpush1.msra.mxu0 0.0
    %2197 = vmatprep.subr.mxu0 0.0
    %2198 = vmatpush1.msra.mxu0 0.0
    %2199 = vmatprep.subr.mxu0 0.0
    %2200 = vmatpush1.msra.mxu0 0.0
    %2201 = vmatprep.subr.mxu0 0.0
    %2202 = vmatpush1.msra.mxu0 0.0
    %2203 = vmatprep.subr.mxu0 0.0
    %2204 = vmatpush1.msra.mxu0 0.0
    %2205 = vmatprep.subr.mxu0 0.0
    %2206 = vmatpush1.msra.mxu0 0.0
    %2207 = vmatprep.subr.mxu0 0.0
    %2208 = vmatpush1.msra.mxu0 0.0
    %2209 = vmatprep.subr.mxu0 0.0
    %2210 = vmatpush1.msra.mxu0 0.0
    %2211 = vmatprep.subr.mxu0 0.0
    %2212 = vmatpush1.msra.mxu0 0.0
    %2213 = vmatprep.subr.mxu0 0.0
    %2214 = vmatpush1.msra.mxu0 0.0
    %2215 = vmatprep.subr.mxu0 0.0
    %2216 = vmatpush1.msra.mxu0 0.0
    %2217 = vmatprep.subr.mxu0 0.0
    %2218 = vmatpush1.msra.mxu0 0.0
    %2219 = vmatprep.subr.mxu0 0.0
    %2220 = vmatpush1.msra.mxu0 0.0
    %2221 = vmatprep.subr.mxu0 0.0
    %2222 = vmatpush1.msra.mxu0 0.0
    %2223 = vmatprep.subr.mxu0 0.0
    %2224 = vmatpush1.msra.mxu0 0.0
    %2225 = vmatprep.subr.mxu0 0.0
    %2226 = vmatpush1.msra.mxu0 0.0
    %2227 = vmatprep.subr.mxu0 0.0
    %2228 = vmatpush1.msra.mxu0 0.0
    %2229 = vmatprep.subr.mxu0 0.0
    %2230 = vmatpush1.msra.mxu0 0.0
    %2231 = vmatprep.subr.mxu0 0.0
    %2232 = vmatpush1.msra.mxu0 0.0
    %2233 = vmatprep.subr.mxu0 0.0
    %2234 = vmatpush1.msra.mxu0 0.0
    %2235 = vmatprep.mubr.f32.mxu0 0.0
    %2236 = vmatmul.mubr.f32.gmra.mrb[0].mxu0 %v2167
    %v2237 = vpop.f32.mrb[0].mxu0
    %v2238 = vadd.f32 %v1312, %v2237
    %v2239 = vpop.f32.mrb[0].mxu0
    %2240 = vmatprep.mubr.f32.mxu0 0.0
    %2241 = vmatmul.mubr.f32.gmra.mrb[0].mxu0 %v2169
    %v2242 = vpop.f32.mrb[0].mxu0
    %v2243 = vadd.f32 %v1312, %v2242
    %v2244 = vpop.f32.mrb[0].mxu0
    %2245 = vdwg.mxu0
    %v2246 = vmax.f32 %v2238, 0.0
    %v2247 = vmax.f32 %v2243, 0.0
    %v2249 = vsel %vm857, %v2246, 0
    %v2252 = vsel %vm857, %v2247, 0
    %2254 = vmatprep.subr.mxu0 0.0
    %2255 = vmatpush1.msra.mxu0 %v55
    %2256 = vmatprep.subr.mxu0 0.0
    %2257 = vmatpush1.msra.mxu0 %v56
    %2258 = vmatprep.subr.mxu0 0.0
    %2259 = vmatpush1.msra.mxu0 %v57
    %2260 = vmatprep.subr.mxu0 0.0
    %2261 = vmatpush1.msra.mxu0 %v58
    %2262 = vmatprep.subr.mxu0 0.0
    %2263 = vmatpush1.msra.mxu0 %v59
    %2264 = vmatprep.subr.mxu0 0.0
    %2265 = vmatpush1.msra.mxu0 %v60
    %2266 = vmatprep.subr.mxu0 0.0
    %2267 = vmatpush1.msra.mxu0 %v61
    %2268 = vmatprep.subr.mxu0 0.0
    %2269 = vmatpush1.msra.mxu0 %v62
    %2270 = vmatprep.subr.mxu0 0.0
    %2271 = vmatpush1.msra.mxu0 0.0
    %2272 = vmatprep.subr.mxu0 0.0
    %2273 = vmatpush1.msra.mxu0 0.0
    %2274 = vmatprep.subr.mxu0 0.0
    %2275 = vmatpush1.msra.mxu0 0.0
    %2276 = vmatprep.subr.mxu0 0.0
    %2277 = vmatpush1.msra.mxu0 0.0
    %2278 = vmatprep.subr.mxu0 0.0
    %2279 = vmatpush1.msra.mxu0 0.0
    %2280 = vmatprep.subr.mxu0 0.0
    %2281 = vmatpush1.msra.mxu0 0.0
    %2282 = vmatprep.subr.mxu0 0.0
    %2283 = vmatpush1.msra.mxu0 0.0
    %2284 = vmatprep.subr.mxu0 0.0
    %2285 = vmatpush1.msra.mxu0 0.0
    %2286 = vmatprep.subr.mxu0 0.0
    %2287 = vmatpush1.msra.mxu0 0.0
    %2288 = vmatprep.subr.mxu0 0.0
    %2289 = vmatpush1.msra.mxu0 0.0
    %2290 = vmatprep.subr.mxu0 0.0
    %2291 = vmatpush1.msra.mxu0 0.0
    %2292 = vmatprep.subr.mxu0 0.0
    %2293 = vmatpush1.msra.mxu0 0.0
    %2294 = vmatprep.subr.mxu0 0.0
    %2295 = vmatpush1.msra.mxu0 0.0
    %2296 = vmatprep.subr.mxu0 0.0
    %2297 = vmatpush1.msra.mxu0 0.0
    %2298 = vmatprep.subr.mxu0 0.0
    %2299 = vmatpush1.msra.mxu0 0.0
    %2300 = vmatprep.subr.mxu0 0.0
    %2301 = vmatpush1.msra.mxu0 0.0
    %2302 = vmatprep.subr.mxu0 0.0
    %2303 = vmatpush1.msra.mxu0 0.0
    %2304 = vmatprep.subr.mxu0 0.0
    %2305 = vmatpush1.msra.mxu0 0.0
    %2306 = vmatprep.subr.mxu0 0.0
    %2307 = vmatpush1.msra.mxu0 0.0
    %2308 = vmatprep.subr.mxu0 0.0
    %2309 = vmatpush1.msra.mxu0 0.0
    %2310 = vmatprep.subr.mxu0 0.0
    %2311 = vmatpush1.msra.mxu0 0.0
    %2312 = vmatprep.subr.mxu0 0.0
    %2313 = vmatpush1.msra.mxu0 0.0
    %2314 = vmatprep.subr.mxu0 0.0
    %2315 = vmatpush1.msra.mxu0 0.0
    %2316 = vmatprep.subr.mxu0 0.0
    %2317 = vmatpush1.msra.mxu0 0.0
    %2318 = vmatprep.mubr.f32.mxu0 0.0
    %2319 = vmatmul.mubr.f32.gmra.mrb[0].mxu0 %v2249
    %v2320 = vpop.f32.mrb[0].mxu0
    %v2321 = vadd.f32 0.0, %v2320
    %v2322 = vpop.f32.mrb[0].mxu0
    %2323 = vmatprep.mubr.f32.mxu0 0.0
    %2324 = vmatmul.mubr.f32.gmra.mrb[0].mxu0 %v2252
    %v2325 = vpop.f32.mrb[0].mxu0
    %v2326 = vadd.f32 0.0, %v2325
    %v2327 = vpop.f32.mrb[0].mxu0
    %2328 = vdwg.mxu0
    %2331 = vrot.lane.b32.xlu0 %v2321, 32
    %v2332 = vpop.permute.xlu0 %2331
    %2333 = vrot.lane.b32.xlu0 %v2326, 32
    %v2334 = vpop.permute.xlu0 %2333
    %v2337 = vadd.f32 %v2113, %v2332
    %v2338 = vadd.f32 %v2114, %v2334
    %v2339 = vadd.f32 %v2337, %v1497
    %v2340 = vadd.f32 %v2338, %v1497
    %2343 = vrot.lane.b32.xlu0 %v2339, 96
    %v2344 = vpop.permute.xlu0 %2343
    %2345 = vrot.lane.b32.xlu0 %v2340, 96
    %v2346 = vpop.permute.xlu0 %2345
    %v2349 = vsel %vm87, %v2344, 0.0
    %2350 = vadd.xlane.f32.xlu0 %v2349
    %v2351 = vpop.xlane.xlu0 %2350
    %v2352 = vsel %vm87, %v2346, 0.0
    %2353 = vadd.xlane.f32.xlu0 %v2352
    %v2354 = vpop.xlane.xlu0 %2353
    %v2355 = vmul.f32 %v2351, %v136
    %v2356 = vmul.f32 %v2354, %v136
    %v2357 = vsub.f32 %v2339, %v2355
    %v2358 = vsub.f32 %v2340, %v2356
    %v2359 = vmul.f32 %v2357, %v2357
    %v2360 = vmul.f32 %v2358, %v2358
    %2363 = vrot.lane.b32.xlu0 %v2359, 96
    %v2364 = vpop.permute.xlu0 %2363
    %2365 = vrot.lane.b32.xlu0 %v2360, 96
    %v2366 = vpop.permute.xlu0 %2365
    %v2369 = vsel %vm87, %v2364, 0.0
    %2370 = vadd.xlane.f32.xlu0 %v2369
    %v2371 = vpop.xlane.xlu0 %2370
    %v2372 = vsel %vm87, %v2366, 0.0
    %2373 = vadd.xlane.f32.xlu0 %v2372
    %v2374 = vpop.xlane.xlu0 %2373
    %v2375 = vmul.f32 %v2371, %v136
    %v2376 = vmul.f32 %v2374, %v136
    %v2377 = vadd.f32 %v2375, 1e-05
    %v2378 = vadd.f32 %v2376, 1e-05
    %v2379 = vrsqrt.pop %v2377
    %v2380 = vrsqrt.pop %v2378
    %v2381 = vmul.f32 %v2357, %v2379
    %v2382 = vmul.f32 %v2358, %v2380
    %v2383 = vmul.f32 %v2381, %v1545
    %v2384 = vmul.f32 %v2382, %v1545
    %v2385 = vadd.f32 %v2383, %v1551
    %v2386 = vadd.f32 %v2384, %v1551
    %2389 = vrot.lane.b32.xlu0 %v2385, 96
    %v2390 = vpop.permute.xlu0 %2389
    %2391 = vrot.lane.b32.xlu0 %v2386, 96
    %v2392 = vpop.permute.xlu0 %2391
    %v2393 = vsel %vm87, %v2390, 0
    %v2395 = vsel %vm87, %v2392, 0
    %2397 = vmatprep.subr.mxu0 0.0
    %2398 = vmatpush1.msra.mxu0 %v43
    %2399 = vmatprep.subr.mxu0 0.0
    %2400 = vmatpush1.msra.mxu0 %v44
    %2401 = vmatprep.subr.mxu0 0.0
    %2402 = vmatpush1.msra.mxu0 %v45
    %2403 = vmatprep.subr.mxu0 0.0
    %2404 = vmatpush1.msra.mxu0 %v46
    %2405 = vmatprep.subr.mxu0 0.0
    %2406 = vmatpush1.msra.mxu0 0.0
    %2407 = vmatprep.subr.mxu0 0.0
    %2408 = vmatpush1.msra.mxu0 0.0
    %2409 = vmatprep.subr.mxu0 0.0
    %2410 = vmatpush1.msra.mxu0 0.0
    %2411 = vmatprep.subr.mxu0 0.0
    %2412 = vmatpush1.msra.mxu0 0.0
    %2413 = vmatprep.subr.mxu0 0.0
    %2414 = vmatpush1.msra.mxu0 0.0
    %2415 = vmatprep.subr.mxu0 0.0
    %2416 = vmatpush1.msra.mxu0 0.0
    %2417 = vmatprep.subr.mxu0 0.0
    %2418 = vmatpush1.msra.mxu0 0.0
    %2419 = vmatprep.subr.mxu0 0.0
    %2420 = vmatpush1.msra.mxu0 0.0
    %2421 = vmatprep.subr.mxu0 0.0
    %2422 = vmatpush1.msra.mxu0 0.0
    %2423 = vmatprep.subr.mxu0 0.0
    %2424 = vmatpush1.msra.mxu0 0.0
    %2425 = vmatprep.subr.mxu0 0.0
    %2426 = vmatpush1.msra.mxu0 0.0
    %2427 = vmatprep.subr.mxu0 0.0
    %2428 = vmatpush1.msra.mxu0 0.0
    %2429 = vmatprep.subr.mxu0 0.0
    %2430 = vmatpush1.msra.mxu0 0.0
    %2431 = vmatprep.subr.mxu0 0.0
    %2432 = vmatpush1.msra.mxu0 0.0
    %2433 = vmatprep.subr.mxu0 0.0
    %2434 = vmatpush1.msra.mxu0 0.0
    %2435 = vmatprep.subr.mxu0 0.0
    %2436 = vmatpush1.msra.mxu0 0.0
    %2437 = vmatprep.subr.mxu0 0.0
    %2438 = vmatpush1.msra.mxu0 0.0
    %2439 = vmatprep.subr.mxu0 0.0
    %2440 = vmatpush1.msra.mxu0 0.0
    %2441 = vmatprep.subr.mxu0 0.0
    %2442 = vmatpush1.msra.mxu0 0.0
    %2443 = vmatprep.subr.mxu0 0.0
    %2444 = vmatpush1.msra.mxu0 0.0
    %2445 = vmatprep.subr.mxu0 0.0
    %2446 = vmatpush1.msra.mxu0 0.0
    %2447 = vmatprep.subr.mxu0 0.0
    %2448 = vmatpush1.msra.mxu0 0.0
    %2449 = vmatprep.subr.mxu0 0.0
    %2450 = vmatpush1.msra.mxu0 0.0
    %2451 = vmatprep.subr.mxu0 0.0
    %2452 = vmatpush1.msra.mxu0 0.0
    %2453 = vmatprep.subr.mxu0 0.0
    %2454 = vmatpush1.msra.mxu0 0.0
    %2455 = vmatprep.subr.mxu0 0.0
    %2456 = vmatpush1.msra.mxu0 0.0
    %2457 = vmatprep.subr.mxu0 0.0
    %2458 = vmatpush1.msra.mxu0 0.0
    %2459 = vmatprep.subr.mxu0 0.0
    %2460 = vmatpush1.msra.mxu0 0.0
    %2461 = vmatprep.mubr.f32.mxu0 0.0
    %2462 = vmatmul.mubr.f32.gmra.mrb[0].mxu0 %v2393
    %v2463 = vpop.f32.mrb[0].mxu0
    %v2464 = vadd.f32 0.0, %v2463
    %v2465 = vpop.f32.mrb[0].mxu0
    %2466 = vmatprep.mubr.f32.mxu0 0.0
    %2467 = vmatmul.mubr.f32.gmra.mrb[0].mxu0 %v2395
    %v2468 = vpop.f32.mrb[0].mxu0
    %v2469 = vadd.f32 0.0, %v2468
    %v2470 = vpop.f32.mrb[0].mxu0
    %2471 = vdwg.mxu0
    %v2473 = vsel %vm87, %v2464, 0
    %2475 = vmatprep.subr.mxu0 0.0
    %2476 = vmatpush1.xpose.msra.mxu0 %v667
    %2477 = vmatprep.subr.mxu0 0.0
    %2478 = vmatpush1.xpose.msra.mxu0 %v670
    %2479 = vmatprep.subr.mxu0 0.0
    %2480 = vmatpush1.xpose.msra.mxu0 %v673
    %2481 = vmatprep.subr.mxu0 0.0
    %2482 = vmatpush1.xpose.msra.mxu0 %v676
    %2483 = vmatprep.subr.mxu0 0.0
    %2484 = vmatpush1.xpose.msra.mxu0 %v679
    %2485 = vmatprep.subr.mxu0 0.0
    %2486 = vmatpush1.xpose.msra.mxu0 %v682
    %2487 = vmatprep.subr.mxu0 0.0
    %2488 = vmatpush1.xpose.msra.mxu0 %v685
    %2489 = vmatprep.subr.mxu0 0.0
    %2490 = vmatpush1.xpose.msra.mxu0 %v688
    %2491 = vmatprep.subr.mxu0 0.0
    %2492 = vmatpush1.xpose.msra.mxu0 0.0
    %2493 = vmatprep.subr.mxu0 0.0
    %2494 = vmatpush1.xpose.msra.mxu0 0.0
    %2495 = vmatprep.subr.mxu0 0.0
    %2496 = vmatpush1.xpose.msra.mxu0 0.0
    %2497 = vmatprep.subr.mxu0 0.0
    %2498 = vmatpush1.xpose.msra.mxu0 0.0
    %2499 = vmatprep.subr.mxu0 0.0
    %2500 = vmatpush1.xpose.msra.mxu0 0.0
    %2501 = vmatprep.subr.mxu0 0.0
    %2502 = vmatpush1.xpose.msra.mxu0 0.0
    %2503 = vmatprep.subr.mxu0 0.0
    %2504 = vmatpush1.xpose.msra.mxu0 0.0
    %2505 = vmatprep.subr.mxu0 0.0
    %2506 = vmatpush1.xpose.msra.mxu0 0.0
    %2507 = vmatprep.subr.mxu0 0.0
    %2508 = vmatpush1.xpose.msra.mxu0 0.0
    %2509 = vmatprep.subr.mxu0 0.0
    %2510 = vmatpush1.xpose.msra.mxu0 0.0
    %2511 = vmatprep.subr.mxu0 0.0
    %2512 = vmatpush1.xpose.msra.mxu0 0.0
    %2513 = vmatprep.subr.mxu0 0.0
    %2514 = vmatpush1.xpose.msra.mxu0 0.0
    %2515 = vmatprep.subr.mxu0 0.0
    %2516 = vmatpush1.xpose.msra.mxu0 0.0
    %2517 = vmatprep.subr.mxu0 0.0
    %2518 = vmatpush1.xpose.msra.mxu0 0.0
    %2519 = vmatprep.subr.mxu0 0.0
    %2520 = vmatpush1.xpose.msra.mxu0 0.0
    %2521 = vmatprep.subr.mxu0 0.0
    %2522 = vmatpush1.xpose.msra.mxu0 0.0
    %2523 = vmatprep.subr.mxu0 0.0
    %2524 = vmatpush1.xpose.msra.mxu0 0.0
    %2525 = vmatprep.subr.mxu0 0.0
    %2526 = vmatpush1.xpose.msra.mxu0 0.0
    %2527 = vmatprep.subr.mxu0 0.0
    %2528 = vmatpush1.xpose.msra.mxu0 0.0
    %2529 = vmatprep.subr.mxu0 0.0
    %2530 = vmatpush1.xpose.msra.mxu0 0.0
    %2531 = vmatprep.subr.mxu0 0.0
    %2532 = vmatpush1.xpose.msra.mxu0 0.0
    %2533 = vmatprep.subr.mxu0 0.0
    %2534 = vmatpush1.xpose.msra.mxu0 0.0
    %2535 = vmatprep.subr.mxu0 0.0
    %2536 = vmatpush1.xpose.msra.mxu0 0.0
    %2537 = vmatprep.subr.mxu0 0.0
    %2538 = vmatpush1.xpose.msra.mxu0 0.0
    %2539 = vmatprep.mubr.f32.mxu0 0.0
    %2540 = vmatmul.mubr.f32.gmra.mrb[0].mxu0 %v2473
    %v2541 = vpop.f32.mrb[0].mxu0
    %v2542 = vadd.f32 0.0, %v2541
    %v2543 = vpop.f32.mrb[0].mxu0
    %2544 = vdwg.mxu0
    %v2546 = vsel %vm87, %v2469, 0
    %2548 = vmatprep.subr.mxu0 0.0
    %2549 = vmatpush1.xpose.msra.mxu0 %v764
    %2550 = vmatprep.subr.mxu0 0.0
    %2551 = vmatpush1.xpose.msra.mxu0 %v767
    %2552 = vmatprep.subr.mxu0 0.0
    %2553 = vmatpush1.xpose.msra.mxu0 %v770
    %2554 = vmatprep.subr.mxu0 0.0
    %2555 = vmatpush1.xpose.msra.mxu0 %v773
    %2556 = vmatprep.subr.mxu0 0.0
    %2557 = vmatpush1.xpose.msra.mxu0 %v776
    %2558 = vmatprep.subr.mxu0 0.0
    %2559 = vmatpush1.xpose.msra.mxu0 %v779
    %2560 = vmatprep.subr.mxu0 0.0
    %2561 = vmatpush1.xpose.msra.mxu0 %v782
    %2562 = vmatprep.subr.mxu0 0.0
    %2563 = vmatpush1.xpose.msra.mxu0 %v785
    %2564 = vmatprep.subr.mxu0 0.0
    %2565 = vmatpush1.xpose.msra.mxu0 0.0
    %2566 = vmatprep.subr.mxu0 0.0
    %2567 = vmatpush1.xpose.msra.mxu0 0.0
    %2568 = vmatprep.subr.mxu0 0.0
    %2569 = vmatpush1.xpose.msra.mxu0 0.0
    %2570 = vmatprep.subr.mxu0 0.0
    %2571 = vmatpush1.xpose.msra.mxu0 0.0
    %2572 = vmatprep.subr.mxu0 0.0
    %2573 = vmatpush1.xpose.msra.mxu0 0.0
    %2574 = vmatprep.subr.mxu0 0.0
    %2575 = vmatpush1.xpose.msra.mxu0 0.0
    %2576 = vmatprep.subr.mxu0 0.0
    %2577 = vmatpush1.xpose.msra.mxu0 0.0
    %2578 = vmatprep.subr.mxu0 0.0
    %2579 = vmatpush1.xpose.msra.mxu0 0.0
    %2580 = vmatprep.subr.mxu0 0.0
    %2581 = vmatpush1.xpose.msra.mxu0 0.0
    %2582 = vmatprep.subr.mxu0 0.0
    %2583 = vmatpush1.xpose.msra.mxu0 0.0
    %2584 = vmatprep.subr.mxu0 0.0
    %2585 = vmatpush1.xpose.msra.mxu0 0.0
    %2586 = vmatprep.subr.mxu0 0.0
    %2587 = vmatpush1.xpose.msra.mxu0 0.0
    %2588 = vmatprep.subr.mxu0 0.0
    %2589 = vmatpush1.xpose.msra.mxu0 0.0
    %2590 = vmatprep.subr.mxu0 0.0
    %2591 = vmatpush1.xpose.msra.mxu0 0.0
    %2592 = vmatprep.subr.mxu0 0.0
    %2593 = vmatpush1.xpose.msra.mxu0 0.0
    %2594 = vmatprep.subr.mxu0 0.0
    %2595 = vmatpush1.xpose.msra.mxu0 0.0
    %2596 = vmatprep.subr.mxu0 0.0
    %2597 = vmatpush1.xpose.msra.mxu0 0.0
    %2598 = vmatprep.subr.mxu0 0.0
    %2599 = vmatpush1.xpose.msra.mxu0 0.0
    %2600 = vmatprep.subr.mxu0 0.0
    %2601 = vmatpush1.xpose.msra.mxu0 0.0
    %2602 = vmatprep.subr.mxu0 0.0
    %2603 = vmatpush1.xpose.msra.mxu0 0.0
    %2604 = vmatprep.subr.mxu0 0.0
    %2605 = vmatpush1.xpose.msra.mxu0 0.0
    %2606 = vmatprep.subr.mxu0 0.0
    %2607 = vmatpush1.xpose.msra.mxu0 0.0
    %2608 = vmatprep.subr.mxu0 0.0
    %2609 = vmatpush1.xpose.msra.mxu0 0.0
    %2610 = vmatprep.subr.mxu0 0.0
    %2611 = vmatpush1.xpose.msra.mxu0 0.0
    %2612 = vmatprep.mubr.f32.mxu0 0.0
    %2613 = vmatmul.mubr.f32.gmra.mrb[0].mxu0 %v2546
    %v2614 = vpop.f32.mrb[0].mxu0
    %v2615 = vadd.f32 0.0, %v2614
    %v2616 = vpop.f32.mrb[0].mxu0
    %2617 = vdwg.mxu0
    %v2618 = vsel %vm857, %v2542, -inf
    %v2619 = vrot.slane %v2618, 4
    %v2620 = vmax.f32 %v2618, %v2619
    %v2621 = vrot.slane %v2620, 2
    %v2622 = vmax.f32 %v2620, %v2621
    %v2623 = vrot.slane %v2622, 1
    %v2624 = vmax.f32 %v2622, %v2623
    %v2625 = vsel %vm857, %v2615, -inf
    %v2626 = vrot.slane %v2625, 4
    %v2627 = vmax.f32 %v2625, %v2626
    %v2628 = vrot.slane %v2627, 2
    %v2629 = vmax.f32 %v2627, %v2628
    %v2630 = vrot.slane %v2629, 1
    %v2631 = vmax.f32 %v2629, %v2630
    %v2632 = vsub.f32 %v2542, %v2624
    %v2633 = vsub.f32 %v2615, %v2631
    %v2634 = vmul.f32 %v2632, 1.442695
    %v2635 = vpow.pop %v2634
    %v2636 = vmul.f32 %v2633, 1.442695
    %v2637 = vpow.pop %v2636
    %v2638 = vsel %vm857, %v2635, 0.0
    %v2639 = vrot.slane %v2638, 4
    %v2640 = vadd.f32 %v2638, %v2639
    %v2641 = vrot.slane %v2640, 2
    %v2642 = vadd.f32 %v2640, %v2641
    %v2643 = vrot.slane %v2642, 1
    %v2644 = vadd.f32 %v2642, %v2643
    %v2645 = vsel %vm857, %v2637, 0.0
    %v2646 = vrot.slane %v2645, 4
    %v2647 = vadd.f32 %v2645, %v2646
    %v2648 = vrot.slane %v2647, 2
    %v2649 = vadd.f32 %v2647, %v2648
    %v2650 = vrot.slane %v2649, 1
    %v2651 = vadd.f32 %v2649, %v2650
    %v2652 = vrcp.pop %v2644
    %v2653 = vrcp.pop %v2651
    %v2654 = vmul.f32 %v2635, %v2652
    %v2655 = vmul.f32 %v2637, %v2653
    %v2656 = vadd.f32 %v2654, 1e-08
    %v2657 = vadd.f32 %v2655, 1e-08
    %v2658 = vsel %vm857, %v2656, 0.0
    %2659 = vadd.xlane.f32.xlu0 %v2658
    %v2660 = vpop.xlane.xlu0 %2659
    %v2661 = vsel %vm857, %v2657, 0.0
    %2662 = vadd.xlane.f32.xlu0 %v2661
    %v2663 = vpop.xlane.xlu0 %2662
    %v2664 = vrcp.pop %v2660
    %v2665 = vrcp.pop %v2663
    %v2666 = vmul.f32 %v2656, %v2664
    %v2667 = vmul.f32 %v2657, %v2665
    %v2669 = vsel %vm857, %v2666, 0
    %2671 = vmatprep.subr.mxu0 0.0
    %2672 = vmatpush1.msra.mxu0 %v909
    %2673 = vmatprep.subr.mxu0 0.0
    %2674 = vmatpush1.msra.mxu0 %v911
    %2675 = vmatprep.subr.mxu0 0.0
    %2676 = vmatpush1.msra.mxu0 %v913
    %2677 = vmatprep.subr.mxu0 0.0
    %2678 = vmatpush1.msra.mxu0 %v915
    %2679 = vmatprep.subr.mxu0 0.0
    %2680 = vmatpush1.msra.mxu0 %v917
    %2681 = vmatprep.subr.mxu0 0.0
    %2682 = vmatpush1.msra.mxu0 %v919
    %2683 = vmatprep.subr.mxu0 0.0
    %2684 = vmatpush1.msra.mxu0 %v921
    %2685 = vmatprep.subr.mxu0 0.0
    %2686 = vmatpush1.msra.mxu0 %v923
    %2687 = vmatprep.subr.mxu0 0.0
    %2688 = vmatpush1.msra.mxu0 0.0
    %2689 = vmatprep.subr.mxu0 0.0
    %2690 = vmatpush1.msra.mxu0 0.0
    %2691 = vmatprep.subr.mxu0 0.0
    %2692 = vmatpush1.msra.mxu0 0.0
    %2693 = vmatprep.subr.mxu0 0.0
    %2694 = vmatpush1.msra.mxu0 0.0
    %2695 = vmatprep.subr.mxu0 0.0
    %2696 = vmatpush1.msra.mxu0 0.0
    %2697 = vmatprep.subr.mxu0 0.0
    %2698 = vmatpush1.msra.mxu0 0.0
    %2699 = vmatprep.subr.mxu0 0.0
    %2700 = vmatpush1.msra.mxu0 0.0
    %2701 = vmatprep.subr.mxu0 0.0
    %2702 = vmatpush1.msra.mxu0 0.0
    %2703 = vmatprep.subr.mxu0 0.0
    %2704 = vmatpush1.msra.mxu0 0.0
    %2705 = vmatprep.subr.mxu0 0.0
    %2706 = vmatpush1.msra.mxu0 0.0
    %2707 = vmatprep.subr.mxu0 0.0
    %2708 = vmatpush1.msra.mxu0 0.0
    %2709 = vmatprep.subr.mxu0 0.0
    %2710 = vmatpush1.msra.mxu0 0.0
    %2711 = vmatprep.subr.mxu0 0.0
    %2712 = vmatpush1.msra.mxu0 0.0
    %2713 = vmatprep.subr.mxu0 0.0
    %2714 = vmatpush1.msra.mxu0 0.0
    %2715 = vmatprep.subr.mxu0 0.0
    %2716 = vmatpush1.msra.mxu0 0.0
    %2717 = vmatprep.subr.mxu0 0.0
    %2718 = vmatpush1.msra.mxu0 0.0
    %2719 = vmatprep.subr.mxu0 0.0
    %2720 = vmatpush1.msra.mxu0 0.0
    %2721 = vmatprep.subr.mxu0 0.0
    %2722 = vmatpush1.msra.mxu0 0.0
    %2723 = vmatprep.subr.mxu0 0.0
    %2724 = vmatpush1.msra.mxu0 0.0
    %2725 = vmatprep.subr.mxu0 0.0
    %2726 = vmatpush1.msra.mxu0 0.0
    %2727 = vmatprep.subr.mxu0 0.0
    %2728 = vmatpush1.msra.mxu0 0.0
    %2729 = vmatprep.subr.mxu0 0.0
    %2730 = vmatpush1.msra.mxu0 0.0
    %2731 = vmatprep.subr.mxu0 0.0
    %2732 = vmatpush1.msra.mxu0 0.0
    %2733 = vmatprep.subr.mxu0 0.0
    %2734 = vmatpush1.msra.mxu0 0.0
    %2735 = vmatprep.mubr.f32.mxu0 0.0
    %2736 = vmatmul.mubr.f32.gmra.mrb[0].mxu0 %v2669
    %v2737 = vpop.f32.mrb[0].mxu0
    %v2738 = vadd.f32 0.0, %v2737
    %v2739 = vpop.f32.mrb[0].mxu0
    %2740 = vdwg.mxu0
    %v2742 = vsel %vm857, %v2667, 0
    %2744 = vmatprep.subr.mxu0 0.0
    %2745 = vmatpush1.msra.mxu0 %v1006
    %2746 = vmatprep.subr.mxu0 0.0
    %2747 = vmatpush1.msra.mxu0 %v1008
    %2748 = vmatprep.subr.mxu0 0.0
    %2749 = vmatpush1.msra.mxu0 %v1010
    %2750 = vmatprep.subr.mxu0 0.0
    %2751 = vmatpush1.msra.mxu0 %v1012
    %2752 = vmatprep.subr.mxu0 0.0
    %2753 = vmatpush1.msra.mxu0 %v1014
    %2754 = vmatprep.subr.mxu0 0.0
    %2755 = vmatpush1.msra.mxu0 %v1016
    %2756 = vmatprep.subr.mxu0 0.0
    %2757 = vmatpush1.msra.mxu0 %v1018
    %2758 = vmatprep.subr.mxu0 0.0
    %2759 = vmatpush1.msra.mxu0 %v1020
    %2760 = vmatprep.subr.mxu0 0.0
    %2761 = vmatpush1.msra.mxu0 0.0
    %2762 = vmatprep.subr.mxu0 0.0
    %2763 = vmatpush1.msra.mxu0 0.0
    %2764 = vmatprep.subr.mxu0 0.0
    %2765 = vmatpush1.msra.mxu0 0.0
    %2766 = vmatprep.subr.mxu0 0.0
    %2767 = vmatpush1.msra.mxu0 0.0
    %2768 = vmatprep.subr.mxu0 0.0
    %2769 = vmatpush1.msra.mxu0 0.0
    %2770 = vmatprep.subr.mxu0 0.0
    %2771 = vmatpush1.msra.mxu0 0.0
    %2772 = vmatprep.subr.mxu0 0.0
    %2773 = vmatpush1.msra.mxu0 0.0
    %2774 = vmatprep.subr.mxu0 0.0
    %2775 = vmatpush1.msra.mxu0 0.0
    %2776 = vmatprep.subr.mxu0 0.0
    %2777 = vmatpush1.msra.mxu0 0.0
    %2778 = vmatprep.subr.mxu0 0.0
    %2779 = vmatpush1.msra.mxu0 0.0
    %2780 = vmatprep.subr.mxu0 0.0
    %2781 = vmatpush1.msra.mxu0 0.0
    %2782 = vmatprep.subr.mxu0 0.0
    %2783 = vmatpush1.msra.mxu0 0.0
    %2784 = vmatprep.subr.mxu0 0.0
    %2785 = vmatpush1.msra.mxu0 0.0
    %2786 = vmatprep.subr.mxu0 0.0
    %2787 = vmatpush1.msra.mxu0 0.0
    %2788 = vmatprep.subr.mxu0 0.0
    %2789 = vmatpush1.msra.mxu0 0.0
    %2790 = vmatprep.subr.mxu0 0.0
    %2791 = vmatpush1.msra.mxu0 0.0
    %2792 = vmatprep.subr.mxu0 0.0
    %2793 = vmatpush1.msra.mxu0 0.0
    %2794 = vmatprep.subr.mxu0 0.0
    %2795 = vmatpush1.msra.mxu0 0.0
    %2796 = vmatprep.subr.mxu0 0.0
    %2797 = vmatpush1.msra.mxu0 0.0
    %2798 = vmatprep.subr.mxu0 0.0
    %2799 = vmatpush1.msra.mxu0 0.0
    %2800 = vmatprep.subr.mxu0 0.0
    %2801 = vmatpush1.msra.mxu0 0.0
    %2802 = vmatprep.subr.mxu0 0.0
    %2803 = vmatpush1.msra.mxu0 0.0
    %2804 = vmatprep.subr.mxu0 0.0
    %2805 = vmatpush1.msra.mxu0 0.0
    %2806 = vmatprep.subr.mxu0 0.0
    %2807 = vmatpush1.msra.mxu0 0.0
    %2808 = vmatprep.mubr.f32.mxu0 0.0
    %2809 = vmatmul.mubr.f32.gmra.mrb[0].mxu0 %v2742
    %v2810 = vpop.f32.mrb[0].mxu0
    %v2811 = vadd.f32 0.0, %v2810
    %v2812 = vpop.f32.mrb[0].mxu0
    %2813 = vdwg.mxu0
    %v2814 = vsel %vm87, %v2738, %v2339
    %v2815 = vsel %vm87, %v2811, %v2340
    %v2817 = vsel %vm857, %v2814, 0
    %v2820 = vsel %vm857, %v2815, 0
    %2822 = vmatprep.subr.mxu0 0.0
    %2823 = vmatpush1.msra.mxu0 %v63
    %2824 = vmatprep.subr.mxu0 0.0
    %2825 = vmatpush1.msra.mxu0 %v64
    %2826 = vmatprep.subr.mxu0 0.0
    %2827 = vmatpush1.msra.mxu0 %v65
    %2828 = vmatprep.subr.mxu0 0.0
    %2829 = vmatpush1.msra.mxu0 %v66
    %2830 = vmatprep.subr.mxu0 0.0
    %2831 = vmatpush1.msra.mxu0 %v67
    %2832 = vmatprep.subr.mxu0 0.0
    %2833 = vmatpush1.msra.mxu0 %v68
    %2834 = vmatprep.subr.mxu0 0.0
    %2835 = vmatpush1.msra.mxu0 %v69
    %2836 = vmatprep.subr.mxu0 0.0
    %2837 = vmatpush1.msra.mxu0 %v70
    %2838 = vmatprep.subr.mxu0 0.0
    %2839 = vmatpush1.msra.mxu0 0.0
    %2840 = vmatprep.subr.mxu0 0.0
    %2841 = vmatpush1.msra.mxu0 0.0
    %2842 = vmatprep.subr.mxu0 0.0
    %2843 = vmatpush1.msra.mxu0 0.0
    %2844 = vmatprep.subr.mxu0 0.0
    %2845 = vmatpush1.msra.mxu0 0.0
    %2846 = vmatprep.subr.mxu0 0.0
    %2847 = vmatpush1.msra.mxu0 0.0
    %2848 = vmatprep.subr.mxu0 0.0
    %2849 = vmatpush1.msra.mxu0 0.0
    %2850 = vmatprep.subr.mxu0 0.0
    %2851 = vmatpush1.msra.mxu0 0.0
    %2852 = vmatprep.subr.mxu0 0.0
    %2853 = vmatpush1.msra.mxu0 0.0
    %2854 = vmatprep.subr.mxu0 0.0
    %2855 = vmatpush1.msra.mxu0 0.0
    %2856 = vmatprep.subr.mxu0 0.0
    %2857 = vmatpush1.msra.mxu0 0.0
    %2858 = vmatprep.subr.mxu0 0.0
    %2859 = vmatpush1.msra.mxu0 0.0
    %2860 = vmatprep.subr.mxu0 0.0
    %2861 = vmatpush1.msra.mxu0 0.0
    %2862 = vmatprep.subr.mxu0 0.0
    %2863 = vmatpush1.msra.mxu0 0.0
    %2864 = vmatprep.subr.mxu0 0.0
    %2865 = vmatpush1.msra.mxu0 0.0
    %2866 = vmatprep.subr.mxu0 0.0
    %2867 = vmatpush1.msra.mxu0 0.0
    %2868 = vmatprep.subr.mxu0 0.0
    %2869 = vmatpush1.msra.mxu0 0.0
    %2870 = vmatprep.subr.mxu0 0.0
    %2871 = vmatpush1.msra.mxu0 0.0
    %2872 = vmatprep.subr.mxu0 0.0
    %2873 = vmatpush1.msra.mxu0 0.0
    %2874 = vmatprep.subr.mxu0 0.0
    %2875 = vmatpush1.msra.mxu0 0.0
    %2876 = vmatprep.subr.mxu0 0.0
    %2877 = vmatpush1.msra.mxu0 0.0
    %2878 = vmatprep.subr.mxu0 0.0
    %2879 = vmatpush1.msra.mxu0 0.0
    %2880 = vmatprep.subr.mxu0 0.0
    %2881 = vmatpush1.msra.mxu0 0.0
    %2882 = vmatprep.subr.mxu0 0.0
    %2883 = vmatpush1.msra.mxu0 0.0
    %2884 = vmatprep.subr.mxu0 0.0
    %2885 = vmatpush1.msra.mxu0 0.0
    %2886 = vmatprep.mubr.f32.mxu0 0.0
    %2887 = vmatmul.mubr.f32.gmra.mrb[0].mxu0 %v2817
    %v2888 = vpop.f32.mrb[0].mxu0
    %v2889 = vadd.f32 %v1115, %v2888
    %v2890 = vpop.f32.mrb[0].mxu0
    %2891 = vmatprep.mubr.f32.mxu0 0.0
    %2892 = vmatmul.mubr.f32.gmra.mrb[0].mxu0 %v2820
    %v2893 = vpop.f32.mrb[0].mxu0
    %v2894 = vadd.f32 %v1115, %v2893
    %v2895 = vpop.f32.mrb[0].mxu0
    %2896 = vdwg.mxu0
    %v2897 = vxor.u32 %v2889, 2147483648
    %v2898 = vxor.u32 %v2894, 2147483648
    %v2899 = vmul.f32 %v2897, 1.442695
    %v2900 = vpow.pop %v2899
    %v2901 = vmul.f32 %v2898, 1.442695
    %v2902 = vpow.pop %v2901
    %v2903 = vadd.f32 %v2900, 1.0
    %v2904 = vadd.f32 %v2902, 1.0
    %v2905 = vrcp.pop %v2903
    %v2906 = vmul.f32 1.0, %v2905
    %v2907 = vrcp.pop %v2904
    %v2908 = vmul.f32 1.0, %v2907
    %2911 = vrot.lane.b32.xlu0 %v2889, 32
    %v2912 = vpop.permute.xlu0 %2911
    %2913 = vrot.lane.b32.xlu0 %v2894, 32
    %v2914 = vpop.permute.xlu0 %2913
    %v2917 = vmul.f32 %v2906, %v2912
    %v2918 = vmul.f32 %v2908, %v2914
    %2921 = vrot.lane.b32.xlu0 %v2917, 64
    %v2922 = vpop.permute.xlu0 %2921
    %2923 = vrot.lane.b32.xlu0 %v2918, 64
    %v2924 = vpop.permute.xlu0 %2923
    %v2927 = vadd.f32 %v2889, %v2922
    %v2928 = vadd.f32 %v2894, %v2924
    %v2929 = vtanh.pop %v2927
    %v2930 = vtanh.pop %v2928
    %v2931 = vsub.f32 1.0, %v2906
    %v2932 = vsub.f32 1.0, %v2908
    %2935 = vrot.lane.b32.xlu0 %v2929, 96
    %v2936 = vpop.permute.xlu0 %2935
    %2937 = vrot.lane.b32.xlu0 %v2930, 96
    %v2938 = vpop.permute.xlu0 %2937
    %v2941 = vmul.f32 %v2931, %v2936
    %v2942 = vmul.f32 %v2932, %v2938
    %v2943 = vmul.f32 %v2906, %v2339
    %v2944 = vmul.f32 %v2908, %v2340
    %v2945 = vadd.f32 %v2941, %v2943
    %v2946 = vadd.f32 %v2942, %v2944
    %2949 = vrot.lane.b32.xlu0 %v2945, 96
    %v2950 = vpop.permute.xlu0 %2949
    %2951 = vrot.lane.b32.xlu0 %v2946, 96
    %v2952 = vpop.permute.xlu0 %2951
    %v2955 = vsel %vm87, %v2950, 0.0
    %2956 = vadd.xlane.f32.xlu0 %v2955
    %v2957 = vpop.xlane.xlu0 %2956
    %v2958 = vsel %vm87, %v2952, 0.0
    %2959 = vadd.xlane.f32.xlu0 %v2958
    %v2960 = vpop.xlane.xlu0 %2959
    %v2961 = vmul.f32 %v2957, %v136
    %v2962 = vmul.f32 %v2960, %v136
    %v2963 = vsub.f32 %v2945, %v2961
    %v2964 = vsub.f32 %v2946, %v2962
    %v2965 = vmul.f32 %v2963, %v2963
    %v2966 = vmul.f32 %v2964, %v2964
    %2969 = vrot.lane.b32.xlu0 %v2965, 96
    %v2970 = vpop.permute.xlu0 %2969
    %2971 = vrot.lane.b32.xlu0 %v2966, 96
    %v2972 = vpop.permute.xlu0 %2971
    %v2975 = vsel %vm87, %v2970, 0.0
    %2976 = vadd.xlane.f32.xlu0 %v2975
    %v2977 = vpop.xlane.xlu0 %2976
    %v2978 = vsel %vm87, %v2972, 0.0
    %2979 = vadd.xlane.f32.xlu0 %v2978
    %v2980 = vpop.xlane.xlu0 %2979
    %v2981 = vmul.f32 %v2977, %v136
    %v2982 = vmul.f32 %v2980, %v136
    %v2983 = vadd.f32 %v2981, 1e-05
    %v2984 = vadd.f32 %v2982, 1e-05
    %v2985 = vrsqrt.pop %v2983
    %v2986 = vrsqrt.pop %v2984
    %v2987 = vmul.f32 %v2963, %v2985
    %v2988 = vmul.f32 %v2964, %v2986
    %v2989 = vmul.f32 %v2987, %v1295
    %v2990 = vmul.f32 %v2988, %v1295
    %v2991 = vadd.f32 %v2989, %v1305
    %v2992 = vadd.f32 %v2990, %v1305
    %2995 = vrot.lane.b32.xlu0 %v2991, 96
    %v2996 = vpop.permute.xlu0 %2995
    %2997 = vrot.lane.b32.xlu0 %v2992, 96
    %v2998 = vpop.permute.xlu0 %2997
    %v2999 = vsel %vm87, %v2996, 0
    %v3001 = vsel %vm87, %v2998, 0
    %3003 = vmatprep.subr.mxu0 0.0
    %3004 = vmatpush1.msra.mxu0 %v51
    %3005 = vmatprep.subr.mxu0 0.0
    %3006 = vmatpush1.msra.mxu0 %v52
    %3007 = vmatprep.subr.mxu0 0.0
    %3008 = vmatpush1.msra.mxu0 %v53
    %3009 = vmatprep.subr.mxu0 0.0
    %3010 = vmatpush1.msra.mxu0 %v54
    %3011 = vmatprep.subr.mxu0 0.0
    %3012 = vmatpush1.msra.mxu0 0.0
    %3013 = vmatprep.subr.mxu0 0.0
    %3014 = vmatpush1.msra.mxu0 0.0
    %3015 = vmatprep.subr.mxu0 0.0
    %3016 = vmatpush1.msra.mxu0 0.0
    %3017 = vmatprep.subr.mxu0 0.0
    %3018 = vmatpush1.msra.mxu0 0.0
    %3019 = vmatprep.subr.mxu0 0.0
    %3020 = vmatpush1.msra.mxu0 0.0
    %3021 = vmatprep.subr.mxu0 0.0
    %3022 = vmatpush1.msra.mxu0 0.0
    %3023 = vmatprep.subr.mxu0 0.0
    %3024 = vmatpush1.msra.mxu0 0.0
    %3025 = vmatprep.subr.mxu0 0.0
    %3026 = vmatpush1.msra.mxu0 0.0
    %3027 = vmatprep.subr.mxu0 0.0
    %3028 = vmatpush1.msra.mxu0 0.0
    %3029 = vmatprep.subr.mxu0 0.0
    %3030 = vmatpush1.msra.mxu0 0.0
    %3031 = vmatprep.subr.mxu0 0.0
    %3032 = vmatpush1.msra.mxu0 0.0
    %3033 = vmatprep.subr.mxu0 0.0
    %3034 = vmatpush1.msra.mxu0 0.0
    %3035 = vmatprep.subr.mxu0 0.0
    %3036 = vmatpush1.msra.mxu0 0.0
    %3037 = vmatprep.subr.mxu0 0.0
    %3038 = vmatpush1.msra.mxu0 0.0
    %3039 = vmatprep.subr.mxu0 0.0
    %3040 = vmatpush1.msra.mxu0 0.0
    %3041 = vmatprep.subr.mxu0 0.0
    %3042 = vmatpush1.msra.mxu0 0.0
    %3043 = vmatprep.subr.mxu0 0.0
    %3044 = vmatpush1.msra.mxu0 0.0
    %3045 = vmatprep.subr.mxu0 0.0
    %3046 = vmatpush1.msra.mxu0 0.0
    %3047 = vmatprep.subr.mxu0 0.0
    %3048 = vmatpush1.msra.mxu0 0.0
    %3049 = vmatprep.subr.mxu0 0.0
    %3050 = vmatpush1.msra.mxu0 0.0
    %3051 = vmatprep.subr.mxu0 0.0
    %3052 = vmatpush1.msra.mxu0 0.0
    %3053 = vmatprep.subr.mxu0 0.0
    %3054 = vmatpush1.msra.mxu0 0.0
    %3055 = vmatprep.subr.mxu0 0.0
    %3056 = vmatpush1.msra.mxu0 0.0
    %3057 = vmatprep.subr.mxu0 0.0
    %3058 = vmatpush1.msra.mxu0 0.0
    %3059 = vmatprep.subr.mxu0 0.0
    %3060 = vmatpush1.msra.mxu0 0.0
    %3061 = vmatprep.subr.mxu0 0.0
    %3062 = vmatpush1.msra.mxu0 0.0
    %3063 = vmatprep.subr.mxu0 0.0
    %3064 = vmatpush1.msra.mxu0 0.0
    %3065 = vmatprep.subr.mxu0 0.0
    %3066 = vmatpush1.msra.mxu0 0.0
    %3067 = vmatprep.mubr.f32.mxu0 0.0
    %3068 = vmatmul.mubr.f32.gmra.mrb[0].mxu0 %v2999
    %v3069 = vpop.f32.mrb[0].mxu0
    %v3070 = vadd.f32 %v1312, %v3069
    %v3071 = vpop.f32.mrb[0].mxu0
    %3072 = vmatprep.mubr.f32.mxu0 0.0
    %3073 = vmatmul.mubr.f32.gmra.mrb[0].mxu0 %v3001
    %v3074 = vpop.f32.mrb[0].mxu0
    %v3075 = vadd.f32 %v1312, %v3074
    %v3076 = vpop.f32.mrb[0].mxu0
    %3077 = vdwg.mxu0
    %v3078 = vmax.f32 %v3070, 0.0
    %v3079 = vmax.f32 %v3075, 0.0
    %v3081 = vsel %vm857, %v3078, 0
    %v3084 = vsel %vm857, %v3079, 0
    %3086 = vmatprep.subr.mxu0 0.0
    %3087 = vmatpush1.msra.mxu0 %v55
    %3088 = vmatprep.subr.mxu0 0.0
    %3089 = vmatpush1.msra.mxu0 %v56
    %3090 = vmatprep.subr.mxu0 0.0
    %3091 = vmatpush1.msra.mxu0 %v57
    %3092 = vmatprep.subr.mxu0 0.0
    %3093 = vmatpush1.msra.mxu0 %v58
    %3094 = vmatprep.subr.mxu0 0.0
    %3095 = vmatpush1.msra.mxu0 %v59
    %3096 = vmatprep.subr.mxu0 0.0
    %3097 = vmatpush1.msra.mxu0 %v60
    %3098 = vmatprep.subr.mxu0 0.0
    %3099 = vmatpush1.msra.mxu0 %v61
    %3100 = vmatprep.subr.mxu0 0.0
    %3101 = vmatpush1.msra.mxu0 %v62
    %3102 = vmatprep.subr.mxu0 0.0
    %3103 = vmatpush1.msra.mxu0 0.0
    %3104 = vmatprep.subr.mxu0 0.0
    %3105 = vmatpush1.msra.mxu0 0.0
    %3106 = vmatprep.subr.mxu0 0.0
    %3107 = vmatpush1.msra.mxu0 0.0
    %3108 = vmatprep.subr.mxu0 0.0
    %3109 = vmatpush1.msra.mxu0 0.0
    %3110 = vmatprep.subr.mxu0 0.0
    %3111 = vmatpush1.msra.mxu0 0.0
    %3112 = vmatprep.subr.mxu0 0.0
    %3113 = vmatpush1.msra.mxu0 0.0
    %3114 = vmatprep.subr.mxu0 0.0
    %3115 = vmatpush1.msra.mxu0 0.0
    %3116 = vmatprep.subr.mxu0 0.0
    %3117 = vmatpush1.msra.mxu0 0.0
    %3118 = vmatprep.subr.mxu0 0.0
    %3119 = vmatpush1.msra.mxu0 0.0
    %3120 = vmatprep.subr.mxu0 0.0
    %3121 = vmatpush1.msra.mxu0 0.0
    %3122 = vmatprep.subr.mxu0 0.0
    %3123 = vmatpush1.msra.mxu0 0.0
    %3124 = vmatprep.subr.mxu0 0.0
    %3125 = vmatpush1.msra.mxu0 0.0
    %3126 = vmatprep.subr.mxu0 0.0
    %3127 = vmatpush1.msra.mxu0 0.0
    %3128 = vmatprep.subr.mxu0 0.0
    %3129 = vmatpush1.msra.mxu0 0.0
    %3130 = vmatprep.subr.mxu0 0.0
    %3131 = vmatpush1.msra.mxu0 0.0
    %3132 = vmatprep.subr.mxu0 0.0
    %3133 = vmatpush1.msra.mxu0 0.0
    %3134 = vmatprep.subr.mxu0 0.0
    %3135 = vmatpush1.msra.mxu0 0.0
    %3136 = vmatprep.subr.mxu0 0.0
    %3137 = vmatpush1.msra.mxu0 0.0
    %3138 = vmatprep.subr.mxu0 0.0
    %3139 = vmatpush1.msra.mxu0 0.0
    %3140 = vmatprep.subr.mxu0 0.0
    %3141 = vmatpush1.msra.mxu0 0.0
    %3142 = vmatprep.subr.mxu0 0.0
    %3143 = vmatpush1.msra.mxu0 0.0
    %3144 = vmatprep.subr.mxu0 0.0
    %3145 = vmatpush1.msra.mxu0 0.0
    %3146 = vmatprep.subr.mxu0 0.0
    %3147 = vmatpush1.msra.mxu0 0.0
    %3148 = vmatprep.subr.mxu0 0.0
    %3149 = vmatpush1.msra.mxu0 0.0
    %3150 = vmatprep.mubr.f32.mxu0 0.0
    %3151 = vmatmul.mubr.f32.gmra.mrb[0].mxu0 %v3081
    %v3152 = vpop.f32.mrb[0].mxu0
    %v3153 = vadd.f32 0.0, %v3152
    %v3154 = vpop.f32.mrb[0].mxu0
    %3155 = vmatprep.mubr.f32.mxu0 0.0
    %3156 = vmatmul.mubr.f32.gmra.mrb[0].mxu0 %v3084
    %v3157 = vpop.f32.mrb[0].mxu0
    %v3158 = vadd.f32 0.0, %v3157
    %v3159 = vpop.f32.mrb[0].mxu0
    %3160 = vdwg.mxu0
    %3163 = vrot.lane.b32.xlu0 %v3153, 32
    %v3164 = vpop.permute.xlu0 %3163
    %3165 = vrot.lane.b32.xlu0 %v3158, 32
    %v3166 = vpop.permute.xlu0 %3165
    %v3169 = vadd.f32 %v2945, %v3164
    %v3170 = vadd.f32 %v2946, %v3166
    %v3171 = vadd.f32 %v3169, %v1497
    %v3172 = vadd.f32 %v3170, %v1497
    %3175 = vrot.lane.b32.xlu0 %v3171, 96
    %v3176 = vpop.permute.xlu0 %3175
    %3177 = vrot.lane.b32.xlu0 %v3172, 96
    %v3178 = vpop.permute.xlu0 %3177
    %3181 = vst.msk [vmem:[#allocation5] sm:$0xff] %vm87, %v3176
    %3182 = vst.msk [vmem:[#allocation5 + $0x8] sm:$0xff] %vm87, %v3178
    // Predicated region
    $region22: #{tpu_custom_call.1} parent=1 // pred_check
      _
    $region23: #{tpu_custom_call.1} parent=1 // pred_check_branch
      %3184 = sbr.rel (0) target = $region25
    $region24: #{tpu_custom_call.1} parent=1 // pred_region
      %s3186 = ssub.s32 256, 256
      %3187 = vsyncadd [#allocation4], %s3186
      %s3188 = sshll.u32 [#allocation5], 4
      %s3189 = int_to_ptr.vmem [resolvable:$true] %s3188
      %3194 = dma.vmem_to_hbm [thread:$0]  %s3189, 256, %s4, [#allocation4], 128, 128, 8
    $region25: #{tpu_custom_call.1} parent=1 // pred_fallthru
      _
    // Predicated region
    $region26: #{tpu_custom_call.1} parent=1 // pred_check
      _
    $region27: #{tpu_custom_call.1} parent=1 // pred_check_branch
      %3196 = sbr.rel (0) target = $region29
    $region28: #{tpu_custom_call.1} parent=1 // pred_region
      %3197 = dma.done [#allocation4], 256
    $region29: #{tpu_custom_call.1} parent=1 // pred_fallthru
      _
    %3198 = vsyncpa [#allocation3], 1
    %3199 = vsyncpa [#allocation4], 1

</llo_original>
